<compile_context>
chip_gen: v5e
topology: v5e:2x2
jax: 0.10.0
libtpu: 0.0.40
codegen_flags: <defaults>
</compile_context>

<pallas_src>
import math

import jax
import jax.numpy as jnp
from jax.experimental import pallas as pl

# ----------------------------- synthetic config ------------------------------
BATCH = 2
SEQ = 8
HIDDEN = 32
NUM_HEADS = 2
HEAD_DIM = HIDDEN // NUM_HEADS            # 16
INTERMEDIATE = 64
NUM_LAYERS = 2
BANDS = 4
TABLE_SIZE = 16                           # power of two -> use & (TABLE_SIZE-1)
NUM_HASHES = 2
LN_EPS = 1e-12
BH = BATCH * NUM_HEADS
NHB = NUM_HASHES * BANDS
_INV_SQRT_D = 1.0 / math.sqrt(HEAD_DIM)


def _gelu_tanh(x):
    return 0.5 * x * (1.0 + jnp.tanh(math.sqrt(2.0 / math.pi)
                                     * (x + 0.044715 * x * x * x)))


def _layernorm(x, g, b):
    mu = jnp.mean(x, axis=-1, keepdims=True)
    var = jnp.mean(jnp.square(x - mu), axis=-1, keepdims=True)
    return (x - mu) * jax.lax.rsqrt(var + LN_EPS) * g + b


# ========================= fused encoder Pallas kernel =======================

def _encoder_kernel(x_ref, mask_ref, wqkv_ref, bqkv_ref, wo_ref,
                    wi_ref, bi_ref, wo2_ref, vec_ref, r_ref, cbd_ref, o_ref):
    """Whole BertLSHEncoder forward in one kernel.  Everything stays in VMEM.

    x_ref    : (B*S, H)              hidden states (2D slab)
    mask_ref : (BH, 1, S)            additive attention mask (head-replicated)
    wqkv_ref : (L, 3*BH, H, D)       per-head Q/K/V weights (c, b, h major)
    bqkv_ref : (L, 3*BH, 1, D)       per-head Q/K/V biases
    wo_ref   : (L, BH, D, H)         per-head attention-output weights
    wi_ref   : (L, H, I)             FFN up weight
    bi_ref   : (L, 1, I)             FFN up bias
    wo2_ref  : (L, I, H)             FFN down weight
    vec_ref  : (L, 6, H)             [bo, ln1_g, ln1_b, bo2, ln2_g, ln2_b]
    r_ref    : (L, BH, NHB, D)       LSH hyperplanes
    cbd_ref  : (L, BH, NHB, F)       block-diagonal hash coefficients (f32)
    """
    x = x_ref[...]                        # (B*S, H)
    mask = mask_ref[...]                  # (BH, 1, S)

    row = jax.lax.broadcasted_iota(jnp.int32, (SEQ, SEQ), 0)
    col = jax.lax.broadcasted_iota(jnp.int32, (SEQ, SEQ), 1)
    upper = row <= col                    # (S, S)
    strict_upper = row < col

    for l in range(NUM_LAYERS):           # static unroll (2 layers)
        # ---- Q/K/V: one batched matmul over 3*BH per-head slabs -------------
        x3 = x.reshape(BATCH, SEQ, HIDDEN)
        x_bh = jnp.broadcast_to(
            x3[:, None], (BATCH, NUM_HEADS, SEQ, HIDDEN)
        ).reshape(BH, SEQ, HIDDEN)
        x_rep = jnp.broadcast_to(
            x_bh[None], (3, BH, SEQ, HIDDEN)
        ).reshape(3 * BH, SEQ, HIDDEN)
        qkv = jnp.einsum('nsh,nhd->nsd', x_rep, wqkv_ref[l],
                         preferred_element_type=jnp.float32) + bqkv_ref[l]
        q = qkv[0 * BH:1 * BH]            # (BH, S, D)
        k = qkv[1 * BH:2 * BH]
        v = qkv[2 * BH:3 * BH]

        # ---- LSH: sign bits -> per-hash bucket ids -> collision matrix ------
        r_l = r_ref[l]                    # (BH, NHB, D)
        cbd_l = cbd_ref[l]                # (BH, NHB, F)
        bq = (jnp.einsum('nsd,nrd->nsr', q, r_l,
                         preferred_element_type=jnp.float32) > 0
              ).astype(jnp.float32)       # (BH, S, NHB)
        bk = (jnp.einsum('nsd,nrd->nsr', k, r_l,
                         preferred_element_type=jnp.float32) > 0
              ).astype(jnp.float32)
        # hash values: block-diag coefficient matmul, round, then & (TS-1)
        hq = jnp.round(jnp.einsum('nsr,nrf->nsf', bq, cbd_l,
                                  preferred_element_type=jnp.float32)
                       ).astype(jnp.int32) & (TABLE_SIZE - 1)   # (BH, S, F)
        hk = jnp.round(jnp.einsum('nsr,nrf->nsf', bk, cbd_l,
                                  preferred_element_type=jnp.float32)
                       ).astype(jnp.int32) & (TABLE_SIZE - 1)
        # collision: equal bucket for any hash function (direct compare)
        eq = (hq[:, :, None, :] == hk[:, None, :, :]).astype(jnp.float32)
        coll = jnp.sum(eq, axis=-1) > 0.0                        # (BH, S, S)

        # ---- scores: upper triangle collided -> q_i.k_j, mirrored below -----
        qk = jnp.einsum('nqd,nkd->nqk', q, k,
                        preferred_element_type=jnp.float32)      # (BH, S, S)
        upper_scores = jnp.where(jnp.logical_and(upper, coll), qk, 0.0)
        lower_scores = jnp.swapaxes(
            jnp.where(strict_upper, upper_scores, 0.0), -1, -2)
        scores = (upper_scores + lower_scores) * _INV_SQRT_D + mask

        m = jnp.max(scores, axis=-1, keepdims=True)
        e = jnp.exp(scores - m)
        probs = e / jnp.sum(e, axis=-1, keepdims=True)
        ctx = jnp.einsum('nqk,nkd->nqd', probs, v,
                         preferred_element_type=jnp.float32)     # (BH, S, D)

        # ---- attention output dense: per-head matmul, sum over heads --------
        vec = vec_ref[l]                  # (6, H)
        y_h = jnp.einsum('nsd,ndo->nso', ctx, wo_ref[l],
                         preferred_element_type=jnp.float32)     # (BH, S, H)
        y4 = y_h.reshape(BATCH, NUM_HEADS, SEQ, HIDDEN)
        y3 = y4[:, 0]
        for h in range(1, NUM_HEADS):
            y3 = y3 + y4[:, h]
        y = y3.reshape(BATCH * SEQ, HIDDEN) + vec[0:1, :] + x
        attn_out = _layernorm(y, vec[1:2, :], vec[2:3, :])

        # ---- feed-forward (tanh GELU) + residual + LayerNorm -----------------
        inter = _gelu_tanh(
            jnp.dot(attn_out, wi_ref[l],
                    preferred_element_type=jnp.float32) + bi_ref[l])
        y2 = (jnp.dot(inter, wo2_ref[l], preferred_element_type=jnp.float32)
              + vec[3:4, :] + attn_out)
        x = _layernorm(y2, vec[4:5, :], vec[5:6, :])

    o_ref[...] = x


def bert_lsh_encoder(hidden_states, packed, lsh_r, lsh_cbd,
                     attention_mask=None):
    """hidden_states: (B,S,H); attention_mask: additive (B,1,S) or None."""
    if attention_mask is None:
        attention_mask = jnp.zeros((BATCH, 1, SEQ), jnp.float32)
    x2d = hidden_states.reshape(BATCH * SEQ, HIDDEN)
    mask_bh = jnp.repeat(attention_mask, NUM_HEADS, axis=0)      # (BH, 1, S)
    out2d = pl.pallas_call(
        _encoder_kernel,
        out_shape=jax.ShapeDtypeStruct((BATCH * SEQ, HIDDEN), jnp.float32),
    )(x2d, mask_bh,
      packed["wqkv"], packed["bqkv"], packed["wo"],
      packed["wi"], packed["bi"], packed["wo2"], packed["vecs"],
      lsh_r, lsh_cbd)
    return out2d.reshape(BATCH, SEQ, HIDDEN)


# ============================ parameter init =================================

def init_params(key):
    layers = []
    for l in range(NUM_LAYERS):
        ks = jax.random.split(jax.random.fold_in(key, l), 6)
        layers.append({
            "wq": 0.02 * jax.random.normal(ks[0], (HIDDEN, HIDDEN), jnp.float32),
            "bq": jnp.zeros((HIDDEN,), jnp.float32),
            "wk": 0.02 * jax.random.normal(ks[1], (HIDDEN, HIDDEN), jnp.float32),
            "bk": jnp.zeros((HIDDEN,), jnp.float32),
            "wv": 0.02 * jax.random.normal(ks[2], (HIDDEN, HIDDEN), jnp.float32),
            "bv": jnp.zeros((HIDDEN,), jnp.float32),
            "wo": 0.02 * jax.random.normal(ks[3], (HIDDEN, HIDDEN), jnp.float32),
            "bo": jnp.zeros((HIDDEN,), jnp.float32),
            "ln1_g": jnp.ones((HIDDEN,), jnp.float32),
            "ln1_b": jnp.zeros((HIDDEN,), jnp.float32),
            "wi": 0.02 * jax.random.normal(ks[4], (HIDDEN, INTERMEDIATE), jnp.float32),
            "bi": jnp.zeros((INTERMEDIATE,), jnp.float32),
            "wo2": 0.02 * jax.random.normal(ks[5], (INTERMEDIATE, HIDDEN), jnp.float32),
            "bo2": jnp.zeros((HIDDEN,), jnp.float32),
            "ln2_g": jnp.ones((HIDDEN,), jnp.float32),
            "ln2_b": jnp.zeros((HIDDEN,), jnp.float32),
        })
    return layers


def pack_params(layers):
    """Host-side packing into per-head batched slabs + one small-vector slab."""
    wqkv_l, bqkv_l, wo_l, wi_l, bi_l, wo2_l, vec_l = [], [], [], [], [], [], []
    for p in layers:
        def heads_w(w):                   # (H, H) -> (NH, H, D)
            return w.reshape(HIDDEN, NUM_HEADS, HEAD_DIM).transpose(1, 0, 2)

        w3 = jnp.stack([heads_w(p["wq"]), heads_w(p["wk"]), heads_w(p["wv"])], 0)
        w3 = jnp.broadcast_to(w3[:, None],
                              (3, BATCH, NUM_HEADS, HIDDEN, HEAD_DIM))
        wqkv_l.append(w3.reshape(3 * BH, HIDDEN, HEAD_DIM))

        b3 = jnp.stack([p["bq"].reshape(NUM_HEADS, HEAD_DIM),
                        p["bk"].reshape(NUM_HEADS, HEAD_DIM),
                        p["bv"].reshape(NUM_HEADS, HEAD_DIM)], 0)
        b3 = jnp.broadcast_to(b3[:, None], (3, BATCH, NUM_HEADS, HEAD_DIM))
        bqkv_l.append(b3.reshape(3 * BH, 1, HEAD_DIM))

        wo_h = p["wo"].reshape(NUM_HEADS, HEAD_DIM, HIDDEN)
        wo_h = jnp.broadcast_to(wo_h[None],
                                (BATCH, NUM_HEADS, HEAD_DIM, HIDDEN))
        wo_l.append(wo_h.reshape(BH, HEAD_DIM, HIDDEN))

        wi_l.append(p["wi"])
        bi_l.append(p["bi"].reshape(1, INTERMEDIATE))
        wo2_l.append(p["wo2"])
        vec_l.append(jnp.stack([p["bo"], p["ln1_g"], p["ln1_b"],
                                p["bo2"], p["ln2_g"], p["ln2_b"]], 0))

    stk = lambda xs: jnp.stack(xs, axis=0)
    return {"wqkv": stk(wqkv_l), "bqkv": stk(bqkv_l), "wo": stk(wo_l),
            "wi": stk(wi_l), "bi": stk(bi_l), "wo2": stk(wo2_l),
            "vecs": stk(vec_l)}


def init_lsh(key):
    rs, cs = [], []
    for l in range(NUM_LAYERS):
        kr, kc = jax.random.split(jax.random.fold_in(key, 1000 + l))
        rs.append(jax.random.normal(kr, (BH, NHB, HEAD_DIM), jnp.float32))
        cs.append(jax.random.randint(kc, (BH, NUM_HASHES, BANDS), 0, TABLE_SIZE,
                                     dtype=jnp.int32))
    return rs, cs


def lsh_kernel_operands(rs, cs):
    r_all = jnp.stack(rs, axis=0)                        # (L, BH, NHB, D)
    c_all = jnp.stack(cs, axis=0)                        # (L, BH, F, BANDS)
    eye = jnp.eye(NUM_HASHES, dtype=jnp.float32)
    # block-diagonal coefficients: cbd[l,n,f*BANDS+b,g] = c[l,n,f,b] if g==f
    cbd = (c_all.astype(jnp.float32)[..., None]
           * eye[None, None, :, None, :]).reshape(NUM_LAYERS, BH, NHB,
                                                  NUM_HASHES)
    return r_all, cbd


# ============================ pure-JAX reference =============================

def _to_heads(x2d):
    return (x2d.reshape(BATCH, SEQ, NUM_HEADS, HEAD_DIM)
            .transpose(0, 2, 1, 3)
            .reshape(BH, SEQ, HEAD_DIM))


def _from_heads(ctx):
    return (ctx.reshape(BATCH, NUM_HEADS, SEQ, HEAD_DIM)
            .transpose(0, 2, 1, 3)
            .reshape(BATCH * SEQ, HIDDEN))


def _ref_ln(x, g, b):
    mu = x.mean(-1, keepdims=True)
    var = ((x - mu) ** 2).mean(-1, keepdims=True)
    return (x - mu) * jax.lax.rsqrt(var + LN_EPS) * g + b


def _ref_attn_one(q, k, v, r, c, mask_row):
    pq = q @ r.T
    pk = k @ r.T
    bq = (pq > 0).astype(jnp.int32).reshape(SEQ, NUM_HASHES, BANDS)
    bk = (pk > 0).astype(jnp.int32).reshape(SEQ, NUM_HASHES, BANDS)
    hq = (bq * c[None]).sum(-1) % TABLE_SIZE             # (S, NUM_HASHES)
    hk = (bk * c[None]).sum(-1) % TABLE_SIZE
    coll = jnp.any(hq[:, None, :] == hk[None, :, :], axis=-1)
    qk = q @ k.T
    row = jnp.arange(SEQ)[:, None]
    col = jnp.arange(SEQ)[None, :]
    scores = jnp.where((row <= col) & coll, qk, 0.0)
    scores = scores + jnp.where((row > col) & coll.T, qk.T, 0.0)
    scores = scores / math.sqrt(HEAD_DIM) + mask_row
    probs = jax.nn.softmax(scores, axis=-1)
    return probs @ v


def _ref_layer(hs, p, r, c, mask):
    x2d = hs.reshape(BATCH * SEQ, HIDDEN)
    q = _to_heads(x2d @ p["wq"] + p["bq"])
    k = _to_heads(x2d @ p["wk"] + p["bk"])
    v = _to_heads(x2d @ p["wv"] + p["bv"])
    mask_bh = jnp.repeat(mask, NUM_HEADS, axis=0)        # (BH, 1, S)
    ctx = _from_heads(jax.vmap(_ref_attn_one)(q, k, v, r, c, mask_bh))
    attn_out = _ref_ln(ctx @ p["wo"] + p["bo"] + x2d, p["ln1_g"], p["ln1_b"])
    inter = _gelu_tanh(attn_out @ p["wi"] + p["bi"])
    out = _ref_ln(inter @ p["wo2"] + p["bo2"] + attn_out, p["ln2_g"], p["ln2_b"])
    return out.reshape(BATCH, SEQ, HIDDEN)


def ref_encoder(hidden_states, layers, lsh_rs, lsh_cs, attention_mask):
    hs = hidden_states
    for l in range(NUM_LAYERS):
        hs = _ref_layer(hs, layers[l], lsh_rs[l], lsh_cs[l], attention_mask)
    return hs


# ================================== main =====================================

if __name__ == "__main__":
    key = jax.random.PRNGKey(0)
    k_x, k_p, k_lsh = jax.random.split(key, 3)

    hidden_states = jax.random.normal(k_x, (BATCH, SEQ, HIDDEN), jnp.float32)
    attention_mask = jnp.zeros((BATCH, 1, SEQ), jnp.float32)   # additive mask

    layers = init_params(k_p)
    packed = pack_params(layers)
    lsh_rs, lsh_cs = init_lsh(k_lsh)
    r_all, cbd_all = lsh_kernel_operands(lsh_rs, lsh_cs)

    out = bert_lsh_encoder(hidden_states, packed, r_all, cbd_all,
                           attention_mask)
    out = jax.block_until_ready(out)

    # correctness check against a pure-JAX reference of the same forward pass
    ref = ref_encoder(hidden_states, layers, lsh_rs, lsh_cs, attention_mask)
    assert out.shape == (BATCH, SEQ, HIDDEN)
    assert jnp.allclose(out, ref, atol=2e-3, rtol=2e-3), (
        f"max abs diff {float(jnp.max(jnp.abs(out - ref)))}")

    print("KERNEL_OK")
</pallas_src>

<mosaic_0001>
module attributes {stable_mosaic.version = 11 : i64} {
  func.func @_encoder_kernel(%arg0: memref<16x32xf32, #tpu.memory_space<vmem>>, %arg1: memref<4x1x8xf32, #tpu.memory_space<vmem>>, %arg2: memref<2x12x32x16xf32, #tpu.memory_space<vmem>>, %arg3: memref<2x12x1x16xf32, #tpu.memory_space<vmem>>, %arg4: memref<2x4x16x32xf32, #tpu.memory_space<vmem>>, %arg5: memref<2x32x64xf32, #tpu.memory_space<vmem>>, %arg6: memref<2x1x64xf32, #tpu.memory_space<vmem>>, %arg7: memref<2x64x32xf32, #tpu.memory_space<vmem>>, %arg8: memref<2x6x32xf32, #tpu.memory_space<vmem>>, %arg9: memref<2x4x8x16xf32, #tpu.memory_space<vmem>>, %arg10: memref<2x4x8x2xf32, #tpu.memory_space<vmem>>, %arg11: memref<16x32xf32, #tpu.memory_space<vmem>>) attributes {dimension_semantics = [], scalar_prefetch = 0 : i64, scratch_operands = 0 : i64, tpu.core_type = #tpu.core_type<tc>} {
    %c0 = arith.constant 0 : index
    %c0_0 = arith.constant 0 : index
    %0 = vector.load %arg0[%c0, %c0_0] : memref<16x32xf32, #tpu.memory_space<vmem>>, vector<16x32xf32>
    %c0_1 = arith.constant 0 : index
    %c0_2 = arith.constant 0 : index
    %c0_3 = arith.constant 0 : index
    %1 = vector.load %arg1[%c0_1, %c0_2, %c0_3] : memref<4x1x8xf32, #tpu.memory_space<vmem>>, vector<4x1x8xf32>
    %2 = tpu.iota {dimensions = array<i32: 0>} : vector<8x8xi32>
    %3 = tpu.iota {dimensions = array<i32: 1>} : vector<8x8xi32>
    %4 = arith.cmpi sle, %2, %3 : vector<8x8xi32>
    %5 = arith.cmpi slt, %2, %3 : vector<8x8xi32>
    %6 = vector.shape_cast %0 : vector<16x32xf32> to vector<2x8x32xf32>
    %7 = vector.shape_cast %6 : vector<2x8x32xf32> to vector<2x1x8x32xf32>
    %8 = vector.shape_cast %7 : vector<2x1x8x32xf32> to vector<2x1x8x32xf32>
    %9 = vector.broadcast %8 : vector<2x1x8x32xf32> to vector<2x2x8x32xf32>
    %10 = vector.shape_cast %9 : vector<2x2x8x32xf32> to vector<4x8x32xf32>
    %11 = vector.shape_cast %10 : vector<4x8x32xf32> to vector<1x4x8x32xf32>
    %12 = vector.shape_cast %11 : vector<1x4x8x32xf32> to vector<1x4x8x32xf32>
    %13 = vector.broadcast %12 : vector<1x4x8x32xf32> to vector<3x4x8x32xf32>
    %14 = vector.shape_cast %13 : vector<3x4x8x32xf32> to vector<12x8x32xf32>
    %c0_4 = arith.constant 0 : index
    %c0_5 = arith.constant 0 : index
    %c0_6 = arith.constant 0 : index
    %c0_7 = arith.constant 0 : index
    %15 = vector.load %arg2[%c0_4, %c0_5, %c0_6, %c0_7] : memref<2x12x32x16xf32, #tpu.memory_space<vmem>>, vector<1x12x32x16xf32>
    %16 = vector.shape_cast %15 : vector<1x12x32x16xf32> to vector<12x32x16xf32>
    "tpu.trace_start"() <{level = 10 : i32, message = "nsh,nhd->nsd"}> : () -> ()
    %cst = arith.constant dense<0.000000e+00> : vector<12x8x16xf32>
    %17 = tpu.matmul %14, %16, %cst {dimension_numbers = #tpu.dot_dimension_numbers<[2], [1], [1], [2], [0, 0, 0, 1, 1, 2], [0], [0]>} : vector<12x8x32xf32>, vector<12x32x16xf32>, vector<12x8x16xf32> -> vector<12x8x16xf32>
    "tpu.trace_stop"() : () -> ()
    %c0_8 = arith.constant 0 : index
    %c0_9 = arith.constant 0 : index
    %c0_10 = arith.constant 0 : index
    %c0_11 = arith.constant 0 : index
    %18 = vector.load %arg3[%c0_8, %c0_9, %c0_10, %c0_11] : memref<2x12x1x16xf32, #tpu.memory_space<vmem>>, vector<1x12x1x16xf32>
    %19 = vector.shape_cast %18 : vector<1x12x1x16xf32> to vector<12x1x16xf32>
    %20 = vector.broadcast %19 : vector<12x1x16xf32> to vector<12x8x16xf32>
    %21 = arith.addf %17, %20 : vector<12x8x16xf32>
    %22 = vector.extract_strided_slice %21 {offsets = [0, 0, 0], sizes = [4, 8, 16], strides = [1, 1, 1]} : vector<12x8x16xf32> to vector<4x8x16xf32>
    %23 = vector.extract_strided_slice %21 {offsets = [4, 0, 0], sizes = [4, 8, 16], strides = [1, 1, 1]} : vector<12x8x16xf32> to vector<4x8x16xf32>
    %24 = vector.extract_strided_slice %21 {offsets = [8, 0, 0], sizes = [4, 8, 16], strides = [1, 1, 1]} : vector<12x8x16xf32> to vector<4x8x16xf32>
    %c0_12 = arith.constant 0 : index
    %c0_13 = arith.constant 0 : index
    %c0_14 = arith.constant 0 : index
    %c0_15 = arith.constant 0 : index
    %25 = vector.load %arg9[%c0_12, %c0_13, %c0_14, %c0_15] : memref<2x4x8x16xf32, #tpu.memory_space<vmem>>, vector<1x4x8x16xf32>
    %26 = vector.shape_cast %25 : vector<1x4x8x16xf32> to vector<4x8x16xf32>
    %c0_16 = arith.constant 0 : index
    %c0_17 = arith.constant 0 : index
    %c0_18 = arith.constant 0 : index
    %c0_19 = arith.constant 0 : index
    %27 = vector.load %arg10[%c0_16, %c0_17, %c0_18, %c0_19] : memref<2x4x8x2xf32, #tpu.memory_space<vmem>>, vector<1x4x8x2xf32>
    %28 = vector.shape_cast %27 : vector<1x4x8x2xf32> to vector<4x8x2xf32>
    "tpu.trace_start"() <{level = 10 : i32, message = "nsd,nrd->nsr"}> : () -> ()
    %cst_20 = arith.constant dense<0.000000e+00> : vector<4x8x8xf32>
    %29 = tpu.matmul %22, %26, %cst_20 {dimension_numbers = #tpu.dot_dimension_numbers<[2], [2], [1], [1], [0, 0, 0, 1, 1, 1], [0], [0]>} : vector<4x8x16xf32>, vector<4x8x16xf32>, vector<4x8x8xf32> -> vector<4x8x8xf32>
    %cst_21 = arith.constant 0.000000e+00 : f32
    "tpu.trace_stop"() : () -> ()
    %30 = vector.broadcast %cst_21 : f32 to vector<4x8x8xf32>
    %31 = arith.cmpf ogt, %29, %30 : vector<4x8x8xf32>
    %32 = arith.extui %31 : vector<4x8x8xi1> to vector<4x8x8xi32>
    %33 = arith.sitofp %32 : vector<4x8x8xi32> to vector<4x8x8xf32>
    "tpu.trace_start"() <{level = 10 : i32, message = "nsd,nrd->nsr"}> : () -> ()
    %cst_22 = arith.constant dense<0.000000e+00> : vector<4x8x8xf32>
    %34 = tpu.matmul %23, %26, %cst_22 {dimension_numbers = #tpu.dot_dimension_numbers<[2], [2], [1], [1], [0, 0, 0, 1, 1, 1], [0], [0]>} : vector<4x8x16xf32>, vector<4x8x16xf32>, vector<4x8x8xf32> -> vector<4x8x8xf32>
    %cst_23 = arith.constant 0.000000e+00 : f32
    "tpu.trace_stop"() : () -> ()
    %35 = vector.broadcast %cst_23 : f32 to vector<4x8x8xf32>
    %36 = arith.cmpf ogt, %34, %35 : vector<4x8x8xf32>
    %37 = arith.extui %36 : vector<4x8x8xi1> to vector<4x8x8xi32>
    %38 = arith.sitofp %37 : vector<4x8x8xi32> to vector<4x8x8xf32>
    "tpu.trace_start"() <{level = 10 : i32, message = "nsr,nrf->nsf"}> : () -> ()
    %cst_24 = arith.constant dense<0.000000e+00> : vector<4x8x2xf32>
    %39 = tpu.matmul %33, %28, %cst_24 {dimension_numbers = #tpu.dot_dimension_numbers<[2], [1], [1], [2], [0, 0, 0, 1, 1, 2], [0], [0]>} : vector<4x8x8xf32>, vector<4x8x2xf32>, vector<4x8x2xf32> -> vector<4x8x2xf32>
    "tpu.trace_stop"() : () -> ()
    %40 = math.roundeven %39 : vector<4x8x2xf32>
    %41 = arith.fptosi %40 : vector<4x8x2xf32> to vector<4x8x2xi32>
    %c15_i32 = arith.constant 15 : i32
    %42 = vector.broadcast %c15_i32 : i32 to vector<4x8x2xi32>
    %43 = arith.andi %41, %42 : vector<4x8x2xi32>
    "tpu.trace_start"() <{level = 10 : i32, message = "nsr,nrf->nsf"}> : () -> ()
    %cst_25 = arith.constant dense<0.000000e+00> : vector<4x8x2xf32>
    %44 = tpu.matmul %38, %28, %cst_25 {dimension_numbers = #tpu.dot_dimension_numbers<[2], [1], [1], [2], [0, 0, 0, 1, 1, 2], [0], [0]>} : vector<4x8x8xf32>, vector<4x8x2xf32>, vector<4x8x2xf32> -> vector<4x8x2xf32>
    "tpu.trace_stop"() : () -> ()
    %45 = math.roundeven %44 : vector<4x8x2xf32>
    %46 = arith.fptosi %45 : vector<4x8x2xf32> to vector<4x8x2xi32>
    %c15_i32_26 = arith.constant 15 : i32
    %47 = vector.broadcast %c15_i32_26 : i32 to vector<4x8x2xi32>
    %48 = arith.andi %46, %47 : vector<4x8x2xi32>
    %49 = vector.shape_cast %43 : vector<4x8x2xi32> to vector<4x8x1x2xi32>
    %50 = vector.shape_cast %48 : vector<4x8x2xi32> to vector<4x1x8x2xi32>
    %51 = vector.broadcast %49 : vector<4x8x1x2xi32> to vector<4x8x8x2xi32>
    %52 = vector.broadcast %50 : vector<4x1x8x2xi32> to vector<4x8x8x2xi32>
    %53 = arith.cmpi eq, %51, %52 : vector<4x8x8x2xi32>
    %54 = arith.extui %53 : vector<4x8x8x2xi1> to vector<4x8x8x2xi32>
    %55 = arith.sitofp %54 : vector<4x8x8x2xi32> to vector<4x8x8x2xf32>
    %cst_27 = arith.constant dense<0.000000e+00> : vector<4x8x8xf32>
    %56 = vector.multi_reduction <add>, %55, %cst_27 [3] : vector<4x8x8x2xf32> to vector<4x8x8xf32>
    %cst_28 = arith.constant 0.000000e+00 : f32
    %57 = vector.broadcast %cst_28 : f32 to vector<4x8x8xf32>
    %58 = arith.cmpf ogt, %56, %57 : vector<4x8x8xf32>
    "tpu.trace_start"() <{level = 10 : i32, message = "nqd,nkd->nqk"}> : () -> ()
    %cst_29 = arith.constant dense<0.000000e+00> : vector<4x8x8xf32>
    %59 = tpu.matmul %22, %23, %cst_29 {dimension_numbers = #tpu.dot_dimension_numbers<[2], [2], [1], [1], [0, 0, 0, 1, 1, 1], [0], [0]>} : vector<4x8x16xf32>, vector<4x8x16xf32>, vector<4x8x8xf32> -> vector<4x8x8xf32>
    "tpu.trace_stop"() : () -> ()
    %60 = vector.shape_cast %4 : vector<8x8xi1> to vector<1x8x8xi1>
    %61 = vector.broadcast %60 : vector<1x8x8xi1> to vector<4x8x8xi1>
    %62 = arith.andi %61, %58 : vector<4x8x8xi1>
    %cst_30 = arith.constant 0.000000e+00 : f32
    %63 = vector.broadcast %cst_30 : f32 to vector<4x8x8xf32>
    %64 = arith.select %62, %59, %63 : vector<4x8x8xi1>, vector<4x8x8xf32>
    %cst_31 = arith.constant 0.000000e+00 : f32
    %65 = vector.shape_cast %5 : vector<8x8xi1> to vector<1x8x8xi1>
    %66 = vector.broadcast %65 : vector<1x8x8xi1> to vector<4x8x8xi1>
    %67 = vector.broadcast %cst_31 : f32 to vector<4x8x8xf32>
    %68 = arith.select %66, %64, %67 : vector<4x8x8xi1>, vector<4x8x8xf32>
    %69 = tpu.transpose %68, [0, 2, 1] : vector<4x8x8xf32> -> vector<4x8x8xf32>
    %70 = arith.addf %64, %69 : vector<4x8x8xf32>
    %cst_32 = arith.constant 2.500000e-01 : f32
    %71 = vector.broadcast %cst_32 : f32 to vector<4x8x8xf32>
    %72 = arith.mulf %70, %71 : vector<4x8x8xf32>
    %73 = vector.broadcast %1 : vector<4x1x8xf32> to vector<4x8x8xf32>
    %74 = arith.addf %72, %73 : vector<4x8x8xf32>
    %cst_33 = arith.constant dense<0xFF800000> : vector<4x8xf32>
    %75 = vector.multi_reduction <maximumf>, %74, %cst_33 [2] : vector<4x8x8xf32> to vector<4x8xf32>
    %76 = vector.shape_cast %75 : vector<4x8xf32> to vector<4x8x1xf32>
    %77 = vector.broadcast %76 : vector<4x8x1xf32> to vector<4x8x8xf32>
    %78 = arith.subf %74, %77 : vector<4x8x8xf32>
    %79 = math.exp %78 : vector<4x8x8xf32>
    %cst_34 = arith.constant dense<0.000000e+00> : vector<4x8xf32>
    %80 = vector.multi_reduction <add>, %79, %cst_34 [2] : vector<4x8x8xf32> to vector<4x8xf32>
    %81 = vector.shape_cast %80 : vector<4x8xf32> to vector<4x8x1xf32>
    %82 = vector.broadcast %81 : vector<4x8x1xf32> to vector<4x8x8xf32>
    %83 = arith.divf %79, %82 : vector<4x8x8xf32>
    "tpu.trace_start"() <{level = 10 : i32, message = "nqk,nkd->nqd"}> : () -> ()
    %cst_35 = arith.constant dense<0.000000e+00> : vector<4x8x16xf32>
    %84 = tpu.matmul %83, %24, %cst_35 {dimension_numbers = #tpu.dot_dimension_numbers<[2], [1], [1], [2], [0, 0, 0, 1, 1, 2], [0], [0]>} : vector<4x8x8xf32>, vector<4x8x16xf32>, vector<4x8x16xf32> -> vector<4x8x16xf32>
    "tpu.trace_stop"() : () -> ()
    %c0_36 = arith.constant 0 : index
    %c0_37 = arith.constant 0 : index
    %c0_38 = arith.constant 0 : index
    %85 = vector.load %arg8[%c0_36, %c0_37, %c0_38] : memref<2x6x32xf32, #tpu.memory_space<vmem>>, vector<1x6x32xf32>
    %86 = vector.shape_cast %85 : vector<1x6x32xf32> to vector<6x32xf32>
    %c0_39 = arith.constant 0 : index
    %c0_40 = arith.constant 0 : index
    %c0_41 = arith.constant 0 : index
    %c0_42 = arith.constant 0 : index
    %87 = vector.load %arg4[%c0_39, %c0_40, %c0_41, %c0_42] : memref<2x4x16x32xf32, #tpu.memory_space<vmem>>, vector<1x4x16x32xf32>
    %88 = vector.shape_cast %87 : vector<1x4x16x32xf32> to vector<4x16x32xf32>
    "tpu.trace_start"() <{level = 10 : i32, message = "nsd,ndo->nso"}> : () -> ()
    %cst_43 = arith.constant dense<0.000000e+00> : vector<4x8x32xf32>
    %89 = tpu.matmul %84, %88, %cst_43 {dimension_numbers = #tpu.dot_dimension_numbers<[2], [1], [1], [2], [0, 0, 0, 1, 1, 2], [0], [0]>} : vector<4x8x16xf32>, vector<4x16x32xf32>, vector<4x8x32xf32> -> vector<4x8x32xf32>
    "tpu.trace_stop"() : () -> ()
    %90 = vector.shape_cast %89 : vector<4x8x32xf32> to vector<2x2x8x32xf32>
    %91 = vector.extract_strided_slice %90 {offsets = [0, 0, 0, 0], sizes = [2, 1, 8, 32], strides = [1, 1, 1, 1]} : vector<2x2x8x32xf32> to vector<2x1x8x32xf32>
    %92 = vector.shape_cast %91 : vector<2x1x8x32xf32> to vector<2x8x32xf32>
    %93 = vector.extract_strided_slice %90 {offsets = [0, 1, 0, 0], sizes = [2, 1, 8, 32], strides = [1, 1, 1, 1]} : vector<2x2x8x32xf32> to vector<2x1x8x32xf32>
    %94 = vector.shape_cast %93 : vector<2x1x8x32xf32> to vector<2x8x32xf32>
    %95 = arith.addf %92, %94 : vector<2x8x32xf32>
    %96 = vector.shape_cast %95 : vector<2x8x32xf32> to vector<16x32xf32>
    %97 = vector.extract_strided_slice %86 {offsets = [0, 0], sizes = [1, 32], strides = [1, 1]} : vector<6x32xf32> to vector<1x32xf32>
    %98 = vector.broadcast %97 : vector<1x32xf32> to vector<16x32xf32>
    %99 = arith.addf %96, %98 : vector<16x32xf32>
    %100 = arith.addf %99, %0 : vector<16x32xf32>
    %101 = vector.extract_strided_slice %86 {offsets = [1, 0], sizes = [1, 32], strides = [1, 1]} : vector<6x32xf32> to vector<1x32xf32>
    %102 = vector.extract_strided_slice %86 {offsets = [2, 0], sizes = [1, 32], strides = [1, 1]} : vector<6x32xf32> to vector<1x32xf32>
    %cst_44 = arith.constant dense<0.000000e+00> : vector<16xf32>
    %103 = vector.multi_reduction <add>, %100, %cst_44 [1] : vector<16x32xf32> to vector<16xf32>
    %104 = vector.shape_cast %103 : vector<16xf32> to vector<16x1xf32>
    %cst_45 = arith.constant 3.200000e+01 : f32
    %105 = vector.broadcast %cst_45 : f32 to vector<16x1xf32>
    %106 = arith.divf %104, %105 : vector<16x1xf32>
    %107 = vector.broadcast %106 : vector<16x1xf32> to vector<16x32xf32>
    %108 = arith.subf %100, %107 : vector<16x32xf32>
    %109 = arith.mulf %108, %108 : vector<16x32xf32>
    %cst_46 = arith.constant dense<0.000000e+00> : vector<16xf32>
    %110 = vector.multi_reduction <add>, %109, %cst_46 [1] : vector<16x32xf32> to vector<16xf32>
    %111 = vector.shape_cast %110 : vector<16xf32> to vector<16x1xf32>
    %cst_47 = arith.constant 3.200000e+01 : f32
    %112 = vector.broadcast %cst_47 : f32 to vector<16x1xf32>
    %113 = arith.divf %111, %112 : vector<16x1xf32>
    %114 = vector.broadcast %106 : vector<16x1xf32> to vector<16x32xf32>
    %115 = arith.subf %100, %114 : vector<16x32xf32>
    %cst_48 = arith.constant 9.99999996E-13 : f32
    %116 = vector.broadcast %cst_48 : f32 to vector<16x1xf32>
    %117 = arith.addf %113, %116 : vector<16x1xf32>
    %118 = math.rsqrt %117 : vector<16x1xf32>
    %119 = vector.broadcast %118 : vector<16x1xf32> to vector<16x32xf32>
    %120 = arith.mulf %115, %119 : vector<16x32xf32>
    %121 = vector.broadcast %101 : vector<1x32xf32> to vector<16x32xf32>
    %122 = arith.mulf %120, %121 : vector<16x32xf32>
    %123 = vector.broadcast %102 : vector<1x32xf32> to vector<16x32xf32>
    %124 = arith.addf %122, %123 : vector<16x32xf32>
    %c0_49 = arith.constant 0 : index
    %c0_50 = arith.constant 0 : index
    %c0_51 = arith.constant 0 : index
    %125 = vector.load %arg5[%c0_49, %c0_50, %c0_51] : memref<2x32x64xf32, #tpu.memory_space<vmem>>, vector<1x32x64xf32>
    %126 = vector.shape_cast %125 : vector<1x32x64xf32> to vector<32x64xf32>
    %cst_52 = arith.constant dense<0.000000e+00> : vector<16x64xf32>
    %127 = tpu.matmul %124, %126, %cst_52 {dimension_numbers = #tpu.dot_dimension_numbers<[1], [0], [0], [1], [0, 0, 1, 1], [], []>} : vector<16x32xf32>, vector<32x64xf32>, vector<16x64xf32> -> vector<16x64xf32>
    %c0_53 = arith.constant 0 : index
    %c0_54 = arith.constant 0 : index
    %c0_55 = arith.constant 0 : index
    %128 = vector.load %arg6[%c0_53, %c0_54, %c0_55] : memref<2x1x64xf32, #tpu.memory_space<vmem>>, vector<1x1x64xf32>
    %129 = vector.shape_cast %128 : vector<1x1x64xf32> to vector<1x64xf32>
    %130 = vector.broadcast %129 : vector<1x64xf32> to vector<16x64xf32>
    %131 = arith.addf %127, %130 : vector<16x64xf32>
    %cst_56 = arith.constant 5.000000e-01 : f32
    %132 = vector.broadcast %cst_56 : f32 to vector<16x64xf32>
    %133 = arith.mulf %132, %131 : vector<16x64xf32>
    %cst_57 = arith.constant 4.471500e-02 : f32
    %134 = vector.broadcast %cst_57 : f32 to vector<16x64xf32>
    %135 = arith.mulf %134, %131 : vector<16x64xf32>
    %136 = arith.mulf %135, %131 : vector<16x64xf32>
    %137 = arith.mulf %136, %131 : vector<16x64xf32>
    %138 = arith.addf %131, %137 : vector<16x64xf32>
    %cst_58 = arith.constant 0.797884583 : f32
    %139 = vector.broadcast %cst_58 : f32 to vector<16x64xf32>
    %140 = arith.mulf %139, %138 : vector<16x64xf32>
    %141 = math.tanh %140 : vector<16x64xf32>
    %cst_59 = arith.constant 1.000000e+00 : f32
    %142 = vector.broadcast %cst_59 : f32 to vector<16x64xf32>
    %143 = arith.addf %142, %141 : vector<16x64xf32>
    %144 = arith.mulf %133, %143 : vector<16x64xf32>
    %c0_60 = arith.constant 0 : index
    %c0_61 = arith.constant 0 : index
    %c0_62 = arith.constant 0 : index
    %145 = vector.load %arg7[%c0_60, %c0_61, %c0_62] : memref<2x64x32xf32, #tpu.memory_space<vmem>>, vector<1x64x32xf32>
    %146 = vector.shape_cast %145 : vector<1x64x32xf32> to vector<64x32xf32>
    %cst_63 = arith.constant dense<0.000000e+00> : vector<16x32xf32>
    %147 = tpu.matmul %144, %146, %cst_63 {dimension_numbers = #tpu.dot_dimension_numbers<[1], [0], [0], [1], [0, 0, 1, 1], [], []>} : vector<16x64xf32>, vector<64x32xf32>, vector<16x32xf32> -> vector<16x32xf32>
    %148 = vector.extract_strided_slice %86 {offsets = [3, 0], sizes = [1, 32], strides = [1, 1]} : vector<6x32xf32> to vector<1x32xf32>
    %149 = vector.broadcast %148 : vector<1x32xf32> to vector<16x32xf32>
    %150 = arith.addf %147, %149 : vector<16x32xf32>
    %151 = arith.addf %150, %124 : vector<16x32xf32>
    %152 = vector.extract_strided_slice %86 {offsets = [4, 0], sizes = [1, 32], strides = [1, 1]} : vector<6x32xf32> to vector<1x32xf32>
    %153 = vector.extract_strided_slice %86 {offsets = [5, 0], sizes = [1, 32], strides = [1, 1]} : vector<6x32xf32> to vector<1x32xf32>
    %cst_64 = arith.constant dense<0.000000e+00> : vector<16xf32>
    %154 = vector.multi_reduction <add>, %151, %cst_64 [1] : vector<16x32xf32> to vector<16xf32>
    %155 = vector.shape_cast %154 : vector<16xf32> to vector<16x1xf32>
    %cst_65 = arith.constant 3.200000e+01 : f32
    %156 = vector.broadcast %cst_65 : f32 to vector<16x1xf32>
    %157 = arith.divf %155, %156 : vector<16x1xf32>
    %158 = vector.broadcast %157 : vector<16x1xf32> to vector<16x32xf32>
    %159 = arith.subf %151, %158 : vector<16x32xf32>
    %160 = arith.mulf %159, %159 : vector<16x32xf32>
    %cst_66 = arith.constant dense<0.000000e+00> : vector<16xf32>
    %161 = vector.multi_reduction <add>, %160, %cst_66 [1] : vector<16x32xf32> to vector<16xf32>
    %162 = vector.shape_cast %161 : vector<16xf32> to vector<16x1xf32>
    %cst_67 = arith.constant 3.200000e+01 : f32
    %163 = vector.broadcast %cst_67 : f32 to vector<16x1xf32>
    %164 = arith.divf %162, %163 : vector<16x1xf32>
    %165 = vector.broadcast %157 : vector<16x1xf32> to vector<16x32xf32>
    %166 = arith.subf %151, %165 : vector<16x32xf32>
    %cst_68 = arith.constant 9.99999996E-13 : f32
    %167 = vector.broadcast %cst_68 : f32 to vector<16x1xf32>
    %168 = arith.addf %164, %167 : vector<16x1xf32>
    %169 = math.rsqrt %168 : vector<16x1xf32>
    %170 = vector.broadcast %169 : vector<16x1xf32> to vector<16x32xf32>
    %171 = arith.mulf %166, %170 : vector<16x32xf32>
    %172 = vector.broadcast %152 : vector<1x32xf32> to vector<16x32xf32>
    %173 = arith.mulf %171, %172 : vector<16x32xf32>
    %174 = vector.broadcast %153 : vector<1x32xf32> to vector<16x32xf32>
    %175 = arith.addf %173, %174 : vector<16x32xf32>
    %176 = vector.shape_cast %175 : vector<16x32xf32> to vector<2x8x32xf32>
    %177 = vector.shape_cast %176 : vector<2x8x32xf32> to vector<2x1x8x32xf32>
    %178 = vector.shape_cast %177 : vector<2x1x8x32xf32> to vector<2x1x8x32xf32>
    %179 = vector.broadcast %178 : vector<2x1x8x32xf32> to vector<2x2x8x32xf32>
    %180 = vector.shape_cast %179 : vector<2x2x8x32xf32> to vector<4x8x32xf32>
    %181 = vector.shape_cast %180 : vector<4x8x32xf32> to vector<1x4x8x32xf32>
    %182 = vector.shape_cast %181 : vector<1x4x8x32xf32> to vector<1x4x8x32xf32>
    %183 = vector.broadcast %182 : vector<1x4x8x32xf32> to vector<3x4x8x32xf32>
    %184 = vector.shape_cast %183 : vector<3x4x8x32xf32> to vector<12x8x32xf32>
    %c1 = arith.constant 1 : index
    %c0_69 = arith.constant 0 : index
    %c0_70 = arith.constant 0 : index
    %c0_71 = arith.constant 0 : index
    %185 = vector.load %arg2[%c1, %c0_69, %c0_70, %c0_71] : memref<2x12x32x16xf32, #tpu.memory_space<vmem>>, vector<1x12x32x16xf32>
    %186 = vector.shape_cast %185 : vector<1x12x32x16xf32> to vector<12x32x16xf32>
    "tpu.trace_start"() <{level = 10 : i32, message = "nsh,nhd->nsd"}> : () -> ()
    %cst_72 = arith.constant dense<0.000000e+00> : vector<12x8x16xf32>
    %187 = tpu.matmul %184, %186, %cst_72 {dimension_numbers = #tpu.dot_dimension_numbers<[2], [1], [1], [2], [0, 0, 0, 1, 1, 2], [0], [0]>} : vector<12x8x32xf32>, vector<12x32x16xf32>, vector<12x8x16xf32> -> vector<12x8x16xf32>
    "tpu.trace_stop"() : () -> ()
    %c1_73 = arith.constant 1 : index
    %c0_74 = arith.constant 0 : index
    %c0_75 = arith.constant 0 : index
    %c0_76 = arith.constant 0 : index
    %188 = vector.load %arg3[%c1_73, %c0_74, %c0_75, %c0_76] : memref<2x12x1x16xf32, #tpu.memory_space<vmem>>, vector<1x12x1x16xf32>
    %189 = vector.shape_cast %188 : vector<1x12x1x16xf32> to vector<12x1x16xf32>
    %190 = vector.broadcast %189 : vector<12x1x16xf32> to vector<12x8x16xf32>
    %191 = arith.addf %187, %190 : vector<12x8x16xf32>
    %192 = vector.extract_strided_slice %191 {offsets = [0, 0, 0], sizes = [4, 8, 16], strides = [1, 1, 1]} : vector<12x8x16xf32> to vector<4x8x16xf32>
    %193 = vector.extract_strided_slice %191 {offsets = [4, 0, 0], sizes = [4, 8, 16], strides = [1, 1, 1]} : vector<12x8x16xf32> to vector<4x8x16xf32>
    %194 = vector.extract_strided_slice %191 {offsets = [8, 0, 0], sizes = [4, 8, 16], strides = [1, 1, 1]} : vector<12x8x16xf32> to vector<4x8x16xf32>
    %c1_77 = arith.constant 1 : index
    %c0_78 = arith.constant 0 : index
    %c0_79 = arith.constant 0 : index
    %c0_80 = arith.constant 0 : index
    %195 = vector.load %arg9[%c1_77, %c0_78, %c0_79, %c0_80] : memref<2x4x8x16xf32, #tpu.memory_space<vmem>>, vector<1x4x8x16xf32>
    %196 = vector.shape_cast %195 : vector<1x4x8x16xf32> to vector<4x8x16xf32>
    %c1_81 = arith.constant 1 : index
    %c0_82 = arith.constant 0 : index
    %c0_83 = arith.constant 0 : index
    %c0_84 = arith.constant 0 : index
    %197 = vector.load %arg10[%c1_81, %c0_82, %c0_83, %c0_84] : memref<2x4x8x2xf32, #tpu.memory_space<vmem>>, vector<1x4x8x2xf32>
    %198 = vector.shape_cast %197 : vector<1x4x8x2xf32> to vector<4x8x2xf32>
    "tpu.trace_start"() <{level = 10 : i32, message = "nsd,nrd->nsr"}> : () -> ()
    %cst_85 = arith.constant dense<0.000000e+00> : vector<4x8x8xf32>
    %199 = tpu.matmul %192, %196, %cst_85 {dimension_numbers = #tpu.dot_dimension_numbers<[2], [2], [1], [1], [0, 0, 0, 1, 1, 1], [0], [0]>} : vector<4x8x16xf32>, vector<4x8x16xf32>, vector<4x8x8xf32> -> vector<4x8x8xf32>
    %cst_86 = arith.constant 0.000000e+00 : f32
    "tpu.trace_stop"() : () -> ()
    %200 = vector.broadcast %cst_86 : f32 to vector<4x8x8xf32>
    %201 = arith.cmpf ogt, %199, %200 : vector<4x8x8xf32>
    %202 = arith.extui %201 : vector<4x8x8xi1> to vector<4x8x8xi32>
    %203 = arith.sitofp %202 : vector<4x8x8xi32> to vector<4x8x8xf32>
    "tpu.trace_start"() <{level = 10 : i32, message = "nsd,nrd->nsr"}> : () -> ()
    %cst_87 = arith.constant dense<0.000000e+00> : vector<4x8x8xf32>
    %204 = tpu.matmul %193, %196, %cst_87 {dimension_numbers = #tpu.dot_dimension_numbers<[2], [2], [1], [1], [0, 0, 0, 1, 1, 1], [0], [0]>} : vector<4x8x16xf32>, vector<4x8x16xf32>, vector<4x8x8xf32> -> vector<4x8x8xf32>
    %cst_88 = arith.constant 0.000000e+00 : f32
    "tpu.trace_stop"() : () -> ()
    %205 = vector.broadcast %cst_88 : f32 to vector<4x8x8xf32>
    %206 = arith.cmpf ogt, %204, %205 : vector<4x8x8xf32>
    %207 = arith.extui %206 : vector<4x8x8xi1> to vector<4x8x8xi32>
    %208 = arith.sitofp %207 : vector<4x8x8xi32> to vector<4x8x8xf32>
    "tpu.trace_start"() <{level = 10 : i32, message = "nsr,nrf->nsf"}> : () -> ()
    %cst_89 = arith.constant dense<0.000000e+00> : vector<4x8x2xf32>
    %209 = tpu.matmul %203, %198, %cst_89 {dimension_numbers = #tpu.dot_dimension_numbers<[2], [1], [1], [2], [0, 0, 0, 1, 1, 2], [0], [0]>} : vector<4x8x8xf32>, vector<4x8x2xf32>, vector<4x8x2xf32> -> vector<4x8x2xf32>
    "tpu.trace_stop"() : () -> ()
    %210 = math.roundeven %209 : vector<4x8x2xf32>
    %211 = arith.fptosi %210 : vector<4x8x2xf32> to vector<4x8x2xi32>
    %c15_i32_90 = arith.constant 15 : i32
    %212 = vector.broadcast %c15_i32_90 : i32 to vector<4x8x2xi32>
    %213 = arith.andi %211, %212 : vector<4x8x2xi32>
    "tpu.trace_start"() <{level = 10 : i32, message = "nsr,nrf->nsf"}> : () -> ()
    %cst_91 = arith.constant dense<0.000000e+00> : vector<4x8x2xf32>
    %214 = tpu.matmul %208, %198, %cst_91 {dimension_numbers = #tpu.dot_dimension_numbers<[2], [1], [1], [2], [0, 0, 0, 1, 1, 2], [0], [0]>} : vector<4x8x8xf32>, vector<4x8x2xf32>, vector<4x8x2xf32> -> vector<4x8x2xf32>
    "tpu.trace_stop"() : () -> ()
    %215 = math.roundeven %214 : vector<4x8x2xf32>
    %216 = arith.fptosi %215 : vector<4x8x2xf32> to vector<4x8x2xi32>
    %c15_i32_92 = arith.constant 15 : i32
    %217 = vector.broadcast %c15_i32_92 : i32 to vector<4x8x2xi32>
    %218 = arith.andi %216, %217 : vector<4x8x2xi32>
    %219 = vector.shape_cast %213 : vector<4x8x2xi32> to vector<4x8x1x2xi32>
    %220 = vector.shape_cast %218 : vector<4x8x2xi32> to vector<4x1x8x2xi32>
    %221 = vector.broadcast %219 : vector<4x8x1x2xi32> to vector<4x8x8x2xi32>
    %222 = vector.broadcast %220 : vector<4x1x8x2xi32> to vector<4x8x8x2xi32>
    %223 = arith.cmpi eq, %221, %222 : vector<4x8x8x2xi32>
    %224 = arith.extui %223 : vector<4x8x8x2xi1> to vector<4x8x8x2xi32>
    %225 = arith.sitofp %224 : vector<4x8x8x2xi32> to vector<4x8x8x2xf32>
    %cst_93 = arith.constant dense<0.000000e+00> : vector<4x8x8xf32>
    %226 = vector.multi_reduction <add>, %225, %cst_93 [3] : vector<4x8x8x2xf32> to vector<4x8x8xf32>
    %cst_94 = arith.constant 0.000000e+00 : f32
    %227 = vector.broadcast %cst_94 : f32 to vector<4x8x8xf32>
    %228 = arith.cmpf ogt, %226, %227 : vector<4x8x8xf32>
    "tpu.trace_start"() <{level = 10 : i32, message = "nqd,nkd->nqk"}> : () -> ()
    %cst_95 = arith.constant dense<0.000000e+00> : vector<4x8x8xf32>
    %229 = tpu.matmul %192, %193, %cst_95 {dimension_numbers = #tpu.dot_dimension_numbers<[2], [2], [1], [1], [0, 0, 0, 1, 1, 1], [0], [0]>} : vector<4x8x16xf32>, vector<4x8x16xf32>, vector<4x8x8xf32> -> vector<4x8x8xf32>
    "tpu.trace_stop"() : () -> ()
    %230 = vector.shape_cast %4 : vector<8x8xi1> to vector<1x8x8xi1>
    %231 = vector.broadcast %230 : vector<1x8x8xi1> to vector<4x8x8xi1>
    %232 = arith.andi %231, %228 : vector<4x8x8xi1>
    %cst_96 = arith.constant 0.000000e+00 : f32
    %233 = vector.broadcast %cst_96 : f32 to vector<4x8x8xf32>
    %234 = arith.select %232, %229, %233 : vector<4x8x8xi1>, vector<4x8x8xf32>
    %cst_97 = arith.constant 0.000000e+00 : f32
    %235 = vector.shape_cast %5 : vector<8x8xi1> to vector<1x8x8xi1>
    %236 = vector.broadcast %235 : vector<1x8x8xi1> to vector<4x8x8xi1>
    %237 = vector.broadcast %cst_97 : f32 to vector<4x8x8xf32>
    %238 = arith.select %236, %234, %237 : vector<4x8x8xi1>, vector<4x8x8xf32>
    %239 = tpu.transpose %238, [0, 2, 1] : vector<4x8x8xf32> -> vector<4x8x8xf32>
    %240 = arith.addf %234, %239 : vector<4x8x8xf32>
    %cst_98 = arith.constant 2.500000e-01 : f32
    %241 = vector.broadcast %cst_98 : f32 to vector<4x8x8xf32>
    %242 = arith.mulf %240, %241 : vector<4x8x8xf32>
    %243 = vector.broadcast %1 : vector<4x1x8xf32> to vector<4x8x8xf32>
    %244 = arith.addf %242, %243 : vector<4x8x8xf32>
    %cst_99 = arith.constant dense<0xFF800000> : vector<4x8xf32>
    %245 = vector.multi_reduction <maximumf>, %244, %cst_99 [2] : vector<4x8x8xf32> to vector<4x8xf32>
    %246 = vector.shape_cast %245 : vector<4x8xf32> to vector<4x8x1xf32>
    %247 = vector.broadcast %246 : vector<4x8x1xf32> to vector<4x8x8xf32>
    %248 = arith.subf %244, %247 : vector<4x8x8xf32>
    %249 = math.exp %248 : vector<4x8x8xf32>
    %cst_100 = arith.constant dense<0.000000e+00> : vector<4x8xf32>
    %250 = vector.multi_reduction <add>, %249, %cst_100 [2] : vector<4x8x8xf32> to vector<4x8xf32>
    %251 = vector.shape_cast %250 : vector<4x8xf32> to vector<4x8x1xf32>
    %252 = vector.broadcast %251 : vector<4x8x1xf32> to vector<4x8x8xf32>
    %253 = arith.divf %249, %252 : vector<4x8x8xf32>
    "tpu.trace_start"() <{level = 10 : i32, message = "nqk,nkd->nqd"}> : () -> ()
    %cst_101 = arith.constant dense<0.000000e+00> : vector<4x8x16xf32>
    %254 = tpu.matmul %253, %194, %cst_101 {dimension_numbers = #tpu.dot_dimension_numbers<[2], [1], [1], [2], [0, 0, 0, 1, 1, 2], [0], [0]>} : vector<4x8x8xf32>, vector<4x8x16xf32>, vector<4x8x16xf32> -> vector<4x8x16xf32>
    "tpu.trace_stop"() : () -> ()
    %c1_102 = arith.constant 1 : index
    %c0_103 = arith.constant 0 : index
    %c0_104 = arith.constant 0 : index
    %255 = vector.load %arg8[%c1_102, %c0_103, %c0_104] : memref<2x6x32xf32, #tpu.memory_space<vmem>>, vector<1x6x32xf32>
    %256 = vector.shape_cast %255 : vector<1x6x32xf32> to vector<6x32xf32>
    %c1_105 = arith.constant 1 : index
    %c0_106 = arith.constant 0 : index
    %c0_107 = arith.constant 0 : index
    %c0_108 = arith.constant 0 : index
    %257 = vector.load %arg4[%c1_105, %c0_106, %c0_107, %c0_108] : memref<2x4x16x32xf32, #tpu.memory_space<vmem>>, vector<1x4x16x32xf32>
    %258 = vector.shape_cast %257 : vector<1x4x16x32xf32> to vector<4x16x32xf32>
    "tpu.trace_start"() <{level = 10 : i32, message = "nsd,ndo->nso"}> : () -> ()
    %cst_109 = arith.constant dense<0.000000e+00> : vector<4x8x32xf32>
    %259 = tpu.matmul %254, %258, %cst_109 {dimension_numbers = #tpu.dot_dimension_numbers<[2], [1], [1], [2], [0, 0, 0, 1, 1, 2], [0], [0]>} : vector<4x8x16xf32>, vector<4x16x32xf32>, vector<4x8x32xf32> -> vector<4x8x32xf32>
    "tpu.trace_stop"() : () -> ()
    %260 = vector.shape_cast %259 : vector<4x8x32xf32> to vector<2x2x8x32xf32>
    %261 = vector.extract_strided_slice %260 {offsets = [0, 0, 0, 0], sizes = [2, 1, 8, 32], strides = [1, 1, 1, 1]} : vector<2x2x8x32xf32> to vector<2x1x8x32xf32>
    %262 = vector.shape_cast %261 : vector<2x1x8x32xf32> to vector<2x8x32xf32>
    %263 = vector.extract_strided_slice %260 {offsets = [0, 1, 0, 0], sizes = [2, 1, 8, 32], strides = [1, 1, 1, 1]} : vector<2x2x8x32xf32> to vector<2x1x8x32xf32>
    %264 = vector.shape_cast %263 : vector<2x1x8x32xf32> to vector<2x8x32xf32>
    %265 = arith.addf %262, %264 : vector<2x8x32xf32>
    %266 = vector.shape_cast %265 : vector<2x8x32xf32> to vector<16x32xf32>
    %267 = vector.extract_strided_slice %256 {offsets = [0, 0], sizes = [1, 32], strides = [1, 1]} : vector<6x32xf32> to vector<1x32xf32>
    %268 = vector.broadcast %267 : vector<1x32xf32> to vector<16x32xf32>
    %269 = arith.addf %266, %268 : vector<16x32xf32>
    %270 = arith.addf %269, %175 : vector<16x32xf32>
    %271 = vector.extract_strided_slice %256 {offsets = [1, 0], sizes = [1, 32], strides = [1, 1]} : vector<6x32xf32> to vector<1x32xf32>
    %272 = vector.extract_strided_slice %256 {offsets = [2, 0], sizes = [1, 32], strides = [1, 1]} : vector<6x32xf32> to vector<1x32xf32>
    %cst_110 = arith.constant dense<0.000000e+00> : vector<16xf32>
    %273 = vector.multi_reduction <add>, %270, %cst_110 [1] : vector<16x32xf32> to vector<16xf32>
    %274 = vector.shape_cast %273 : vector<16xf32> to vector<16x1xf32>
    %cst_111 = arith.constant 3.200000e+01 : f32
    %275 = vector.broadcast %cst_111 : f32 to vector<16x1xf32>
    %276 = arith.divf %274, %275 : vector<16x1xf32>
    %277 = vector.broadcast %276 : vector<16x1xf32> to vector<16x32xf32>
    %278 = arith.subf %270, %277 : vector<16x32xf32>
    %279 = arith.mulf %278, %278 : vector<16x32xf32>
    %cst_112 = arith.constant dense<0.000000e+00> : vector<16xf32>
    %280 = vector.multi_reduction <add>, %279, %cst_112 [1] : vector<16x32xf32> to vector<16xf32>
    %281 = vector.shape_cast %280 : vector<16xf32> to vector<16x1xf32>
    %cst_113 = arith.constant 3.200000e+01 : f32
    %282 = vector.broadcast %cst_113 : f32 to vector<16x1xf32>
    %283 = arith.divf %281, %282 : vector<16x1xf32>
    %284 = vector.broadcast %276 : vector<16x1xf32> to vector<16x32xf32>
    %285 = arith.subf %270, %284 : vector<16x32xf32>
    %cst_114 = arith.constant 9.99999996E-13 : f32
    %286 = vector.broadcast %cst_114 : f32 to vector<16x1xf32>
    %287 = arith.addf %283, %286 : vector<16x1xf32>
    %288 = math.rsqrt %287 : vector<16x1xf32>
    %289 = vector.broadcast %288 : vector<16x1xf32> to vector<16x32xf32>
    %290 = arith.mulf %285, %289 : vector<16x32xf32>
    %291 = vector.broadcast %271 : vector<1x32xf32> to vector<16x32xf32>
    %292 = arith.mulf %290, %291 : vector<16x32xf32>
    %293 = vector.broadcast %272 : vector<1x32xf32> to vector<16x32xf32>
    %294 = arith.addf %292, %293 : vector<16x32xf32>
    %c1_115 = arith.constant 1 : index
    %c0_116 = arith.constant 0 : index
    %c0_117 = arith.constant 0 : index
    %295 = vector.load %arg5[%c1_115, %c0_116, %c0_117] : memref<2x32x64xf32, #tpu.memory_space<vmem>>, vector<1x32x64xf32>
    %296 = vector.shape_cast %295 : vector<1x32x64xf32> to vector<32x64xf32>
    %cst_118 = arith.constant dense<0.000000e+00> : vector<16x64xf32>
    %297 = tpu.matmul %294, %296, %cst_118 {dimension_numbers = #tpu.dot_dimension_numbers<[1], [0], [0], [1], [0, 0, 1, 1], [], []>} : vector<16x32xf32>, vector<32x64xf32>, vector<16x64xf32> -> vector<16x64xf32>
    %c1_119 = arith.constant 1 : index
    %c0_120 = arith.constant 0 : index
    %c0_121 = arith.constant 0 : index
    %298 = vector.load %arg6[%c1_119, %c0_120, %c0_121] : memref<2x1x64xf32, #tpu.memory_space<vmem>>, vector<1x1x64xf32>
    %299 = vector.shape_cast %298 : vector<1x1x64xf32> to vector<1x64xf32>
    %300 = vector.broadcast %299 : vector<1x64xf32> to vector<16x64xf32>
    %301 = arith.addf %297, %300 : vector<16x64xf32>
    %cst_122 = arith.constant 5.000000e-01 : f32
    %302 = vector.broadcast %cst_122 : f32 to vector<16x64xf32>
    %303 = arith.mulf %302, %301 : vector<16x64xf32>
    %cst_123 = arith.constant 4.471500e-02 : f32
    %304 = vector.broadcast %cst_123 : f32 to vector<16x64xf32>
    %305 = arith.mulf %304, %301 : vector<16x64xf32>
    %306 = arith.mulf %305, %301 : vector<16x64xf32>
    %307 = arith.mulf %306, %301 : vector<16x64xf32>
    %308 = arith.addf %301, %307 : vector<16x64xf32>
    %cst_124 = arith.constant 0.797884583 : f32
    %309 = vector.broadcast %cst_124 : f32 to vector<16x64xf32>
    %310 = arith.mulf %309, %308 : vector<16x64xf32>
    %311 = math.tanh %310 : vector<16x64xf32>
    %cst_125 = arith.constant 1.000000e+00 : f32
    %312 = vector.broadcast %cst_125 : f32 to vector<16x64xf32>
    %313 = arith.addf %312, %311 : vector<16x64xf32>
    %314 = arith.mulf %303, %313 : vector<16x64xf32>
    %c1_126 = arith.constant 1 : index
    %c0_127 = arith.constant 0 : index
    %c0_128 = arith.constant 0 : index
    %315 = vector.load %arg7[%c1_126, %c0_127, %c0_128] : memref<2x64x32xf32, #tpu.memory_space<vmem>>, vector<1x64x32xf32>
    %316 = vector.shape_cast %315 : vector<1x64x32xf32> to vector<64x32xf32>
    %cst_129 = arith.constant dense<0.000000e+00> : vector<16x32xf32>
    %317 = tpu.matmul %314, %316, %cst_129 {dimension_numbers = #tpu.dot_dimension_numbers<[1], [0], [0], [1], [0, 0, 1, 1], [], []>} : vector<16x64xf32>, vector<64x32xf32>, vector<16x32xf32> -> vector<16x32xf32>
    %318 = vector.extract_strided_slice %256 {offsets = [3, 0], sizes = [1, 32], strides = [1, 1]} : vector<6x32xf32> to vector<1x32xf32>
    %319 = vector.broadcast %318 : vector<1x32xf32> to vector<16x32xf32>
    %320 = arith.addf %317, %319 : vector<16x32xf32>
    %321 = arith.addf %320, %294 : vector<16x32xf32>
    %322 = vector.extract_strided_slice %256 {offsets = [4, 0], sizes = [1, 32], strides = [1, 1]} : vector<6x32xf32> to vector<1x32xf32>
    %323 = vector.extract_strided_slice %256 {offsets = [5, 0], sizes = [1, 32], strides = [1, 1]} : vector<6x32xf32> to vector<1x32xf32>
    %cst_130 = arith.constant dense<0.000000e+00> : vector<16xf32>
    %324 = vector.multi_reduction <add>, %321, %cst_130 [1] : vector<16x32xf32> to vector<16xf32>
    %325 = vector.shape_cast %324 : vector<16xf32> to vector<16x1xf32>
    %cst_131 = arith.constant 3.200000e+01 : f32
    %326 = vector.broadcast %cst_131 : f32 to vector<16x1xf32>
    %327 = arith.divf %325, %326 : vector<16x1xf32>
    %328 = vector.broadcast %327 : vector<16x1xf32> to vector<16x32xf32>
    %329 = arith.subf %321, %328 : vector<16x32xf32>
    %330 = arith.mulf %329, %329 : vector<16x32xf32>
    %cst_132 = arith.constant dense<0.000000e+00> : vector<16xf32>
    %331 = vector.multi_reduction <add>, %330, %cst_132 [1] : vector<16x32xf32> to vector<16xf32>
    %332 = vector.shape_cast %331 : vector<16xf32> to vector<16x1xf32>
    %cst_133 = arith.constant 3.200000e+01 : f32
    %333 = vector.broadcast %cst_133 : f32 to vector<16x1xf32>
    %334 = arith.divf %332, %333 : vector<16x1xf32>
    %335 = vector.broadcast %327 : vector<16x1xf32> to vector<16x32xf32>
    %336 = arith.subf %321, %335 : vector<16x32xf32>
    %cst_134 = arith.constant 9.99999996E-13 : f32
    %337 = vector.broadcast %cst_134 : f32 to vector<16x1xf32>
    %338 = arith.addf %334, %337 : vector<16x1xf32>
    %339 = math.rsqrt %338 : vector<16x1xf32>
    %340 = vector.broadcast %339 : vector<16x1xf32> to vector<16x32xf32>
    %341 = arith.mulf %336, %340 : vector<16x32xf32>
    %342 = vector.broadcast %322 : vector<1x32xf32> to vector<16x32xf32>
    %343 = arith.mulf %341, %342 : vector<16x32xf32>
    %344 = vector.broadcast %323 : vector<1x32xf32> to vector<16x32xf32>
    %345 = arith.addf %343, %344 : vector<16x32xf32>
    %c0_135 = arith.constant 0 : index
    %c0_136 = arith.constant 0 : index
    %346 = vector.load %arg11[%c0_135, %c0_136] : memref<16x32xf32, #tpu.memory_space<vmem>>, vector<16x32xf32>
    tpu.vector_store %arg11[%c0_135, %c0_136], %345 {strides = array<i32>} : memref<16x32xf32, #tpu.memory_space<vmem>>, vector<16x32xf32>,
    return
  }
}

</mosaic_0001>

<llo_original>
// kernel: tpu_custom_call.1
$region0: #{tpu_custom_call.1}
  #allocation0 [shape = 'u32[]', space=smem, size = 0x4, offset = 0x4, fixed_abs, tag = 'smem constant byte address 0x4 - core index']
  #allocation1 [shape = 'u32[72,128]{1,0:T(1,128)}', space=vmem, size = 0x9000, scoped, tag = 'internal scratch']
  %s0 = inlined_call_operand.vmem [shape: f32[16,32], index: 0, kind: input, shape index: {}]
  %s1 = inlined_call_operand.vmem [shape: f32[4,1,8], index: 1, kind: input, shape index: {}]
  %s2 = inlined_call_operand.vmem [shape: f32[2,12,32,16], index: 2, kind: input, shape index: {}]
  %s3 = inlined_call_operand.vmem [shape: f32[2,12,1,16], index: 3, kind: input, shape index: {}]
  %s4 = inlined_call_operand.vmem [shape: f32[2,4,16,32], index: 4, kind: input, shape index: {}]
  %s5 = inlined_call_operand.vmem [shape: f32[2,32,64], index: 5, kind: input, shape index: {}]
  %s6 = inlined_call_operand.vmem [shape: f32[2,1,64], index: 6, kind: input, shape index: {}]
  %s7 = inlined_call_operand.vmem [shape: f32[2,64,32], index: 7, kind: input, shape index: {}]
  %s8 = inlined_call_operand.vmem [shape: f32[2,6,32], index: 8, kind: input, shape index: {}]
  %s9 = inlined_call_operand.vmem [shape: f32[2,4,8,16], index: 9, kind: input, shape index: {}]
  %s10 = inlined_call_operand.vmem [shape: f32[2,4,8,2], index: 10, kind: input, shape index: {}]
  %s11 = inlined_call_operand.hbm [shape: f32[16,32], index: 11, kind: output, shape index: {}]
  %s12 = sld [smem:[#allocation0]]
  $region54: #{tpu_custom_call.1} parent=0
    _
  %s14 = ssub.s32 1, %s12
  %s15 = scalar_select 0, %s14, %s12
  $region1: #{tpu_custom_call.1} parent=0
    #allocation2 [shape = 'u8[8192]{0}', space=vmem, size = 0x2000, scoped, tag = 'output window, operand 0, single buffered']
    #allocation3 [shape = 's32[1]{0}', space=sflag, size = 0x4, scoped, tag = 'scoped memory for tpu_custom_call.1']
    %16 = vsyncpa [#allocation3], 0
    // Predicated region
    $region2: #{tpu_custom_call.1} parent=1 // pred_check
      _
    $region3: #{tpu_custom_call.1} parent=1 // pred_check_branch
      %18 = sbr.rel (0) target = $region5
    $region4: #{tpu_custom_call.1} parent=1 // pred_region
      _
    $region5: #{tpu_custom_call.1} parent=1 // pred_fallthru
      _
    // Predicated region
    $region6: #{tpu_custom_call.1} parent=1 // pred_check
      _
    $region7: #{tpu_custom_call.1} parent=1 // pred_check_branch
      %20 = sbr.rel (0) target = $region9
    $region8: #{tpu_custom_call.1} parent=1 // pred_region
      _
    $region9: #{tpu_custom_call.1} parent=1 // pred_fallthru
      _
    // Predicated region
    $region10: #{tpu_custom_call.1} parent=1 // pred_check
      _
    $region11: #{tpu_custom_call.1} parent=1 // pred_check_branch
      %22 = sbr.rel (0) target = $region13
    $region12: #{tpu_custom_call.1} parent=1 // pred_region
      _
    $region13: #{tpu_custom_call.1} parent=1 // pred_fallthru
      _
    // Predicated region
    $region14: #{tpu_custom_call.1} parent=1 // pred_check
      _
    $region15: #{tpu_custom_call.1} parent=1 // pred_check_branch
      %24 = sbr.rel (0) target = $region17
    $region16: #{tpu_custom_call.1} parent=1 // pred_region
      _
    $region17: #{tpu_custom_call.1} parent=1 // pred_fallthru
      _
    // Predicated region
    $region18: #{tpu_custom_call.1} parent=1 // pred_check
      _
    $region19: #{tpu_custom_call.1} parent=1 // pred_check_branch
      %26 = sbr.rel (0) target = $region21
    $region20: #{tpu_custom_call.1} parent=1 // pred_region
      _
    $region21: #{tpu_custom_call.1} parent=1 // pred_fallthru
      _
    // Predicated region
    $region22: #{tpu_custom_call.1} parent=1 // pred_check
      _
    $region23: #{tpu_custom_call.1} parent=1 // pred_check_branch
      %28 = sbr.rel (0) target = $region25
    $region24: #{tpu_custom_call.1} parent=1 // pred_region
      _
    $region25: #{tpu_custom_call.1} parent=1 // pred_fallthru
      _
    // Predicated region
    $region26: #{tpu_custom_call.1} parent=1 // pred_check
      _
    $region27: #{tpu_custom_call.1} parent=1 // pred_check_branch
      %30 = sbr.rel (0) target = $region29
    $region28: #{tpu_custom_call.1} parent=1 // pred_region
      _
    $region29: #{tpu_custom_call.1} parent=1 // pred_fallthru
      _
    // Predicated region
    $region30: #{tpu_custom_call.1} parent=1 // pred_check
      _
    $region31: #{tpu_custom_call.1} parent=1 // pred_check_branch
      %32 = sbr.rel (0) target = $region33
    $region32: #{tpu_custom_call.1} parent=1 // pred_region
      _
    $region33: #{tpu_custom_call.1} parent=1 // pred_fallthru
      _
    // Predicated region
    $region34: #{tpu_custom_call.1} parent=1 // pred_check
      _
    $region35: #{tpu_custom_call.1} parent=1 // pred_check_branch
      %34 = sbr.rel (0) target = $region37
    $region36: #{tpu_custom_call.1} parent=1 // pred_region
      _
    $region37: #{tpu_custom_call.1} parent=1 // pred_fallthru
      _
    // Predicated region
    $region38: #{tpu_custom_call.1} parent=1 // pred_check
      _
    $region39: #{tpu_custom_call.1} parent=1 // pred_check_branch
      %36 = sbr.rel (0) target = $region41
    $region40: #{tpu_custom_call.1} parent=1 // pred_region
      _
    $region41: #{tpu_custom_call.1} parent=1 // pred_fallthru
      _
    // Predicated region
    $region42: #{tpu_custom_call.1} parent=1 // pred_check
      _
    $region43: #{tpu_custom_call.1} parent=1 // pred_check_branch
      %38 = sbr.rel (0) target = $region45
    $region44: #{tpu_custom_call.1} parent=1 // pred_region
      _
    $region45: #{tpu_custom_call.1} parent=1 // pred_fallthru
      _
    %v39 = vld [vmem:[%s0] sm:$0xff]
    %v40 = vld [vmem:[%s0 + $0x8] sm:$0xff]
    %v41 = vld [vmem:[%s1] sm:$0x1]
    %v42 = vld [vmem:[%s1 + $0x1] sm:$0x1]
    %v43 = vld [vmem:[%s1 + $0x2] sm:$0x1]
    %v44 = vld [vmem:[%s1 + $0x3] sm:$0x1]
    %v45 = vlaneseq
    %v46 = vshrl.u32 %v45, 7
    %v47 = vlaneseq
    %v48 = vand.u32 %v47, 127
    %vm49 = vcmp.le.s32.totalorder %v46, %v48
    %vm50 = vcmp.lt.s32.totalorder %v46, %v48
    %v51 = vld [vmem:[%s2] sm:$0xff]
    %v52 = vld [vmem:[%s2 + $0x8] sm:$0xff]
    %v53 = vld [vmem:[%s2 + $0x10] sm:$0xff]
    %v54 = vld [vmem:[%s2 + $0x18] sm:$0xff]
    %v55 = vld [vmem:[%s2 + $0x20] sm:$0xff]
    %v56 = vld [vmem:[%s2 + $0x28] sm:$0xff]
    %v57 = vld [vmem:[%s2 + $0x30] sm:$0xff]
    %v58 = vld [vmem:[%s2 + $0x38] sm:$0xff]
    %v59 = vld [vmem:[%s2 + $0x40] sm:$0xff]
    %v60 = vld [vmem:[%s2 + $0x48] sm:$0xff]
    %v61 = vld [vmem:[%s2 + $0x50] sm:$0xff]
    %v62 = vld [vmem:[%s2 + $0x58] sm:$0xff]
    %v63 = vld [vmem:[%s2 + $0x60] sm:$0xff]
    %v64 = vld [vmem:[%s2 + $0x68] sm:$0xff]
    %v65 = vld [vmem:[%s2 + $0x70] sm:$0xff]
    %v66 = vld [vmem:[%s2 + $0x78] sm:$0xff]
    %v67 = vld [vmem:[%s2 + $0x80] sm:$0xff]
    %v68 = vld [vmem:[%s2 + $0x88] sm:$0xff]
    %v69 = vld [vmem:[%s2 + $0x90] sm:$0xff]
    %v70 = vld [vmem:[%s2 + $0x98] sm:$0xff]
    %v71 = vld [vmem:[%s2 + $0xa0] sm:$0xff]
    %v72 = vld [vmem:[%s2 + $0xa8] sm:$0xff]
    %v73 = vld [vmem:[%s2 + $0xb0] sm:$0xff]
    %v74 = vld [vmem:[%s2 + $0xb8] sm:$0xff]
    %v75 = vld [vmem:[%s2 + $0xc0] sm:$0xff]
    %v76 = vld [vmem:[%s2 + $0xc8] sm:$0xff]
    %v77 = vld [vmem:[%s2 + $0xd0] sm:$0xff]
    %v78 = vld [vmem:[%s2 + $0xd8] sm:$0xff]
    %v79 = vld [vmem:[%s2 + $0xe0] sm:$0xff]
    %v80 = vld [vmem:[%s2 + $0xe8] sm:$0xff]
    %v81 = vld [vmem:[%s2 + $0xf0] sm:$0xff]
    %v82 = vld [vmem:[%s2 + $0xf8] sm:$0xff]
    %v83 = vld [vmem:[%s2 + $0x100] sm:$0xff]
    %v84 = vld [vmem:[%s2 + $0x108] sm:$0xff]
    %v85 = vld [vmem:[%s2 + $0x110] sm:$0xff]
    %v86 = vld [vmem:[%s2 + $0x118] sm:$0xff]
    %v87 = vld [vmem:[%s2 + $0x120] sm:$0xff]
    %v88 = vld [vmem:[%s2 + $0x128] sm:$0xff]
    %v89 = vld [vmem:[%s2 + $0x130] sm:$0xff]
    %v90 = vld [vmem:[%s2 + $0x138] sm:$0xff]
    %v91 = vld [vmem:[%s2 + $0x140] sm:$0xff]
    %v92 = vld [vmem:[%s2 + $0x148] sm:$0xff]
    %v93 = vld [vmem:[%s2 + $0x150] sm:$0xff]
    %v94 = vld [vmem:[%s2 + $0x158] sm:$0xff]
    %v95 = vld [vmem:[%s2 + $0x160] sm:$0xff]
    %v96 = vld [vmem:[%s2 + $0x168] sm:$0xff]
    %v97 = vld [vmem:[%s2 + $0x170] sm:$0xff]
    %v98 = vld [vmem:[%s2 + $0x178] sm:$0xff]
    %v99 = vld [vmem:[%s3] sm:$0x1]
    %v100 = vld [vmem:[%s3 + $0x1] sm:$0x1]
    %v101 = vld [vmem:[%s3 + $0x2] sm:$0x1]
    %v102 = vld [vmem:[%s3 + $0x3] sm:$0x1]
    %v103 = vld [vmem:[%s3 + $0x4] sm:$0x1]
    %v104 = vld [vmem:[%s3 + $0x5] sm:$0x1]
    %v105 = vld [vmem:[%s3 + $0x6] sm:$0x1]
    %v106 = vld [vmem:[%s3 + $0x7] sm:$0x1]
    %v107 = vld [vmem:[%s3 + $0x8] sm:$0x1]
    %v108 = vld [vmem:[%s3 + $0x9] sm:$0x1]
    %v109 = vld [vmem:[%s3 + $0xa] sm:$0x1]
    %v110 = vld [vmem:[%s3 + $0xb] sm:$0x1]
    %v123 = vperm.slane %v99, 0
    %v124 = vperm.slane %v100, 0
    %v125 = vperm.slane %v101, 0
    %v126 = vperm.slane %v102, 0
    %v127 = vperm.slane %v103, 0
    %v128 = vperm.slane %v104, 0
    %v129 = vperm.slane %v105, 0
    %v130 = vperm.slane %v106, 0
    %v131 = vperm.slane %v107, 0
    %v132 = vperm.slane %v108, 0
    %v133 = vperm.slane %v109, 0
    %v134 = vperm.slane %v110, 0
    %vm147 = vcmask 261120
    %v149 = vsel %vm147, %v39, 0
    %151 = vmatpush.msra.mxu0 0.0
    %152 = vmatpush.msra.mxu0 0.0
    %153 = vmatpush.msra.mxu0 0.0
    %154 = vmatpush.msra.mxu0 0.0
    %155 = vmatpush.msra.mxu0 0.0
    %156 = vmatpush.msra.mxu0 0.0
    %157 = vmatpush.msra.mxu0 0.0
    %158 = vmatpush.msra.mxu0 0.0
    %159 = vmatpush.msra.mxu0 0.0
    %160 = vmatpush.msra.mxu0 0.0
    %161 = vmatpush.msra.mxu0 0.0
    %162 = vmatpush.msra.mxu0 0.0
    %163 = vmatpush.msra.mxu0 %v54
    %164 = vmatpush.msra.mxu0 %v53
    %165 = vmatpush.msra.mxu0 %v52
    %166 = vmatpush.msra.mxu0 %v51
    %167 = vmatmul.f32.gmra.mxu0 %v149
    %v168 = vpop.f32.mrf.mxu0
    %v169 = vadd.f32 %v123, %v168
    %170 = vdwg.mxu0
    %171 = vmatpush.msra.mxu0 0.0
    %172 = vmatpush.msra.mxu0 0.0
    %173 = vmatpush.msra.mxu0 0.0
    %174 = vmatpush.msra.mxu0 0.0
    %175 = vmatpush.msra.mxu0 0.0
    %176 = vmatpush.msra.mxu0 0.0
    %177 = vmatpush.msra.mxu0 0.0
    %178 = vmatpush.msra.mxu0 0.0
    %179 = vmatpush.msra.mxu0 0.0
    %180 = vmatpush.msra.mxu0 0.0
    %181 = vmatpush.msra.mxu0 0.0
    %182 = vmatpush.msra.mxu0 0.0
    %183 = vmatpush.msra.mxu0 %v58
    %184 = vmatpush.msra.mxu0 %v57
    %185 = vmatpush.msra.mxu0 %v56
    %186 = vmatpush.msra.mxu0 %v55
    %187 = vmatmul.f32.gmra.mxu0 %v149
    %v188 = vpop.f32.mrf.mxu0
    %v189 = vadd.f32 %v124, %v188
    %190 = vdwg.mxu0
    %v192 = vsel %vm147, %v40, 0
    %194 = vmatpush.msra.mxu0 0.0
    %195 = vmatpush.msra.mxu0 0.0
    %196 = vmatpush.msra.mxu0 0.0
    %197 = vmatpush.msra.mxu0 0.0
    %198 = vmatpush.msra.mxu0 0.0
    %199 = vmatpush.msra.mxu0 0.0
    %200 = vmatpush.msra.mxu0 0.0
    %201 = vmatpush.msra.mxu0 0.0
    %202 = vmatpush.msra.mxu0 0.0
    %203 = vmatpush.msra.mxu0 0.0
    %204 = vmatpush.msra.mxu0 0.0
    %205 = vmatpush.msra.mxu0 0.0
    %206 = vmatpush.msra.mxu0 %v62
    %207 = vmatpush.msra.mxu0 %v61
    %208 = vmatpush.msra.mxu0 %v60
    %209 = vmatpush.msra.mxu0 %v59
    %210 = vmatmul.f32.gmra.mxu0 %v192
    %v211 = vpop.f32.mrf.mxu0
    %v212 = vadd.f32 %v125, %v211
    %213 = vdwg.mxu0
    %214 = vmatpush.msra.mxu0 0.0
    %215 = vmatpush.msra.mxu0 0.0
    %216 = vmatpush.msra.mxu0 0.0
    %217 = vmatpush.msra.mxu0 0.0
    %218 = vmatpush.msra.mxu0 0.0
    %219 = vmatpush.msra.mxu0 0.0
    %220 = vmatpush.msra.mxu0 0.0
    %221 = vmatpush.msra.mxu0 0.0
    %222 = vmatpush.msra.mxu0 0.0
    %223 = vmatpush.msra.mxu0 0.0
    %224 = vmatpush.msra.mxu0 0.0
    %225 = vmatpush.msra.mxu0 0.0
    %226 = vmatpush.msra.mxu0 %v66
    %227 = vmatpush.msra.mxu0 %v65
    %228 = vmatpush.msra.mxu0 %v64
    %229 = vmatpush.msra.mxu0 %v63
    %230 = vmatmul.f32.gmra.mxu0 %v192
    %v231 = vpop.f32.mrf.mxu0
    %v232 = vadd.f32 %v126, %v231
    %233 = vdwg.mxu0
    %234 = vmatpush.msra.mxu0 0.0
    %235 = vmatpush.msra.mxu0 0.0
    %236 = vmatpush.msra.mxu0 0.0
    %237 = vmatpush.msra.mxu0 0.0
    %238 = vmatpush.msra.mxu0 0.0
    %239 = vmatpush.msra.mxu0 0.0
    %240 = vmatpush.msra.mxu0 0.0
    %241 = vmatpush.msra.mxu0 0.0
    %242 = vmatpush.msra.mxu0 0.0
    %243 = vmatpush.msra.mxu0 0.0
    %244 = vmatpush.msra.mxu0 0.0
    %245 = vmatpush.msra.mxu0 0.0
    %246 = vmatpush.msra.mxu0 %v70
    %247 = vmatpush.msra.mxu0 %v69
    %248 = vmatpush.msra.mxu0 %v68
    %249 = vmatpush.msra.mxu0 %v67
    %250 = vmatmul.f32.gmra.mxu0 %v149
    %v251 = vpop.f32.mrf.mxu0
    %v252 = vadd.f32 %v127, %v251
    %253 = vdwg.mxu0
    %254 = vmatpush.msra.mxu0 0.0
    %255 = vmatpush.msra.mxu0 0.0
    %256 = vmatpush.msra.mxu0 0.0
    %257 = vmatpush.msra.mxu0 0.0
    %258 = vmatpush.msra.mxu0 0.0
    %259 = vmatpush.msra.mxu0 0.0
    %260 = vmatpush.msra.mxu0 0.0
    %261 = vmatpush.msra.mxu0 0.0
    %262 = vmatpush.msra.mxu0 0.0
    %263 = vmatpush.msra.mxu0 0.0
    %264 = vmatpush.msra.mxu0 0.0
    %265 = vmatpush.msra.mxu0 0.0
    %266 = vmatpush.msra.mxu0 %v74
    %267 = vmatpush.msra.mxu0 %v73
    %268 = vmatpush.msra.mxu0 %v72
    %269 = vmatpush.msra.mxu0 %v71
    %270 = vmatmul.f32.gmra.mxu0 %v149
    %v271 = vpop.f32.mrf.mxu0
    %v272 = vadd.f32 %v128, %v271
    %273 = vdwg.mxu0
    %274 = vmatpush.msra.mxu0 0.0
    %275 = vmatpush.msra.mxu0 0.0
    %276 = vmatpush.msra.mxu0 0.0
    %277 = vmatpush.msra.mxu0 0.0
    %278 = vmatpush.msra.mxu0 0.0
    %279 = vmatpush.msra.mxu0 0.0
    %280 = vmatpush.msra.mxu0 0.0
    %281 = vmatpush.msra.mxu0 0.0
    %282 = vmatpush.msra.mxu0 0.0
    %283 = vmatpush.msra.mxu0 0.0
    %284 = vmatpush.msra.mxu0 0.0
    %285 = vmatpush.msra.mxu0 0.0
    %286 = vmatpush.msra.mxu0 %v78
    %287 = vmatpush.msra.mxu0 %v77
    %288 = vmatpush.msra.mxu0 %v76
    %289 = vmatpush.msra.mxu0 %v75
    %290 = vmatmul.f32.gmra.mxu0 %v192
    %v291 = vpop.f32.mrf.mxu0
    %v292 = vadd.f32 %v129, %v291
    %293 = vdwg.mxu0
    %294 = vmatpush.msra.mxu0 0.0
    %295 = vmatpush.msra.mxu0 0.0
    %296 = vmatpush.msra.mxu0 0.0
    %297 = vmatpush.msra.mxu0 0.0
    %298 = vmatpush.msra.mxu0 0.0
    %299 = vmatpush.msra.mxu0 0.0
    %300 = vmatpush.msra.mxu0 0.0
    %301 = vmatpush.msra.mxu0 0.0
    %302 = vmatpush.msra.mxu0 0.0
    %303 = vmatpush.msra.mxu0 0.0
    %304 = vmatpush.msra.mxu0 0.0
    %305 = vmatpush.msra.mxu0 0.0
    %306 = vmatpush.msra.mxu0 %v82
    %307 = vmatpush.msra.mxu0 %v81
    %308 = vmatpush.msra.mxu0 %v80
    %309 = vmatpush.msra.mxu0 %v79
    %310 = vmatmul.f32.gmra.mxu0 %v192
    %v311 = vpop.f32.mrf.mxu0
    %v312 = vadd.f32 %v130, %v311
    %313 = vdwg.mxu0
    %314 = vmatpush.msra.mxu0 0.0
    %315 = vmatpush.msra.mxu0 0.0
    %316 = vmatpush.msra.mxu0 0.0
    %317 = vmatpush.msra.mxu0 0.0
    %318 = vmatpush.msra.mxu0 0.0
    %319 = vmatpush.msra.mxu0 0.0
    %320 = vmatpush.msra.mxu0 0.0
    %321 = vmatpush.msra.mxu0 0.0
    %322 = vmatpush.msra.mxu0 0.0
    %323 = vmatpush.msra.mxu0 0.0
    %324 = vmatpush.msra.mxu0 0.0
    %325 = vmatpush.msra.mxu0 0.0
    %326 = vmatpush.msra.mxu0 %v86
    %327 = vmatpush.msra.mxu0 %v85
    %328 = vmatpush.msra.mxu0 %v84
    %329 = vmatpush.msra.mxu0 %v83
    %330 = vmatmul.f32.gmra.mxu0 %v149
    %v331 = vpop.f32.mrf.mxu0
    %v332 = vadd.f32 %v131, %v331
    %333 = vdwg.mxu0
    %334 = vmatpush.msra.mxu0 0.0
    %335 = vmatpush.msra.mxu0 0.0
    %336 = vmatpush.msra.mxu0 0.0
    %337 = vmatpush.msra.mxu0 0.0
    %338 = vmatpush.msra.mxu0 0.0
    %339 = vmatpush.msra.mxu0 0.0
    %340 = vmatpush.msra.mxu0 0.0
    %341 = vmatpush.msra.mxu0 0.0
    %342 = vmatpush.msra.mxu0 0.0
    %343 = vmatpush.msra.mxu0 0.0
    %344 = vmatpush.msra.mxu0 0.0
    %345 = vmatpush.msra.mxu0 0.0
    %346 = vmatpush.msra.mxu0 %v90
    %347 = vmatpush.msra.mxu0 %v89
    %348 = vmatpush.msra.mxu0 %v88
    %349 = vmatpush.msra.mxu0 %v87
    %350 = vmatmul.f32.gmra.mxu0 %v149
    %v351 = vpop.f32.mrf.mxu0
    %v352 = vadd.f32 %v132, %v351
    %353 = vdwg.mxu0
    %354 = vmatpush.msra.mxu0 0.0
    %355 = vmatpush.msra.mxu0 0.0
    %356 = vmatpush.msra.mxu0 0.0
    %357 = vmatpush.msra.mxu0 0.0
    %358 = vmatpush.msra.mxu0 0.0
    %359 = vmatpush.msra.mxu0 0.0
    %360 = vmatpush.msra.mxu0 0.0
    %361 = vmatpush.msra.mxu0 0.0
    %362 = vmatpush.msra.mxu0 0.0
    %363 = vmatpush.msra.mxu0 0.0
    %364 = vmatpush.msra.mxu0 0.0
    %365 = vmatpush.msra.mxu0 0.0
    %366 = vmatpush.msra.mxu0 %v94
    %367 = vmatpush.msra.mxu0 %v93
    %368 = vmatpush.msra.mxu0 %v92
    %369 = vmatpush.msra.mxu0 %v91
    %370 = vmatmul.f32.gmra.mxu0 %v192
    %v371 = vpop.f32.mrf.mxu0
    %v372 = vadd.f32 %v133, %v371
    %373 = vdwg.mxu0
    %374 = vmatpush.msra.mxu0 0.0
    %375 = vmatpush.msra.mxu0 0.0
    %376 = vmatpush.msra.mxu0 0.0
    %377 = vmatpush.msra.mxu0 0.0
    %378 = vmatpush.msra.mxu0 0.0
    %379 = vmatpush.msra.mxu0 0.0
    %380 = vmatpush.msra.mxu0 0.0
    %381 = vmatpush.msra.mxu0 0.0
    %382 = vmatpush.msra.mxu0 0.0
    %383 = vmatpush.msra.mxu0 0.0
    %384 = vmatpush.msra.mxu0 0.0
    %385 = vmatpush.msra.mxu0 0.0
    %386 = vmatpush.msra.mxu0 %v98
    %387 = vmatpush.msra.mxu0 %v97
    %388 = vmatpush.msra.mxu0 %v96
    %389 = vmatpush.msra.mxu0 %v95
    %390 = vmatmul.f32.gmra.mxu0 %v192
    %v391 = vpop.f32.mrf.mxu0
    %v392 = vadd.f32 %v134, %v391
    %393 = vdwg.mxu0
    %v394 = vld [vmem:[%s9] sm:$0xff]
    %v395 = vld [vmem:[%s9 + $0x8] sm:$0xff]
    %v396 = vld [vmem:[%s9 + $0x10] sm:$0xff]
    %v397 = vld [vmem:[%s9 + $0x18] sm:$0xff]
    %v398 = vld [vmem:[%s10] sm:$0xff]
    %v399 = vld [vmem:[%s10 + $0x8] sm:$0xff]
    %v400 = vld [vmem:[%s10 + $0x10] sm:$0xff]
    %v401 = vld [vmem:[%s10 + $0x18] sm:$0xff]
    %vm402 = vcmask 130048
    %v404 = vsel %vm402, %v169, 0
    %v407 = vsel %vm402, %v394, 0
    %409 = vmatpush.xpose.msra.mxu0 0.0
    %410 = vmatpush.xpose.msra.mxu0 0.0
    %411 = vmatpush.xpose.msra.mxu0 0.0
    %412 = vmatpush.xpose.msra.mxu0 0.0
    %413 = vmatpush.xpose.msra.mxu0 0.0
    %414 = vmatpush.xpose.msra.mxu0 0.0
    %415 = vmatpush.xpose.msra.mxu0 0.0
    %416 = vmatpush.xpose.msra.mxu0 0.0
    %417 = vmatpush.xpose.msra.mxu0 0.0
    %418 = vmatpush.xpose.msra.mxu0 0.0
    %419 = vmatpush.xpose.msra.mxu0 0.0
    %420 = vmatpush.xpose.msra.mxu0 0.0
    %421 = vmatpush.xpose.msra.mxu0 0.0
    %422 = vmatpush.xpose.msra.mxu0 0.0
    %423 = vmatpush.xpose.msra.mxu0 0.0
    %424 = vmatpush.xpose.msra.mxu0 %v407
    %425 = vmatmul.f32.gmra.mxu0 %v404
    %v426 = vpop.f32.mrf.mxu0
    %v427 = vadd.f32 0.0, %v426
    %428 = vdwg.mxu0
    %v430 = vsel %vm402, %v189, 0
    %v433 = vsel %vm402, %v395, 0
    %435 = vmatpush.xpose.msra.mxu0 0.0
    %436 = vmatpush.xpose.msra.mxu0 0.0
    %437 = vmatpush.xpose.msra.mxu0 0.0
    %438 = vmatpush.xpose.msra.mxu0 0.0
    %439 = vmatpush.xpose.msra.mxu0 0.0
    %440 = vmatpush.xpose.msra.mxu0 0.0
    %441 = vmatpush.xpose.msra.mxu0 0.0
    %442 = vmatpush.xpose.msra.mxu0 0.0
    %443 = vmatpush.xpose.msra.mxu0 0.0
    %444 = vmatpush.xpose.msra.mxu0 0.0
    %445 = vmatpush.xpose.msra.mxu0 0.0
    %446 = vmatpush.xpose.msra.mxu0 0.0
    %447 = vmatpush.xpose.msra.mxu0 0.0
    %448 = vmatpush.xpose.msra.mxu0 0.0
    %449 = vmatpush.xpose.msra.mxu0 0.0
    %450 = vmatpush.xpose.msra.mxu0 %v433
    %451 = vmatmul.f32.gmra.mxu0 %v430
    %v452 = vpop.f32.mrf.mxu0
    %v453 = vadd.f32 0.0, %v452
    %454 = vdwg.mxu0
    %v456 = vsel %vm402, %v212, 0
    %v459 = vsel %vm402, %v396, 0
    %461 = vmatpush.xpose.msra.mxu0 0.0
    %462 = vmatpush.xpose.msra.mxu0 0.0
    %463 = vmatpush.xpose.msra.mxu0 0.0
    %464 = vmatpush.xpose.msra.mxu0 0.0
    %465 = vmatpush.xpose.msra.mxu0 0.0
    %466 = vmatpush.xpose.msra.mxu0 0.0
    %467 = vmatpush.xpose.msra.mxu0 0.0
    %468 = vmatpush.xpose.msra.mxu0 0.0
    %469 = vmatpush.xpose.msra.mxu0 0.0
    %470 = vmatpush.xpose.msra.mxu0 0.0
    %471 = vmatpush.xpose.msra.mxu0 0.0
    %472 = vmatpush.xpose.msra.mxu0 0.0
    %473 = vmatpush.xpose.msra.mxu0 0.0
    %474 = vmatpush.xpose.msra.mxu0 0.0
    %475 = vmatpush.xpose.msra.mxu0 0.0
    %476 = vmatpush.xpose.msra.mxu0 %v459
    %477 = vmatmul.f32.gmra.mxu0 %v456
    %v478 = vpop.f32.mrf.mxu0
    %v479 = vadd.f32 0.0, %v478
    %480 = vdwg.mxu0
    %v482 = vsel %vm402, %v232, 0
    %v485 = vsel %vm402, %v397, 0
    %487 = vmatpush.xpose.msra.mxu0 0.0
    %488 = vmatpush.xpose.msra.mxu0 0.0
    %489 = vmatpush.xpose.msra.mxu0 0.0
    %490 = vmatpush.xpose.msra.mxu0 0.0
    %491 = vmatpush.xpose.msra.mxu0 0.0
    %492 = vmatpush.xpose.msra.mxu0 0.0
    %493 = vmatpush.xpose.msra.mxu0 0.0
    %494 = vmatpush.xpose.msra.mxu0 0.0
    %495 = vmatpush.xpose.msra.mxu0 0.0
    %496 = vmatpush.xpose.msra.mxu0 0.0
    %497 = vmatpush.xpose.msra.mxu0 0.0
    %498 = vmatpush.xpose.msra.mxu0 0.0
    %499 = vmatpush.xpose.msra.mxu0 0.0
    %500 = vmatpush.xpose.msra.mxu0 0.0
    %501 = vmatpush.xpose.msra.mxu0 0.0
    %502 = vmatpush.xpose.msra.mxu0 %v485
    %503 = vmatmul.f32.gmra.mxu0 %v482
    %v504 = vpop.f32.mrf.mxu0
    %v505 = vadd.f32 0.0, %v504
    %506 = vdwg.mxu0
    %vm507 = vcmp.gt.f32.partialorder %v427, 0.0
    %vm508 = vcmp.gt.f32.partialorder %v453, 0.0
    %vm509 = vcmp.gt.f32.partialorder %v479, 0.0
    %vm510 = vcmp.gt.f32.partialorder %v505, 0.0
    %v511 = vsel %vm507, 1, 0
    %v512 = vsel %vm508, 1, 0
    %v513 = vsel %vm509, 1, 0
    %v514 = vsel %vm510, 1, 0
    %v515 = vcvt.s32.f32 %v511
    %v516 = vcvt.s32.f32 %v512
    %v517 = vcvt.s32.f32 %v513
    %v518 = vcvt.s32.f32 %v514
    %v520 = vsel %vm402, %v252, 0
    %522 = vmatpush.xpose.msra.mxu0 0.0
    %523 = vmatpush.xpose.msra.mxu0 0.0
    %524 = vmatpush.xpose.msra.mxu0 0.0
    %525 = vmatpush.xpose.msra.mxu0 0.0
    %526 = vmatpush.xpose.msra.mxu0 0.0
    %527 = vmatpush.xpose.msra.mxu0 0.0
    %528 = vmatpush.xpose.msra.mxu0 0.0
    %529 = vmatpush.xpose.msra.mxu0 0.0
    %530 = vmatpush.xpose.msra.mxu0 0.0
    %531 = vmatpush.xpose.msra.mxu0 0.0
    %532 = vmatpush.xpose.msra.mxu0 0.0
    %533 = vmatpush.xpose.msra.mxu0 0.0
    %534 = vmatpush.xpose.msra.mxu0 0.0
    %535 = vmatpush.xpose.msra.mxu0 0.0
    %536 = vmatpush.xpose.msra.mxu0 0.0
    %537 = vmatpush.xpose.msra.mxu0 %v407
    %538 = vmatmul.f32.gmra.mxu0 %v520
    %v539 = vpop.f32.mrf.mxu0
    %v540 = vadd.f32 0.0, %v539
    %541 = vdwg.mxu0
    %v543 = vsel %vm402, %v272, 0
    %545 = vmatpush.xpose.msra.mxu0 0.0
    %546 = vmatpush.xpose.msra.mxu0 0.0
    %547 = vmatpush.xpose.msra.mxu0 0.0
    %548 = vmatpush.xpose.msra.mxu0 0.0
    %549 = vmatpush.xpose.msra.mxu0 0.0
    %550 = vmatpush.xpose.msra.mxu0 0.0
    %551 = vmatpush.xpose.msra.mxu0 0.0
    %552 = vmatpush.xpose.msra.mxu0 0.0
    %553 = vmatpush.xpose.msra.mxu0 0.0
    %554 = vmatpush.xpose.msra.mxu0 0.0
    %555 = vmatpush.xpose.msra.mxu0 0.0
    %556 = vmatpush.xpose.msra.mxu0 0.0
    %557 = vmatpush.xpose.msra.mxu0 0.0
    %558 = vmatpush.xpose.msra.mxu0 0.0
    %559 = vmatpush.xpose.msra.mxu0 0.0
    %560 = vmatpush.xpose.msra.mxu0 %v433
    %561 = vmatmul.f32.gmra.mxu0 %v543
    %v562 = vpop.f32.mrf.mxu0
    %v563 = vadd.f32 0.0, %v562
    %564 = vdwg.mxu0
    %v566 = vsel %vm402, %v292, 0
    %568 = vmatpush.xpose.msra.mxu0 0.0
    %569 = vmatpush.xpose.msra.mxu0 0.0
    %570 = vmatpush.xpose.msra.mxu0 0.0
    %571 = vmatpush.xpose.msra.mxu0 0.0
    %572 = vmatpush.xpose.msra.mxu0 0.0
    %573 = vmatpush.xpose.msra.mxu0 0.0
    %574 = vmatpush.xpose.msra.mxu0 0.0
    %575 = vmatpush.xpose.msra.mxu0 0.0
    %576 = vmatpush.xpose.msra.mxu0 0.0
    %577 = vmatpush.xpose.msra.mxu0 0.0
    %578 = vmatpush.xpose.msra.mxu0 0.0
    %579 = vmatpush.xpose.msra.mxu0 0.0
    %580 = vmatpush.xpose.msra.mxu0 0.0
    %581 = vmatpush.xpose.msra.mxu0 0.0
    %582 = vmatpush.xpose.msra.mxu0 0.0
    %583 = vmatpush.xpose.msra.mxu0 %v459
    %584 = vmatmul.f32.gmra.mxu0 %v566
    %v585 = vpop.f32.mrf.mxu0
    %v586 = vadd.f32 0.0, %v585
    %587 = vdwg.mxu0
    %v589 = vsel %vm402, %v312, 0
    %591 = vmatpush.xpose.msra.mxu0 0.0
    %592 = vmatpush.xpose.msra.mxu0 0.0
    %593 = vmatpush.xpose.msra.mxu0 0.0
    %594 = vmatpush.xpose.msra.mxu0 0.0
    %595 = vmatpush.xpose.msra.mxu0 0.0
    %596 = vmatpush.xpose.msra.mxu0 0.0
    %597 = vmatpush.xpose.msra.mxu0 0.0
    %598 = vmatpush.xpose.msra.mxu0 0.0
    %599 = vmatpush.xpose.msra.mxu0 0.0
    %600 = vmatpush.xpose.msra.mxu0 0.0
    %601 = vmatpush.xpose.msra.mxu0 0.0
    %602 = vmatpush.xpose.msra.mxu0 0.0
    %603 = vmatpush.xpose.msra.mxu0 0.0
    %604 = vmatpush.xpose.msra.mxu0 0.0
    %605 = vmatpush.xpose.msra.mxu0 0.0
    %606 = vmatpush.xpose.msra.mxu0 %v485
    %607 = vmatmul.f32.gmra.mxu0 %v589
    %v608 = vpop.f32.mrf.mxu0
    %v609 = vadd.f32 0.0, %v608
    %610 = vdwg.mxu0
    %vm611 = vcmp.gt.f32.partialorder %v540, 0.0
    %vm612 = vcmp.gt.f32.partialorder %v563, 0.0
    %vm613 = vcmp.gt.f32.partialorder %v586, 0.0
    %vm614 = vcmp.gt.f32.partialorder %v609, 0.0
    %v615 = vsel %vm611, 1, 0
    %v616 = vsel %vm612, 1, 0
    %v617 = vsel %vm613, 1, 0
    %v618 = vsel %vm614, 1, 0
    %v619 = vcvt.s32.f32 %v615
    %v620 = vcvt.s32.f32 %v616
    %v621 = vcvt.s32.f32 %v617
    %v622 = vcvt.s32.f32 %v618
    %vm623 = vcmask 64512
    %v625 = vsel %vm623, %v515, 0
    %627 = vmatpush.msra.mxu0 0.0
    %628 = vmatpush.msra.mxu0 0.0
    %629 = vmatpush.msra.mxu0 0.0
    %630 = vmatpush.msra.mxu0 0.0
    %631 = vmatpush.msra.mxu0 0.0
    %632 = vmatpush.msra.mxu0 0.0
    %633 = vmatpush.msra.mxu0 0.0
    %634 = vmatpush.msra.mxu0 0.0
    %635 = vmatpush.msra.mxu0 0.0
    %636 = vmatpush.msra.mxu0 0.0
    %637 = vmatpush.msra.mxu0 0.0
    %638 = vmatpush.msra.mxu0 0.0
    %639 = vmatpush.msra.mxu0 0.0
    %640 = vmatpush.msra.mxu0 0.0
    %641 = vmatpush.msra.mxu0 0.0
    %642 = vmatpush.msra.mxu0 %v398
    %643 = vmatmul.f32.gmra.mxu0 %v625
    %v644 = vpop.f32.mrf.mxu0
    %v645 = vadd.f32 0.0, %v644
    %646 = vdwg.mxu0
    %v648 = vsel %vm623, %v516, 0
    %650 = vmatpush.msra.mxu0 0.0
    %651 = vmatpush.msra.mxu0 0.0
    %652 = vmatpush.msra.mxu0 0.0
    %653 = vmatpush.msra.mxu0 0.0
    %654 = vmatpush.msra.mxu0 0.0
    %655 = vmatpush.msra.mxu0 0.0
    %656 = vmatpush.msra.mxu0 0.0
    %657 = vmatpush.msra.mxu0 0.0
    %658 = vmatpush.msra.mxu0 0.0
    %659 = vmatpush.msra.mxu0 0.0
    %660 = vmatpush.msra.mxu0 0.0
    %661 = vmatpush.msra.mxu0 0.0
    %662 = vmatpush.msra.mxu0 0.0
    %663 = vmatpush.msra.mxu0 0.0
    %664 = vmatpush.msra.mxu0 0.0
    %665 = vmatpush.msra.mxu0 %v399
    %666 = vmatmul.f32.gmra.mxu0 %v648
    %v667 = vpop.f32.mrf.mxu0
    %v668 = vadd.f32 0.0, %v667
    %669 = vdwg.mxu0
    %v671 = vsel %vm623, %v517, 0
    %673 = vmatpush.msra.mxu0 0.0
    %674 = vmatpush.msra.mxu0 0.0
    %675 = vmatpush.msra.mxu0 0.0
    %676 = vmatpush.msra.mxu0 0.0
    %677 = vmatpush.msra.mxu0 0.0
    %678 = vmatpush.msra.mxu0 0.0
    %679 = vmatpush.msra.mxu0 0.0
    %680 = vmatpush.msra.mxu0 0.0
    %681 = vmatpush.msra.mxu0 0.0
    %682 = vmatpush.msra.mxu0 0.0
    %683 = vmatpush.msra.mxu0 0.0
    %684 = vmatpush.msra.mxu0 0.0
    %685 = vmatpush.msra.mxu0 0.0
    %686 = vmatpush.msra.mxu0 0.0
    %687 = vmatpush.msra.mxu0 0.0
    %688 = vmatpush.msra.mxu0 %v400
    %689 = vmatmul.f32.gmra.mxu0 %v671
    %v690 = vpop.f32.mrf.mxu0
    %v691 = vadd.f32 0.0, %v690
    %692 = vdwg.mxu0
    %v694 = vsel %vm623, %v518, 0
    %696 = vmatpush.msra.mxu0 0.0
    %697 = vmatpush.msra.mxu0 0.0
    %698 = vmatpush.msra.mxu0 0.0
    %699 = vmatpush.msra.mxu0 0.0
    %700 = vmatpush.msra.mxu0 0.0
    %701 = vmatpush.msra.mxu0 0.0
    %702 = vmatpush.msra.mxu0 0.0
    %703 = vmatpush.msra.mxu0 0.0
    %704 = vmatpush.msra.mxu0 0.0
    %705 = vmatpush.msra.mxu0 0.0
    %706 = vmatpush.msra.mxu0 0.0
    %707 = vmatpush.msra.mxu0 0.0
    %708 = vmatpush.msra.mxu0 0.0
    %709 = vmatpush.msra.mxu0 0.0
    %710 = vmatpush.msra.mxu0 0.0
    %711 = vmatpush.msra.mxu0 %v401
    %712 = vmatmul.f32.gmra.mxu0 %v694
    %v713 = vpop.f32.mrf.mxu0
    %v714 = vadd.f32 0.0, %v713
    %715 = vdwg.mxu0
    %v716 = vcvt.f32.s32.ties.to.even %v645
    %v717 = vcvt.f32.s32.ties.to.even %v668
    %v718 = vcvt.f32.s32.ties.to.even %v691
    %v719 = vcvt.f32.s32.ties.to.even %v714
    %v720 = vand.u32 %v716, 15
    %v721 = vand.u32 %v717, 15
    %v722 = vand.u32 %v718, 15
    %v723 = vand.u32 %v719, 15
    %v725 = vsel %vm623, %v619, 0
    %727 = vmatpush.msra.mxu0 0.0
    %728 = vmatpush.msra.mxu0 0.0
    %729 = vmatpush.msra.mxu0 0.0
    %730 = vmatpush.msra.mxu0 0.0
    %731 = vmatpush.msra.mxu0 0.0
    %732 = vmatpush.msra.mxu0 0.0
    %733 = vmatpush.msra.mxu0 0.0
    %734 = vmatpush.msra.mxu0 0.0
    %735 = vmatpush.msra.mxu0 0.0
    %736 = vmatpush.msra.mxu0 0.0
    %737 = vmatpush.msra.mxu0 0.0
    %738 = vmatpush.msra.mxu0 0.0
    %739 = vmatpush.msra.mxu0 0.0
    %740 = vmatpush.msra.mxu0 0.0
    %741 = vmatpush.msra.mxu0 0.0
    %742 = vmatpush.msra.mxu0 %v398
    %743 = vmatmul.f32.gmra.mxu0 %v725
    %v744 = vpop.f32.mrf.mxu0
    %v745 = vadd.f32 0.0, %v744
    %746 = vdwg.mxu0
    %v748 = vsel %vm623, %v620, 0
    %750 = vmatpush.msra.mxu0 0.0
    %751 = vmatpush.msra.mxu0 0.0
    %752 = vmatpush.msra.mxu0 0.0
    %753 = vmatpush.msra.mxu0 0.0
    %754 = vmatpush.msra.mxu0 0.0
    %755 = vmatpush.msra.mxu0 0.0
    %756 = vmatpush.msra.mxu0 0.0
    %757 = vmatpush.msra.mxu0 0.0
    %758 = vmatpush.msra.mxu0 0.0
    %759 = vmatpush.msra.mxu0 0.0
    %760 = vmatpush.msra.mxu0 0.0
    %761 = vmatpush.msra.mxu0 0.0
    %762 = vmatpush.msra.mxu0 0.0
    %763 = vmatpush.msra.mxu0 0.0
    %764 = vmatpush.msra.mxu0 0.0
    %765 = vmatpush.msra.mxu0 %v399
    %766 = vmatmul.f32.gmra.mxu0 %v748
    %v767 = vpop.f32.mrf.mxu0
    %v768 = vadd.f32 0.0, %v767
    %769 = vdwg.mxu0
    %v771 = vsel %vm623, %v621, 0
    %773 = vmatpush.msra.mxu0 0.0
    %774 = vmatpush.msra.mxu0 0.0
    %775 = vmatpush.msra.mxu0 0.0
    %776 = vmatpush.msra.mxu0 0.0
    %777 = vmatpush.msra.mxu0 0.0
    %778 = vmatpush.msra.mxu0 0.0
    %779 = vmatpush.msra.mxu0 0.0
    %780 = vmatpush.msra.mxu0 0.0
    %781 = vmatpush.msra.mxu0 0.0
    %782 = vmatpush.msra.mxu0 0.0
    %783 = vmatpush.msra.mxu0 0.0
    %784 = vmatpush.msra.mxu0 0.0
    %785 = vmatpush.msra.mxu0 0.0
    %786 = vmatpush.msra.mxu0 0.0
    %787 = vmatpush.msra.mxu0 0.0
    %788 = vmatpush.msra.mxu0 %v400
    %789 = vmatmul.f32.gmra.mxu0 %v771
    %v790 = vpop.f32.mrf.mxu0
    %v791 = vadd.f32 0.0, %v790
    %792 = vdwg.mxu0
    %v794 = vsel %vm623, %v622, 0
    %796 = vmatpush.msra.mxu0 0.0
    %797 = vmatpush.msra.mxu0 0.0
    %798 = vmatpush.msra.mxu0 0.0
    %799 = vmatpush.msra.mxu0 0.0
    %800 = vmatpush.msra.mxu0 0.0
    %801 = vmatpush.msra.mxu0 0.0
    %802 = vmatpush.msra.mxu0 0.0
    %803 = vmatpush.msra.mxu0 0.0
    %804 = vmatpush.msra.mxu0 0.0
    %805 = vmatpush.msra.mxu0 0.0
    %806 = vmatpush.msra.mxu0 0.0
    %807 = vmatpush.msra.mxu0 0.0
    %808 = vmatpush.msra.mxu0 0.0
    %809 = vmatpush.msra.mxu0 0.0
    %810 = vmatpush.msra.mxu0 0.0
    %811 = vmatpush.msra.mxu0 %v401
    %812 = vmatmul.f32.gmra.mxu0 %v794
    %v813 = vpop.f32.mrf.mxu0
    %v814 = vadd.f32 0.0, %v813
    %815 = vdwg.mxu0
    %v816 = vcvt.f32.s32.ties.to.even %v745
    %v817 = vcvt.f32.s32.ties.to.even %v768
    %v818 = vcvt.f32.s32.ties.to.even %v791
    %v819 = vcvt.f32.s32.ties.to.even %v814
    %v820 = vand.u32 %v816, 15
    %v821 = vand.u32 %v817, 15
    %v822 = vand.u32 %v818, 15
    %v823 = vand.u32 %v819, 15
    %v824 = vrot.slane %v720, 1
    %v825 = vrot.slane %v720, 2
    %v826 = vrot.slane %v720, 3
    %v827 = vrot.slane %v720, 4
    %v828 = vrot.slane %v720, 5
    %v829 = vrot.slane %v720, 6
    %v830 = vrot.slane %v720, 7
    %v831 = vrot.slane %v721, 1
    %v832 = vrot.slane %v721, 2
    %v833 = vrot.slane %v721, 3
    %v834 = vrot.slane %v721, 4
    %v835 = vrot.slane %v721, 5
    %v836 = vrot.slane %v721, 6
    %v837 = vrot.slane %v721, 7
    %v838 = vrot.slane %v722, 1
    %v839 = vrot.slane %v722, 2
    %v840 = vrot.slane %v722, 3
    %v841 = vrot.slane %v722, 4
    %v842 = vrot.slane %v722, 5
    %v843 = vrot.slane %v722, 6
    %v844 = vrot.slane %v722, 7
    %v845 = vrot.slane %v723, 1
    %v846 = vrot.slane %v723, 2
    %v847 = vrot.slane %v723, 3
    %v848 = vrot.slane %v723, 4
    %v849 = vrot.slane %v723, 5
    %v850 = vrot.slane %v723, 6
    %v851 = vrot.slane %v723, 7
    %v852 = vperm.slane %v720, 0
    %v853 = vperm.slane %v824, 0
    %v854 = vperm.slane %v825, 0
    %v855 = vperm.slane %v826, 0
    %v856 = vperm.slane %v827, 0
    %v857 = vperm.slane %v828, 0
    %v858 = vperm.slane %v829, 0
    %v859 = vperm.slane %v830, 0
    %v860 = vperm.slane %v721, 0
    %v861 = vperm.slane %v831, 0
    %v862 = vperm.slane %v832, 0
    %v863 = vperm.slane %v833, 0
    %v864 = vperm.slane %v834, 0
    %v865 = vperm.slane %v835, 0
    %v866 = vperm.slane %v836, 0
    %v867 = vperm.slane %v837, 0
    %v868 = vperm.slane %v722, 0
    %v869 = vperm.slane %v838, 0
    %v870 = vperm.slane %v839, 0
    %v871 = vperm.slane %v840, 0
    %v872 = vperm.slane %v841, 0
    %v873 = vperm.slane %v842, 0
    %v874 = vperm.slane %v843, 0
    %v875 = vperm.slane %v844, 0
    %v876 = vperm.slane %v723, 0
    %v877 = vperm.slane %v845, 0
    %v878 = vperm.slane %v846, 0
    %v879 = vperm.slane %v847, 0
    %v880 = vperm.slane %v848, 0
    %v881 = vperm.slane %v849, 0
    %v882 = vperm.slane %v850, 0
    %v883 = vperm.slane %v851, 0
    %vm884 = vcmp.eq.s32.totalorder %v852, %v820
    %vm885 = vcmp.eq.s32.totalorder %v853, %v820
    %vm886 = vcmp.eq.s32.totalorder %v854, %v820
    %vm887 = vcmp.eq.s32.totalorder %v855, %v820
    %vm888 = vcmp.eq.s32.totalorder %v856, %v820
    %vm889 = vcmp.eq.s32.totalorder %v857, %v820
    %vm890 = vcmp.eq.s32.totalorder %v858, %v820
    %vm891 = vcmp.eq.s32.totalorder %v859, %v820
    %vm892 = vcmp.eq.s32.totalorder %v860, %v821
    %vm893 = vcmp.eq.s32.totalorder %v861, %v821
    %vm894 = vcmp.eq.s32.totalorder %v862, %v821
    %vm895 = vcmp.eq.s32.totalorder %v863, %v821
    %vm896 = vcmp.eq.s32.totalorder %v864, %v821
    %vm897 = vcmp.eq.s32.totalorder %v865, %v821
    %vm898 = vcmp.eq.s32.totalorder %v866, %v821
    %vm899 = vcmp.eq.s32.totalorder %v867, %v821
    %vm900 = vcmp.eq.s32.totalorder %v868, %v822
    %vm901 = vcmp.eq.s32.totalorder %v869, %v822
    %vm902 = vcmp.eq.s32.totalorder %v870, %v822
    %vm903 = vcmp.eq.s32.totalorder %v871, %v822
    %vm904 = vcmp.eq.s32.totalorder %v872, %v822
    %vm905 = vcmp.eq.s32.totalorder %v873, %v822
    %vm906 = vcmp.eq.s32.totalorder %v874, %v822
    %vm907 = vcmp.eq.s32.totalorder %v875, %v822
    %vm908 = vcmp.eq.s32.totalorder %v876, %v823
    %vm909 = vcmp.eq.s32.totalorder %v877, %v823
    %vm910 = vcmp.eq.s32.totalorder %v878, %v823
    %vm911 = vcmp.eq.s32.totalorder %v879, %v823
    %vm912 = vcmp.eq.s32.totalorder %v880, %v823
    %vm913 = vcmp.eq.s32.totalorder %v881, %v823
    %vm914 = vcmp.eq.s32.totalorder %v882, %v823
    %vm915 = vcmp.eq.s32.totalorder %v883, %v823
    %v916 = vsel %vm884, 1, 0
    %v917 = vsel %vm885, 1, 0
    %v918 = vsel %vm886, 1, 0
    %v919 = vsel %vm887, 1, 0
    %v920 = vsel %vm888, 1, 0
    %v921 = vsel %vm889, 1, 0
    %v922 = vsel %vm890, 1, 0
    %v923 = vsel %vm891, 1, 0
    %v924 = vsel %vm892, 1, 0
    %v925 = vsel %vm893, 1, 0
    %v926 = vsel %vm894, 1, 0
    %v927 = vsel %vm895, 1, 0
    %v928 = vsel %vm896, 1, 0
    %v929 = vsel %vm897, 1, 0
    %v930 = vsel %vm898, 1, 0
    %v931 = vsel %vm899, 1, 0
    %v932 = vsel %vm900, 1, 0
    %v933 = vsel %vm901, 1, 0
    %v934 = vsel %vm902, 1, 0
    %v935 = vsel %vm903, 1, 0
    %v936 = vsel %vm904, 1, 0
    %v937 = vsel %vm905, 1, 0
    %v938 = vsel %vm906, 1, 0
    %v939 = vsel %vm907, 1, 0
    %v940 = vsel %vm908, 1, 0
    %v941 = vsel %vm909, 1, 0
    %v942 = vsel %vm910, 1, 0
    %v943 = vsel %vm911, 1, 0
    %v944 = vsel %vm912, 1, 0
    %v945 = vsel %vm913, 1, 0
    %v946 = vsel %vm914, 1, 0
    %v947 = vsel %vm915, 1, 0
    %v948 = vcvt.s32.f32 %v916
    %v949 = vcvt.s32.f32 %v917
    %v950 = vcvt.s32.f32 %v918
    %v951 = vcvt.s32.f32 %v919
    %v952 = vcvt.s32.f32 %v920
    %v953 = vcvt.s32.f32 %v921
    %v954 = vcvt.s32.f32 %v922
    %v955 = vcvt.s32.f32 %v923
    %v956 = vcvt.s32.f32 %v924
    %v957 = vcvt.s32.f32 %v925
    %v958 = vcvt.s32.f32 %v926
    %v959 = vcvt.s32.f32 %v927
    %v960 = vcvt.s32.f32 %v928
    %v961 = vcvt.s32.f32 %v929
    %v962 = vcvt.s32.f32 %v930
    %v963 = vcvt.s32.f32 %v931
    %v964 = vcvt.s32.f32 %v932
    %v965 = vcvt.s32.f32 %v933
    %v966 = vcvt.s32.f32 %v934
    %v967 = vcvt.s32.f32 %v935
    %v968 = vcvt.s32.f32 %v936
    %v969 = vcvt.s32.f32 %v937
    %v970 = vcvt.s32.f32 %v938
    %v971 = vcvt.s32.f32 %v939
    %v972 = vcvt.s32.f32 %v940
    %v973 = vcvt.s32.f32 %v941
    %v974 = vcvt.s32.f32 %v942
    %v975 = vcvt.s32.f32 %v943
    %v976 = vcvt.s32.f32 %v944
    %v977 = vcvt.s32.f32 %v945
    %v978 = vcvt.s32.f32 %v946
    %v979 = vcvt.s32.f32 %v947
    %vm980 = vcmask 15360
    %v981 = vsel %vm980, %v948, 0.0
    %982 = vadd.xlane.f32.xlu0 %v981
    %v983 = vpop.xlane.xlu0 %982
    %v984 = vsel %vm980, %v949, 0.0
    %985 = vadd.xlane.f32.xlu0 %v984
    %v986 = vpop.xlane.xlu0 %985
    %v987 = vsel %vm980, %v950, 0.0
    %988 = vadd.xlane.f32.xlu0 %v987
    %v989 = vpop.xlane.xlu0 %988
    %v990 = vsel %vm980, %v951, 0.0
    %991 = vadd.xlane.f32.xlu0 %v990
    %v992 = vpop.xlane.xlu0 %991
    %v993 = vsel %vm980, %v952, 0.0
    %994 = vadd.xlane.f32.xlu0 %v993
    %v995 = vpop.xlane.xlu0 %994
    %v996 = vsel %vm980, %v953, 0.0
    %997 = vadd.xlane.f32.xlu0 %v996
    %v998 = vpop.xlane.xlu0 %997
    %v999 = vsel %vm980, %v954, 0.0
    %1000 = vadd.xlane.f32.xlu0 %v999
    %v1001 = vpop.xlane.xlu0 %1000
    %v1002 = vsel %vm980, %v955, 0.0
    %1003 = vadd.xlane.f32.xlu0 %v1002
    %v1004 = vpop.xlane.xlu0 %1003
    %v1005 = vsel %vm980, %v956, 0.0
    %1006 = vadd.xlane.f32.xlu0 %v1005
    %v1007 = vpop.xlane.xlu0 %1006
    %v1008 = vsel %vm980, %v957, 0.0
    %1009 = vadd.xlane.f32.xlu0 %v1008
    %v1010 = vpop.xlane.xlu0 %1009
    %v1011 = vsel %vm980, %v958, 0.0
    %1012 = vadd.xlane.f32.xlu0 %v1011
    %v1013 = vpop.xlane.xlu0 %1012
    %v1014 = vsel %vm980, %v959, 0.0
    %1015 = vadd.xlane.f32.xlu0 %v1014
    %v1016 = vpop.xlane.xlu0 %1015
    %v1017 = vsel %vm980, %v960, 0.0
    %1018 = vadd.xlane.f32.xlu0 %v1017
    %v1019 = vpop.xlane.xlu0 %1018
    %v1020 = vsel %vm980, %v961, 0.0
    %1021 = vadd.xlane.f32.xlu0 %v1020
    %v1022 = vpop.xlane.xlu0 %1021
    %v1023 = vsel %vm980, %v962, 0.0
    %1024 = vadd.xlane.f32.xlu0 %v1023
    %v1025 = vpop.xlane.xlu0 %1024
    %v1026 = vsel %vm980, %v963, 0.0
    %1027 = vadd.xlane.f32.xlu0 %v1026
    %v1028 = vpop.xlane.xlu0 %1027
    %v1029 = vsel %vm980, %v964, 0.0
    %1030 = vadd.xlane.f32.xlu0 %v1029
    %v1031 = vpop.xlane.xlu0 %1030
    %v1032 = vsel %vm980, %v965, 0.0
    %1033 = vadd.xlane.f32.xlu0 %v1032
    %v1034 = vpop.xlane.xlu0 %1033
    %v1035 = vsel %vm980, %v966, 0.0
    %1036 = vadd.xlane.f32.xlu0 %v1035
    %v1037 = vpop.xlane.xlu0 %1036
    %v1038 = vsel %vm980, %v967, 0.0
    %1039 = vadd.xlane.f32.xlu0 %v1038
    %v1040 = vpop.xlane.xlu0 %1039
    %v1041 = vsel %vm980, %v968, 0.0
    %1042 = vadd.xlane.f32.xlu0 %v1041
    %v1043 = vpop.xlane.xlu0 %1042
    %v1044 = vsel %vm980, %v969, 0.0
    %1045 = vadd.xlane.f32.xlu0 %v1044
    %v1046 = vpop.xlane.xlu0 %1045
    %v1047 = vsel %vm980, %v970, 0.0
    %1048 = vadd.xlane.f32.xlu0 %v1047
    %v1049 = vpop.xlane.xlu0 %1048
    %v1050 = vsel %vm980, %v971, 0.0
    %1051 = vadd.xlane.f32.xlu0 %v1050
    %v1052 = vpop.xlane.xlu0 %1051
    %v1053 = vsel %vm980, %v972, 0.0
    %1054 = vadd.xlane.f32.xlu0 %v1053
    %v1055 = vpop.xlane.xlu0 %1054
    %v1056 = vsel %vm980, %v973, 0.0
    %1057 = vadd.xlane.f32.xlu0 %v1056
    %v1058 = vpop.xlane.xlu0 %1057
    %v1059 = vsel %vm980, %v974, 0.0
    %1060 = vadd.xlane.f32.xlu0 %v1059
    %v1061 = vpop.xlane.xlu0 %1060
    %v1062 = vsel %vm980, %v975, 0.0
    %1063 = vadd.xlane.f32.xlu0 %v1062
    %v1064 = vpop.xlane.xlu0 %1063
    %v1065 = vsel %vm980, %v976, 0.0
    %1066 = vadd.xlane.f32.xlu0 %v1065
    %v1067 = vpop.xlane.xlu0 %1066
    %v1068 = vsel %vm980, %v977, 0.0
    %1069 = vadd.xlane.f32.xlu0 %v1068
    %v1070 = vpop.xlane.xlu0 %1069
    %v1071 = vsel %vm980, %v978, 0.0
    %1072 = vadd.xlane.f32.xlu0 %v1071
    %v1073 = vpop.xlane.xlu0 %1072
    %v1074 = vsel %vm980, %v979, 0.0
    %1075 = vadd.xlane.f32.xlu0 %v1074
    %v1076 = vpop.xlane.xlu0 %1075
    %vm1077 = vcmp.gt.f32.partialorder %v983, 0.0
    %vm1078 = vcmp.gt.f32.partialorder %v986, 0.0
    %vm1079 = vcmp.gt.f32.partialorder %v989, 0.0
    %vm1080 = vcmp.gt.f32.partialorder %v992, 0.0
    %vm1081 = vcmp.gt.f32.partialorder %v995, 0.0
    %vm1082 = vcmp.gt.f32.partialorder %v998, 0.0
    %vm1083 = vcmp.gt.f32.partialorder %v1001, 0.0
    %vm1084 = vcmp.gt.f32.partialorder %v1004, 0.0
    %vm1085 = vcmp.gt.f32.partialorder %v1007, 0.0
    %vm1086 = vcmp.gt.f32.partialorder %v1010, 0.0
    %vm1087 = vcmp.gt.f32.partialorder %v1013, 0.0
    %vm1088 = vcmp.gt.f32.partialorder %v1016, 0.0
    %vm1089 = vcmp.gt.f32.partialorder %v1019, 0.0
    %vm1090 = vcmp.gt.f32.partialorder %v1022, 0.0
    %vm1091 = vcmp.gt.f32.partialorder %v1025, 0.0
    %vm1092 = vcmp.gt.f32.partialorder %v1028, 0.0
    %vm1093 = vcmp.gt.f32.partialorder %v1031, 0.0
    %vm1094 = vcmp.gt.f32.partialorder %v1034, 0.0
    %vm1095 = vcmp.gt.f32.partialorder %v1037, 0.0
    %vm1096 = vcmp.gt.f32.partialorder %v1040, 0.0
    %vm1097 = vcmp.gt.f32.partialorder %v1043, 0.0
    %vm1098 = vcmp.gt.f32.partialorder %v1046, 0.0
    %vm1099 = vcmp.gt.f32.partialorder %v1049, 0.0
    %vm1100 = vcmp.gt.f32.partialorder %v1052, 0.0
    %vm1101 = vcmp.gt.f32.partialorder %v1055, 0.0
    %vm1102 = vcmp.gt.f32.partialorder %v1058, 0.0
    %vm1103 = vcmp.gt.f32.partialorder %v1061, 0.0
    %vm1104 = vcmp.gt.f32.partialorder %v1064, 0.0
    %vm1105 = vcmp.gt.f32.partialorder %v1067, 0.0
    %vm1106 = vcmp.gt.f32.partialorder %v1070, 0.0
    %vm1107 = vcmp.gt.f32.partialorder %v1073, 0.0
    %vm1108 = vcmp.gt.f32.partialorder %v1076, 0.0
    %1109 = vmatpush.xpose.msra.mxu0 0.0
    %1110 = vmatpush.xpose.msra.mxu0 0.0
    %1111 = vmatpush.xpose.msra.mxu0 0.0
    %1112 = vmatpush.xpose.msra.mxu0 0.0
    %1113 = vmatpush.xpose.msra.mxu0 0.0
    %1114 = vmatpush.xpose.msra.mxu0 0.0
    %1115 = vmatpush.xpose.msra.mxu0 0.0
    %1116 = vmatpush.xpose.msra.mxu0 0.0
    %1117 = vmatpush.xpose.msra.mxu0 0.0
    %1118 = vmatpush.xpose.msra.mxu0 0.0
    %1119 = vmatpush.xpose.msra.mxu0 0.0
    %1120 = vmatpush.xpose.msra.mxu0 0.0
    %1121 = vmatpush.xpose.msra.mxu0 0.0
    %1122 = vmatpush.xpose.msra.mxu0 0.0
    %1123 = vmatpush.xpose.msra.mxu0 0.0
    %1124 = vmatpush.xpose.msra.mxu0 %v520
    %1125 = vmatmul.f32.gmra.mxu0 %v404
    %v1126 = vpop.f32.mrf.mxu0
    %v1127 = vadd.f32 0.0, %v1126
    %1128 = vdwg.mxu0
    %1129 = vmatpush.xpose.msra.mxu0 0.0
    %1130 = vmatpush.xpose.msra.mxu0 0.0
    %1131 = vmatpush.xpose.msra.mxu0 0.0
    %1132 = vmatpush.xpose.msra.mxu0 0.0
    %1133 = vmatpush.xpose.msra.mxu0 0.0
    %1134 = vmatpush.xpose.msra.mxu0 0.0
    %1135 = vmatpush.xpose.msra.mxu0 0.0
    %1136 = vmatpush.xpose.msra.mxu0 0.0
    %1137 = vmatpush.xpose.msra.mxu0 0.0
    %1138 = vmatpush.xpose.msra.mxu0 0.0
    %1139 = vmatpush.xpose.msra.mxu0 0.0
    %1140 = vmatpush.xpose.msra.mxu0 0.0
    %1141 = vmatpush.xpose.msra.mxu0 0.0
    %1142 = vmatpush.xpose.msra.mxu0 0.0
    %1143 = vmatpush.xpose.msra.mxu0 0.0
    %1144 = vmatpush.xpose.msra.mxu0 %v543
    %1145 = vmatmul.f32.gmra.mxu0 %v430
    %v1146 = vpop.f32.mrf.mxu0
    %v1147 = vadd.f32 0.0, %v1146
    %1148 = vdwg.mxu0
    %1149 = vmatpush.xpose.msra.mxu0 0.0
    %1150 = vmatpush.xpose.msra.mxu0 0.0
    %1151 = vmatpush.xpose.msra.mxu0 0.0
    %1152 = vmatpush.xpose.msra.mxu0 0.0
    %1153 = vmatpush.xpose.msra.mxu0 0.0
    %1154 = vmatpush.xpose.msra.mxu0 0.0
    %1155 = vmatpush.xpose.msra.mxu0 0.0
    %1156 = vmatpush.xpose.msra.mxu0 0.0
    %1157 = vmatpush.xpose.msra.mxu0 0.0
    %1158 = vmatpush.xpose.msra.mxu0 0.0
    %1159 = vmatpush.xpose.msra.mxu0 0.0
    %1160 = vmatpush.xpose.msra.mxu0 0.0
    %1161 = vmatpush.xpose.msra.mxu0 0.0
    %1162 = vmatpush.xpose.msra.mxu0 0.0
    %1163 = vmatpush.xpose.msra.mxu0 0.0
    %1164 = vmatpush.xpose.msra.mxu0 %v566
    %1165 = vmatmul.f32.gmra.mxu0 %v456
    %v1166 = vpop.f32.mrf.mxu0
    %v1167 = vadd.f32 0.0, %v1166
    %1168 = vdwg.mxu0
    %1169 = vmatpush.xpose.msra.mxu0 0.0
    %1170 = vmatpush.xpose.msra.mxu0 0.0
    %1171 = vmatpush.xpose.msra.mxu0 0.0
    %1172 = vmatpush.xpose.msra.mxu0 0.0
    %1173 = vmatpush.xpose.msra.mxu0 0.0
    %1174 = vmatpush.xpose.msra.mxu0 0.0
    %1175 = vmatpush.xpose.msra.mxu0 0.0
    %1176 = vmatpush.xpose.msra.mxu0 0.0
    %1177 = vmatpush.xpose.msra.mxu0 0.0
    %1178 = vmatpush.xpose.msra.mxu0 0.0
    %1179 = vmatpush.xpose.msra.mxu0 0.0
    %1180 = vmatpush.xpose.msra.mxu0 0.0
    %1181 = vmatpush.xpose.msra.mxu0 0.0
    %1182 = vmatpush.xpose.msra.mxu0 0.0
    %1183 = vmatpush.xpose.msra.mxu0 0.0
    %1184 = vmatpush.xpose.msra.mxu0 %v589
    %1185 = vmatmul.f32.gmra.mxu0 %v482
    %v1186 = vpop.f32.mrf.mxu0
    %v1187 = vadd.f32 0.0, %v1186
    %1188 = vdwg.mxu0
    %v1189 = vsel %vm49, 1, 0
    %vm1190 = vcmp.eq.s32.totalorder %v1189, 1
    %v1191 = vsel %vm1077, 1, 0
    %v1192 = vsel %vm1078, 1, 0
    %v1193 = vsel %vm1079, 1, 0
    %v1194 = vsel %vm1080, 1, 0
    %v1195 = vsel %vm1081, 1, 0
    %v1196 = vsel %vm1082, 1, 0
    %v1197 = vsel %vm1083, 1, 0
    %v1198 = vsel %vm1084, 1, 0
    %v1199 = vsel %vm1085, 1, 0
    %v1200 = vsel %vm1086, 1, 0
    %v1201 = vsel %vm1087, 1, 0
    %v1202 = vsel %vm1088, 1, 0
    %v1203 = vsel %vm1089, 1, 0
    %v1204 = vsel %vm1090, 1, 0
    %v1205 = vsel %vm1091, 1, 0
    %v1206 = vsel %vm1092, 1, 0
    %v1207 = vsel %vm1093, 1, 0
    %v1208 = vsel %vm1094, 1, 0
    %v1209 = vsel %vm1095, 1, 0
    %v1210 = vsel %vm1096, 1, 0
    %v1211 = vsel %vm1097, 1, 0
    %v1212 = vsel %vm1098, 1, 0
    %v1213 = vsel %vm1099, 1, 0
    %v1214 = vsel %vm1100, 1, 0
    %v1215 = vsel %vm1101, 1, 0
    %v1216 = vsel %vm1102, 1, 0
    %v1217 = vsel %vm1103, 1, 0
    %v1218 = vsel %vm1104, 1, 0
    %v1219 = vsel %vm1105, 1, 0
    %v1220 = vsel %vm1106, 1, 0
    %v1221 = vsel %vm1107, 1, 0
    %v1222 = vsel %vm1108, 1, 0
    %v1223 = vperm.slane %v1191, %v48
    %v1224 = vperm.slane %v1192, %v48
    %v1225 = vperm.slane %v1193, %v48
    %v1226 = vperm.slane %v1194, %v48
    %v1227 = vperm.slane %v1195, %v48
    %v1228 = vperm.slane %v1196, %v48
    %v1229 = vperm.slane %v1197, %v48
    %v1230 = vperm.slane %v1198, %v48
    %v1231 = vperm.slane %v1199, %v48
    %v1232 = vperm.slane %v1200, %v48
    %v1233 = vperm.slane %v1201, %v48
    %v1234 = vperm.slane %v1202, %v48
    %v1235 = vperm.slane %v1203, %v48
    %v1236 = vperm.slane %v1204, %v48
    %v1237 = vperm.slane %v1205, %v48
    %v1238 = vperm.slane %v1206, %v48
    %v1239 = vperm.slane %v1207, %v48
    %v1240 = vperm.slane %v1208, %v48
    %v1241 = vperm.slane %v1209, %v48
    %v1242 = vperm.slane %v1210, %v48
    %v1243 = vperm.slane %v1211, %v48
    %v1244 = vperm.slane %v1212, %v48
    %v1245 = vperm.slane %v1213, %v48
    %v1246 = vperm.slane %v1214, %v48
    %v1247 = vperm.slane %v1215, %v48
    %v1248 = vperm.slane %v1216, %v48
    %v1249 = vperm.slane %v1217, %v48
    %v1250 = vperm.slane %v1218, %v48
    %v1251 = vperm.slane %v1219, %v48
    %v1252 = vperm.slane %v1220, %v48
    %v1253 = vperm.slane %v1221, %v48
    %v1254 = vperm.slane %v1222, %v48
    %vm1255 = vcmask 1041409
    %v1256 = vsel %vm1255, %v1224, %v1223
    %vm1257 = vcmask 1042434
    %v1258 = vsel %vm1257, %v1225, %v1256
    %vm1259 = vcmask 1043459
    %v1260 = vsel %vm1259, %v1226, %v1258
    %vm1261 = vcmask 1044484
    %v1262 = vsel %vm1261, %v1227, %v1260
    %vm1263 = vcmask 1045509
    %v1264 = vsel %vm1263, %v1228, %v1262
    %vm1265 = vcmask 1046534
    %v1266 = vsel %vm1265, %v1229, %v1264
    %vm1267 = vcmask 1047559
    %v1268 = vsel %vm1267, %v1230, %v1266
    %v1269 = vsel %vm1255, %v1232, %v1231
    %v1270 = vsel %vm1257, %v1233, %v1269
    %v1271 = vsel %vm1259, %v1234, %v1270
    %v1272 = vsel %vm1261, %v1235, %v1271
    %v1273 = vsel %vm1263, %v1236, %v1272
    %v1274 = vsel %vm1265, %v1237, %v1273
    %v1275 = vsel %vm1267, %v1238, %v1274
    %v1276 = vsel %vm1255, %v1240, %v1239
    %v1277 = vsel %vm1257, %v1241, %v1276
    %v1278 = vsel %vm1259, %v1242, %v1277
    %v1279 = vsel %vm1261, %v1243, %v1278
    %v1280 = vsel %vm1263, %v1244, %v1279
    %v1281 = vsel %vm1265, %v1245, %v1280
    %v1282 = vsel %vm1267, %v1246, %v1281
    %v1283 = vsel %vm1255, %v1248, %v1247
    %v1284 = vsel %vm1257, %v1249, %v1283
    %v1285 = vsel %vm1259, %v1250, %v1284
    %v1286 = vsel %vm1261, %v1251, %v1285
    %v1287 = vsel %vm1263, %v1252, %v1286
    %v1288 = vsel %vm1265, %v1253, %v1287
    %v1289 = vsel %vm1267, %v1254, %v1288
    %vm1290 = vcmp.ne.s32.totalorder %v1268, 0
    %vm1291 = vcmp.ne.s32.totalorder %v1275, 0
    %vm1292 = vcmp.ne.s32.totalorder %v1282, 0
    %vm1293 = vcmp.ne.s32.totalorder %v1289, 0
    %vm1294 = vmand %vm1190, %vm1290
    %vm1295 = vmand %vm1190, %vm1291
    %vm1296 = vmand %vm1190, %vm1292
    %vm1297 = vmand %vm1190, %vm1293
    %v1298 = vsel %vm1294, %v1127, 0.0
    %v1299 = vsel %vm1295, %v1147, 0.0
    %v1300 = vsel %vm1296, %v1167, 0.0
    %v1301 = vsel %vm1297, %v1187, 0.0
    %v1302 = vsel %vm50, 1, 0
    %vm1303 = vcmp.eq.s32.totalorder %v1302, 1
    %v1304 = vsel %vm1303, %v1298, 0.0
    %v1305 = vsel %vm1303, %v1299, 0.0
    %v1306 = vsel %vm1303, %v1300, 0.0
    %v1307 = vsel %vm1303, %v1301, 0.0
    %1308 = vxpose.xlu0.b32.start [1/16] %v1304, 128
    %1309 = vxpose.xlu0.b32.cont [2/16] 0.0, 128
    %1310 = vxpose.xlu0.b32.cont [3/16] 0.0, 128
    %1311 = vxpose.xlu0.b32.cont [4/16] 0.0, 128
    %1312 = vxpose.xlu0.b32.cont [5/16] 0.0, 128
    %1313 = vxpose.xlu0.b32.cont [6/16] 0.0, 128
    %1314 = vxpose.xlu0.b32.cont [7/16] 0.0, 128
    %1315 = vxpose.xlu0.b32.cont [8/16] 0.0, 128
    %1316 = vxpose.xlu0.b32.cont [9/16] 0.0, 128
    %1317 = vxpose.xlu0.b32.cont [10/16] 0.0, 128
    %1318 = vxpose.xlu0.b32.cont [11/16] 0.0, 128
    %1319 = vxpose.xlu0.b32.cont [12/16] 0.0, 128
    %1320 = vxpose.xlu0.b32.cont [13/16] 0.0, 128
    %1321 = vxpose.xlu0.b32.cont [14/16] 0.0, 128
    %1322 = vxpose.xlu0.b32.cont [15/16] 0.0, 128
    %1323 = vxpose.xlu0.b32.end [16/16] 0.0, 128
    %v1324 = vpop.trf.xlu0
    %v1325 = vpop.trf.xlu0
    %v1326 = vpop.trf.xlu0
    %v1327 = vpop.trf.xlu0
    %v1328 = vpop.trf.xlu0
    %v1329 = vpop.trf.xlu0
    %v1330 = vpop.trf.xlu0
    %v1331 = vpop.trf.xlu0
    %v1332 = vpop.trf.xlu0
    %v1333 = vpop.trf.xlu0
    %v1334 = vpop.trf.xlu0
    %v1335 = vpop.trf.xlu0
    %v1336 = vpop.trf.xlu0
    %v1337 = vpop.trf.xlu0
    %v1338 = vpop.trf.xlu0
    %v1339 = vpop.trf.xlu0
    %1340 = vxpose.xlu0.b32.start [1/16] %v1305, 128
    %1341 = vxpose.xlu0.b32.cont [2/16] 0.0, 128
    %1342 = vxpose.xlu0.b32.cont [3/16] 0.0, 128
    %1343 = vxpose.xlu0.b32.cont [4/16] 0.0, 128
    %1344 = vxpose.xlu0.b32.cont [5/16] 0.0, 128
    %1345 = vxpose.xlu0.b32.cont [6/16] 0.0, 128
    %1346 = vxpose.xlu0.b32.cont [7/16] 0.0, 128
    %1347 = vxpose.xlu0.b32.cont [8/16] 0.0, 128
    %1348 = vxpose.xlu0.b32.cont [9/16] 0.0, 128
    %1349 = vxpose.xlu0.b32.cont [10/16] 0.0, 128
    %1350 = vxpose.xlu0.b32.cont [11/16] 0.0, 128
    %1351 = vxpose.xlu0.b32.cont [12/16] 0.0, 128
    %1352 = vxpose.xlu0.b32.cont [13/16] 0.0, 128
    %1353 = vxpose.xlu0.b32.cont [14/16] 0.0, 128
    %1354 = vxpose.xlu0.b32.cont [15/16] 0.0, 128
    %1355 = vxpose.xlu0.b32.end [16/16] 0.0, 128
    %v1356 = vpop.trf.xlu0
    %v1357 = vpop.trf.xlu0
    %v1358 = vpop.trf.xlu0
    %v1359 = vpop.trf.xlu0
    %v1360 = vpop.trf.xlu0
    %v1361 = vpop.trf.xlu0
    %v1362 = vpop.trf.xlu0
    %v1363 = vpop.trf.xlu0
    %v1364 = vpop.trf.xlu0
    %v1365 = vpop.trf.xlu0
    %v1366 = vpop.trf.xlu0
    %v1367 = vpop.trf.xlu0
    %v1368 = vpop.trf.xlu0
    %v1369 = vpop.trf.xlu0
    %v1370 = vpop.trf.xlu0
    %v1371 = vpop.trf.xlu0
    %1372 = vxpose.xlu0.b32.start [1/16] %v1306, 128
    %1373 = vxpose.xlu0.b32.cont [2/16] 0.0, 128
    %1374 = vxpose.xlu0.b32.cont [3/16] 0.0, 128
    %1375 = vxpose.xlu0.b32.cont [4/16] 0.0, 128
    %1376 = vxpose.xlu0.b32.cont [5/16] 0.0, 128
    %1377 = vxpose.xlu0.b32.cont [6/16] 0.0, 128
    %1378 = vxpose.xlu0.b32.cont [7/16] 0.0, 128
    %1379 = vxpose.xlu0.b32.cont [8/16] 0.0, 128
    %1380 = vxpose.xlu0.b32.cont [9/16] 0.0, 128
    %1381 = vxpose.xlu0.b32.cont [10/16] 0.0, 128
    %1382 = vxpose.xlu0.b32.cont [11/16] 0.0, 128
    %1383 = vxpose.xlu0.b32.cont [12/16] 0.0, 128
    %1384 = vxpose.xlu0.b32.cont [13/16] 0.0, 128
    %1385 = vxpose.xlu0.b32.cont [14/16] 0.0, 128
    %1386 = vxpose.xlu0.b32.cont [15/16] 0.0, 128
    %1387 = vxpose.xlu0.b32.end [16/16] 0.0, 128
    %v1388 = vpop.trf.xlu0
    %v1389 = vpop.trf.xlu0
    %v1390 = vpop.trf.xlu0
    %v1391 = vpop.trf.xlu0
    %v1392 = vpop.trf.xlu0
    %v1393 = vpop.trf.xlu0
    %v1394 = vpop.trf.xlu0
    %v1395 = vpop.trf.xlu0
    %v1396 = vpop.trf.xlu0
    %v1397 = vpop.trf.xlu0
    %v1398 = vpop.trf.xlu0
    %v1399 = vpop.trf.xlu0
    %v1400 = vpop.trf.xlu0
    %v1401 = vpop.trf.xlu0
    %v1402 = vpop.trf.xlu0
    %v1403 = vpop.trf.xlu0
    %1404 = vxpose.xlu0.b32.start [1/16] %v1307, 128
    %1405 = vxpose.xlu0.b32.cont [2/16] 0.0, 128
    %1406 = vxpose.xlu0.b32.cont [3/16] 0.0, 128
    %1407 = vxpose.xlu0.b32.cont [4/16] 0.0, 128
    %1408 = vxpose.xlu0.b32.cont [5/16] 0.0, 128
    %1409 = vxpose.xlu0.b32.cont [6/16] 0.0, 128
    %1410 = vxpose.xlu0.b32.cont [7/16] 0.0, 128
    %1411 = vxpose.xlu0.b32.cont [8/16] 0.0, 128
    %1412 = vxpose.xlu0.b32.cont [9/16] 0.0, 128
    %1413 = vxpose.xlu0.b32.cont [10/16] 0.0, 128
    %1414 = vxpose.xlu0.b32.cont [11/16] 0.0, 128
    %1415 = vxpose.xlu0.b32.cont [12/16] 0.0, 128
    %1416 = vxpose.xlu0.b32.cont [13/16] 0.0, 128
    %1417 = vxpose.xlu0.b32.cont [14/16] 0.0, 128
    %1418 = vxpose.xlu0.b32.cont [15/16] 0.0, 128
    %1419 = vxpose.xlu0.b32.end [16/16] 0.0, 128
    %v1420 = vpop.trf.xlu0
    %v1421 = vpop.trf.xlu0
    %v1422 = vpop.trf.xlu0
    %v1423 = vpop.trf.xlu0
    %v1424 = vpop.trf.xlu0
    %v1425 = vpop.trf.xlu0
    %v1426 = vpop.trf.xlu0
    %v1427 = vpop.trf.xlu0
    %v1428 = vpop.trf.xlu0
    %v1429 = vpop.trf.xlu0
    %v1430 = vpop.trf.xlu0
    %v1431 = vpop.trf.xlu0
    %v1432 = vpop.trf.xlu0
    %v1433 = vpop.trf.xlu0
    %v1434 = vpop.trf.xlu0
    %v1435 = vpop.trf.xlu0
    %v1436 = vadd.f32 %v1298, %v1324
    %v1437 = vadd.f32 %v1299, %v1356
    %v1438 = vadd.f32 %v1300, %v1388
    %v1439 = vadd.f32 %v1301, %v1420
    %v1440 = vmul.f32 %v1436, 0.25
    %v1441 = vmul.f32 %v1437, 0.25
    %v1442 = vmul.f32 %v1438, 0.25
    %v1443 = vmul.f32 %v1439, 0.25
    %v1448 = vperm.slane %v41, 0
    %v1449 = vperm.slane %v42, 0
    %v1450 = vperm.slane %v43, 0
    %v1451 = vperm.slane %v44, 0
    %v1456 = vadd.f32 %v1440, %v1448
    %v1457 = vadd.f32 %v1441, %v1449
    %v1458 = vadd.f32 %v1442, %v1450
    %v1459 = vadd.f32 %v1443, %v1451
    %v1460 = vsel %vm623, %v1456, -inf
    %1461 = vmax.xlane.f32.xlu0 %v1460
    %v1462 = vpop.xlane.xlu0 %1461
    %v1463 = vsel %vm623, %v1457, -inf
    %1464 = vmax.xlane.f32.xlu0 %v1463
    %v1465 = vpop.xlane.xlu0 %1464
    %v1466 = vsel %vm623, %v1458, -inf
    %1467 = vmax.xlane.f32.xlu0 %v1466
    %v1468 = vpop.xlane.xlu0 %1467
    %v1469 = vsel %vm623, %v1459, -inf
    %1470 = vmax.xlane.f32.xlu0 %v1469
    %v1471 = vpop.xlane.xlu0 %1470
    %v1472 = vsub.f32 %v1456, %v1462
    %v1473 = vsub.f32 %v1457, %v1465
    %v1474 = vsub.f32 %v1458, %v1468
    %v1475 = vsub.f32 %v1459, %v1471
    %v1476 = vmul.f32 %v1472, 1.442695
    %v1477 = vpow.pop %v1476
    %v1478 = vmul.f32 %v1473, 1.442695
    %v1479 = vpow.pop %v1478
    %v1480 = vmul.f32 %v1474, 1.442695
    %v1481 = vpow.pop %v1480
    %v1482 = vmul.f32 %v1475, 1.442695
    %v1483 = vpow.pop %v1482
    %v1484 = vsel %vm623, %v1477, 0.0
    %1485 = vadd.xlane.f32.xlu0 %v1484
    %v1486 = vpop.xlane.xlu0 %1485
    %v1487 = vsel %vm623, %v1479, 0.0
    %1488 = vadd.xlane.f32.xlu0 %v1487
    %v1489 = vpop.xlane.xlu0 %1488
    %v1490 = vsel %vm623, %v1481, 0.0
    %1491 = vadd.xlane.f32.xlu0 %v1490
    %v1492 = vpop.xlane.xlu0 %1491
    %v1493 = vsel %vm623, %v1483, 0.0
    %1494 = vadd.xlane.f32.xlu0 %v1493
    %v1495 = vpop.xlane.xlu0 %1494
    %v1496 = vrcp.pop %v1486
    %v1497 = vmul.f32 %v1486, %v1496
    %v1498 = vsub.f32 1.0, %v1497
    %v1499 = vmul.f32 %v1496, %v1498
    %v1500 = vadd.f32 %v1496, %v1499
    %vm1501 = vweird.f32 %v1486
    %vm1502 = vweird.f32 %v1496
    %vm1503 = vmor %vm1501, %vm1502
    %v1504 = vsel %vm1503, %v1496, %v1500
    %v1505 = vand.u32 2147483647, %v1486
    %vm1506 = vcmp.eq.f32.partialorder %v1505, 8.507059e+37
    %v1507 = vand.u32 %v1486, 2147483648
    %v1508 = vor.u32 1.1754944e-38, %v1507
    %v1509 = vsel %vm1506, %v1508, %v1504
    %v1510 = vmul.f32 %v1477, %v1509
    %v1511 = vrcp.pop %v1489
    %v1512 = vmul.f32 %v1489, %v1511
    %v1513 = vsub.f32 1.0, %v1512
    %v1514 = vmul.f32 %v1511, %v1513
    %v1515 = vadd.f32 %v1511, %v1514
    %vm1516 = vweird.f32 %v1489
    %vm1517 = vweird.f32 %v1511
    %vm1518 = vmor %vm1516, %vm1517
    %v1519 = vsel %vm1518, %v1511, %v1515
    %v1520 = vand.u32 2147483647, %v1489
    %vm1521 = vcmp.eq.f32.partialorder %v1520, 8.507059e+37
    %v1522 = vand.u32 %v1489, 2147483648
    %v1523 = vor.u32 1.1754944e-38, %v1522
    %v1524 = vsel %vm1521, %v1523, %v1519
    %v1525 = vmul.f32 %v1479, %v1524
    %v1526 = vrcp.pop %v1492
    %v1527 = vmul.f32 %v1492, %v1526
    %v1528 = vsub.f32 1.0, %v1527
    %v1529 = vmul.f32 %v1526, %v1528
    %v1530 = vadd.f32 %v1526, %v1529
    %vm1531 = vweird.f32 %v1492
    %vm1532 = vweird.f32 %v1526
    %vm1533 = vmor %vm1531, %vm1532
    %v1534 = vsel %vm1533, %v1526, %v1530
    %v1535 = vand.u32 2147483647, %v1492
    %vm1536 = vcmp.eq.f32.partialorder %v1535, 8.507059e+37
    %v1537 = vand.u32 %v1492, 2147483648
    %v1538 = vor.u32 1.1754944e-38, %v1537
    %v1539 = vsel %vm1536, %v1538, %v1534
    %v1540 = vmul.f32 %v1481, %v1539
    %v1541 = vrcp.pop %v1495
    %v1542 = vmul.f32 %v1495, %v1541
    %v1543 = vsub.f32 1.0, %v1542
    %v1544 = vmul.f32 %v1541, %v1543
    %v1545 = vadd.f32 %v1541, %v1544
    %vm1546 = vweird.f32 %v1495
    %vm1547 = vweird.f32 %v1541
    %vm1548 = vmor %vm1546, %vm1547
    %v1549 = vsel %vm1548, %v1541, %v1545
    %v1550 = vand.u32 2147483647, %v1495
    %vm1551 = vcmp.eq.f32.partialorder %v1550, 8.507059e+37
    %v1552 = vand.u32 %v1495, 2147483648
    %v1553 = vor.u32 1.1754944e-38, %v1552
    %v1554 = vsel %vm1551, %v1553, %v1549
    %v1555 = vmul.f32 %v1483, %v1554
    %v1557 = vsel %vm623, %v1510, 0
    %1559 = vmatpush.msra.mxu0 0.0
    %1560 = vmatpush.msra.mxu0 0.0
    %1561 = vmatpush.msra.mxu0 0.0
    %1562 = vmatpush.msra.mxu0 0.0
    %1563 = vmatpush.msra.mxu0 0.0
    %1564 = vmatpush.msra.mxu0 0.0
    %1565 = vmatpush.msra.mxu0 0.0
    %1566 = vmatpush.msra.mxu0 0.0
    %1567 = vmatpush.msra.mxu0 0.0
    %1568 = vmatpush.msra.mxu0 0.0
    %1569 = vmatpush.msra.mxu0 0.0
    %1570 = vmatpush.msra.mxu0 0.0
    %1571 = vmatpush.msra.mxu0 0.0
    %1572 = vmatpush.msra.mxu0 0.0
    %1573 = vmatpush.msra.mxu0 0.0
    %1574 = vmatpush.msra.mxu0 %v332
    %1575 = vmatmul.f32.gmra.mxu0 %v1557
    %v1576 = vpop.f32.mrf.mxu0
    %v1577 = vadd.f32 0.0, %v1576
    %1578 = vdwg.mxu0
    %v1580 = vsel %vm623, %v1525, 0
    %1582 = vmatpush.msra.mxu0 0.0
    %1583 = vmatpush.msra.mxu0 0.0
    %1584 = vmatpush.msra.mxu0 0.0
    %1585 = vmatpush.msra.mxu0 0.0
    %1586 = vmatpush.msra.mxu0 0.0
    %1587 = vmatpush.msra.mxu0 0.0
    %1588 = vmatpush.msra.mxu0 0.0
    %1589 = vmatpush.msra.mxu0 0.0
    %1590 = vmatpush.msra.mxu0 0.0
    %1591 = vmatpush.msra.mxu0 0.0
    %1592 = vmatpush.msra.mxu0 0.0
    %1593 = vmatpush.msra.mxu0 0.0
    %1594 = vmatpush.msra.mxu0 0.0
    %1595 = vmatpush.msra.mxu0 0.0
    %1596 = vmatpush.msra.mxu0 0.0
    %1597 = vmatpush.msra.mxu0 %v352
    %1598 = vmatmul.f32.gmra.mxu0 %v1580
    %v1599 = vpop.f32.mrf.mxu0
    %v1600 = vadd.f32 0.0, %v1599
    %1601 = vdwg.mxu0
    %v1603 = vsel %vm623, %v1540, 0
    %1605 = vmatpush.msra.mxu0 0.0
    %1606 = vmatpush.msra.mxu0 0.0
    %1607 = vmatpush.msra.mxu0 0.0
    %1608 = vmatpush.msra.mxu0 0.0
    %1609 = vmatpush.msra.mxu0 0.0
    %1610 = vmatpush.msra.mxu0 0.0
    %1611 = vmatpush.msra.mxu0 0.0
    %1612 = vmatpush.msra.mxu0 0.0
    %1613 = vmatpush.msra.mxu0 0.0
    %1614 = vmatpush.msra.mxu0 0.0
    %1615 = vmatpush.msra.mxu0 0.0
    %1616 = vmatpush.msra.mxu0 0.0
    %1617 = vmatpush.msra.mxu0 0.0
    %1618 = vmatpush.msra.mxu0 0.0
    %1619 = vmatpush.msra.mxu0 0.0
    %1620 = vmatpush.msra.mxu0 %v372
    %1621 = vmatmul.f32.gmra.mxu0 %v1603
    %v1622 = vpop.f32.mrf.mxu0
    %v1623 = vadd.f32 0.0, %v1622
    %1624 = vdwg.mxu0
    %v1626 = vsel %vm623, %v1555, 0
    %1628 = vmatpush.msra.mxu0 0.0
    %1629 = vmatpush.msra.mxu0 0.0
    %1630 = vmatpush.msra.mxu0 0.0
    %1631 = vmatpush.msra.mxu0 0.0
    %1632 = vmatpush.msra.mxu0 0.0
    %1633 = vmatpush.msra.mxu0 0.0
    %1634 = vmatpush.msra.mxu0 0.0
    %1635 = vmatpush.msra.mxu0 0.0
    %1636 = vmatpush.msra.mxu0 0.0
    %1637 = vmatpush.msra.mxu0 0.0
    %1638 = vmatpush.msra.mxu0 0.0
    %1639 = vmatpush.msra.mxu0 0.0
    %1640 = vmatpush.msra.mxu0 0.0
    %1641 = vmatpush.msra.mxu0 0.0
    %1642 = vmatpush.msra.mxu0 0.0
    %1643 = vmatpush.msra.mxu0 %v392
    %1644 = vmatmul.f32.gmra.mxu0 %v1626
    %v1645 = vpop.f32.mrf.mxu0
    %v1646 = vadd.f32 0.0, %v1645
    %1647 = vdwg.mxu0
    %v1648 = vld [vmem:[%s8] sm:$0x3f]
    %v1649 = vld [vmem:[%s4] sm:$0xff]
    %v1650 = vld [vmem:[%s4 + $0x8] sm:$0xff]
    %v1651 = vld [vmem:[%s4 + $0x10] sm:$0xff]
    %v1652 = vld [vmem:[%s4 + $0x18] sm:$0xff]
    %v1653 = vld [vmem:[%s4 + $0x20] sm:$0xff]
    %v1654 = vld [vmem:[%s4 + $0x28] sm:$0xff]
    %v1655 = vld [vmem:[%s4 + $0x30] sm:$0xff]
    %v1656 = vld [vmem:[%s4 + $0x38] sm:$0xff]
    %v1658 = vsel %vm402, %v1577, 0
    %1660 = vmatpush.msra.mxu0 0.0
    %1661 = vmatpush.msra.mxu0 0.0
    %1662 = vmatpush.msra.mxu0 0.0
    %1663 = vmatpush.msra.mxu0 0.0
    %1664 = vmatpush.msra.mxu0 0.0
    %1665 = vmatpush.msra.mxu0 0.0
    %1666 = vmatpush.msra.mxu0 0.0
    %1667 = vmatpush.msra.mxu0 0.0
    %1668 = vmatpush.msra.mxu0 0.0
    %1669 = vmatpush.msra.mxu0 0.0
    %1670 = vmatpush.msra.mxu0 0.0
    %1671 = vmatpush.msra.mxu0 0.0
    %1672 = vmatpush.msra.mxu0 0.0
    %1673 = vmatpush.msra.mxu0 0.0
    %1674 = vmatpush.msra.mxu0 %v1650
    %1675 = vmatpush.msra.mxu0 %v1649
    %1676 = vmatmul.f32.gmra.mxu0 %v1658
    %v1677 = vpop.f32.mrf.mxu0
    %v1678 = vadd.f32 0.0, %v1677
    %1679 = vdwg.mxu0
    %v1681 = vsel %vm402, %v1600, 0
    %1683 = vmatpush.msra.mxu0 0.0
    %1684 = vmatpush.msra.mxu0 0.0
    %1685 = vmatpush.msra.mxu0 0.0
    %1686 = vmatpush.msra.mxu0 0.0
    %1687 = vmatpush.msra.mxu0 0.0
    %1688 = vmatpush.msra.mxu0 0.0
    %1689 = vmatpush.msra.mxu0 0.0
    %1690 = vmatpush.msra.mxu0 0.0
    %1691 = vmatpush.msra.mxu0 0.0
    %1692 = vmatpush.msra.mxu0 0.0
    %1693 = vmatpush.msra.mxu0 0.0
    %1694 = vmatpush.msra.mxu0 0.0
    %1695 = vmatpush.msra.mxu0 0.0
    %1696 = vmatpush.msra.mxu0 0.0
    %1697 = vmatpush.msra.mxu0 %v1652
    %1698 = vmatpush.msra.mxu0 %v1651
    %1699 = vmatmul.f32.gmra.mxu0 %v1681
    %v1700 = vpop.f32.mrf.mxu0
    %v1701 = vadd.f32 0.0, %v1700
    %1702 = vdwg.mxu0
    %v1704 = vsel %vm402, %v1623, 0
    %1706 = vmatpush.msra.mxu0 0.0
    %1707 = vmatpush.msra.mxu0 0.0
    %1708 = vmatpush.msra.mxu0 0.0
    %1709 = vmatpush.msra.mxu0 0.0
    %1710 = vmatpush.msra.mxu0 0.0
    %1711 = vmatpush.msra.mxu0 0.0
    %1712 = vmatpush.msra.mxu0 0.0
    %1713 = vmatpush.msra.mxu0 0.0
    %1714 = vmatpush.msra.mxu0 0.0
    %1715 = vmatpush.msra.mxu0 0.0
    %1716 = vmatpush.msra.mxu0 0.0
    %1717 = vmatpush.msra.mxu0 0.0
    %1718 = vmatpush.msra.mxu0 0.0
    %1719 = vmatpush.msra.mxu0 0.0
    %1720 = vmatpush.msra.mxu0 %v1654
    %1721 = vmatpush.msra.mxu0 %v1653
    %1722 = vmatmul.f32.gmra.mxu0 %v1704
    %v1723 = vpop.f32.mrf.mxu0
    %v1724 = vadd.f32 0.0, %v1723
    %1725 = vdwg.mxu0
    %v1727 = vsel %vm402, %v1646, 0
    %1729 = vmatpush.msra.mxu0 0.0
    %1730 = vmatpush.msra.mxu0 0.0
    %1731 = vmatpush.msra.mxu0 0.0
    %1732 = vmatpush.msra.mxu0 0.0
    %1733 = vmatpush.msra.mxu0 0.0
    %1734 = vmatpush.msra.mxu0 0.0
    %1735 = vmatpush.msra.mxu0 0.0
    %1736 = vmatpush.msra.mxu0 0.0
    %1737 = vmatpush.msra.mxu0 0.0
    %1738 = vmatpush.msra.mxu0 0.0
    %1739 = vmatpush.msra.mxu0 0.0
    %1740 = vmatpush.msra.mxu0 0.0
    %1741 = vmatpush.msra.mxu0 0.0
    %1742 = vmatpush.msra.mxu0 0.0
    %1743 = vmatpush.msra.mxu0 %v1656
    %1744 = vmatpush.msra.mxu0 %v1655
    %1745 = vmatmul.f32.gmra.mxu0 %v1727
    %v1746 = vpop.f32.mrf.mxu0
    %v1747 = vadd.f32 0.0, %v1746
    %1748 = vdwg.mxu0
    %v1749 = vadd.f32 %v1678, %v1701
    %v1750 = vadd.f32 %v1724, %v1747
    %v1751 = vperm.slane %v1648, 0
    %v1752 = vadd.f32 %v1749, %v1751
    %v1753 = vadd.f32 %v1750, %v1751
    %v1754 = vadd.f32 %v1752, %v39
    %v1755 = vadd.f32 %v1753, %v40
    %v1756 = vsel %vm147, %v1754, 0.0
    %1757 = vadd.xlane.f32.xlu0 %v1756
    %v1758 = vpop.xlane.xlu0 %1757
    %v1759 = vsel %vm147, %v1755, 0.0
    %1760 = vadd.xlane.f32.xlu0 %v1759
    %v1761 = vpop.xlane.xlu0 %1760
    %v1762 = vrcp.pop 32.0
    %v1763 = vmul.f32 32.0, %v1762
    %v1764 = vsub.f32 1.0, %v1763
    %v1765 = vmul.f32 %v1762, %v1764
    %v1766 = vadd.f32 %v1762, %v1765
    %vm1767 = vweird.f32 %v1762
    %v1768 = vsel %vm1767, %v1762, %v1766
    %v1769 = vmul.f32 %v1758, %v1768
    %v1770 = vmul.f32 %v1761, %v1768
    %v1771 = vsub.f32 %v1754, %v1769
    %v1772 = vsub.f32 %v1755, %v1770
    %v1773 = vmul.f32 %v1771, %v1771
    %v1774 = vmul.f32 %v1772, %v1772
    %v1775 = vsel %vm147, %v1773, 0.0
    %1776 = vadd.xlane.f32.xlu0 %v1775
    %v1777 = vpop.xlane.xlu0 %1776
    %v1778 = vsel %vm147, %v1774, 0.0
    %1779 = vadd.xlane.f32.xlu0 %v1778
    %v1780 = vpop.xlane.xlu0 %1779
    %v1781 = vmul.f32 %v1777, %v1768
    %v1782 = vmul.f32 %v1780, %v1768
    %v1783 = vadd.f32 %v1781, 1e-12
    %v1784 = vadd.f32 %v1782, 1e-12
    %v1785 = vrsqrt.pop %v1783
    %v1786 = vmul.f32 %v1785, %v1783
    %v1787 = vmul.f32 %v1786, %v1785
    %v1788 = vmul.f32 0.5, %v1787
    %v1789 = vsub.f32 1.5, %v1788
    %v1790 = vmul.f32 %v1785, %v1789
    %vm1791 = vweird.f32 %v1783
    %vm1792 = vweird.f32 %v1785
    %vm1793 = vmor %vm1791, %vm1792
    %v1794 = vsel %vm1793, %v1785, %v1790
    %v1795 = vrsqrt.pop %v1784
    %v1796 = vmul.f32 %v1795, %v1784
    %v1797 = vmul.f32 %v1796, %v1795
    %v1798 = vmul.f32 0.5, %v1797
    %v1799 = vsub.f32 1.5, %v1798
    %v1800 = vmul.f32 %v1795, %v1799
    %vm1801 = vweird.f32 %v1784
    %vm1802 = vweird.f32 %v1795
    %vm1803 = vmor %vm1801, %vm1802
    %v1804 = vsel %vm1803, %v1795, %v1800
    %v1805 = vmul.f32 %v1771, %v1794
    %v1806 = vmul.f32 %v1772, %v1804
    %v1807 = vperm.slane %v1648, 1
    %v1808 = vmul.f32 %v1805, %v1807
    %v1809 = vmul.f32 %v1806, %v1807
    %v1810 = vperm.slane %v1648, 2
    %v1811 = vadd.f32 %v1808, %v1810
    %v1812 = vadd.f32 %v1809, %v1810
    %v1813 = vld [vmem:[%s5] sm:$0xff]
    %v1814 = vld [vmem:[%s5 + $0x8] sm:$0xff]
    %v1815 = vld [vmem:[%s5 + $0x10] sm:$0xff]
    %v1816 = vld [vmem:[%s5 + $0x18] sm:$0xff]
    %v1817 = vld [vmem:[%s6] sm:$0x1]
    %v1819 = vperm.slane %v1817, 0
    %v1822 = vsel %vm147, %v1811, 0
    %v1825 = vsel %vm147, %v1812, 0
    %1827 = vmatpush.msra.mxu0 0.0
    %1828 = vmatpush.msra.mxu0 0.0
    %1829 = vmatpush.msra.mxu0 0.0
    %1830 = vmatpush.msra.mxu0 0.0
    %1831 = vmatpush.msra.mxu0 0.0
    %1832 = vmatpush.msra.mxu0 0.0
    %1833 = vmatpush.msra.mxu0 0.0
    %1834 = vmatpush.msra.mxu0 0.0
    %1835 = vmatpush.msra.mxu0 0.0
    %1836 = vmatpush.msra.mxu0 0.0
    %1837 = vmatpush.msra.mxu0 0.0
    %1838 = vmatpush.msra.mxu0 0.0
    %1839 = vmatpush.msra.mxu0 %v1816
    %1840 = vmatpush.msra.mxu0 %v1815
    %1841 = vmatpush.msra.mxu0 %v1814
    %1842 = vmatpush.msra.mxu0 %v1813
    %1843 = vmatmul.f32.gmra.mxu0 %v1822
    %v1844 = vpop.f32.mrf.mxu0
    %v1845 = vadd.f32 %v1819, %v1844
    %1846 = vmatmul.f32.gmra.mxu0 %v1825
    %v1847 = vpop.f32.mrf.mxu0
    %v1848 = vadd.f32 %v1819, %v1847
    %1849 = vdwg.mxu0
    %v1850 = vmul.f32 %v1845, 0.5
    %v1851 = vmul.f32 %v1848, 0.5
    %v1852 = vmul.f32 %v1845, 0.044715
    %v1853 = vmul.f32 %v1848, 0.044715
    %v1854 = vmul.f32 %v1852, %v1845
    %v1855 = vmul.f32 %v1853, %v1848
    %v1856 = vmul.f32 %v1854, %v1845
    %v1857 = vmul.f32 %v1855, %v1848
    %v1858 = vadd.f32 %v1845, %v1856
    %v1859 = vadd.f32 %v1848, %v1857
    %v1860 = vmul.f32 %v1858, 0.7978846
    %v1861 = vmul.f32 %v1859, 0.7978846
    %v1862 = vtanh.pop %v1860
    %v1863 = vtanh.pop %v1861
    %v1864 = vadd.f32 %v1862, 1.0
    %v1865 = vadd.f32 %v1863, 1.0
    %v1866 = vmul.f32 %v1850, %v1864
    %v1867 = vmul.f32 %v1851, %v1865
    %v1868 = vld [vmem:[%s7] sm:$0xff]
    %v1869 = vld [vmem:[%s7 + $0x8] sm:$0xff]
    %v1870 = vld [vmem:[%s7 + $0x10] sm:$0xff]
    %v1871 = vld [vmem:[%s7 + $0x18] sm:$0xff]
    %v1872 = vld [vmem:[%s7 + $0x20] sm:$0xff]
    %v1873 = vld [vmem:[%s7 + $0x28] sm:$0xff]
    %v1874 = vld [vmem:[%s7 + $0x30] sm:$0xff]
    %v1875 = vld [vmem:[%s7 + $0x38] sm:$0xff]
    %v1876 = vperm.slane %v1648, 3
    %vm1877 = vcmask 523264
    %v1879 = vsel %vm1877, %v1866, 0
    %v1882 = vsel %vm1877, %v1867, 0
    %1884 = vmatpush.msra.mxu0 0.0
    %1885 = vmatpush.msra.mxu0 0.0
    %1886 = vmatpush.msra.mxu0 0.0
    %1887 = vmatpush.msra.mxu0 0.0
    %1888 = vmatpush.msra.mxu0 0.0
    %1889 = vmatpush.msra.mxu0 0.0
    %1890 = vmatpush.msra.mxu0 0.0
    %1891 = vmatpush.msra.mxu0 0.0
    %1892 = vmatpush.msra.mxu0 %v1875
    %1893 = vmatpush.msra.mxu0 %v1874
    %1894 = vmatpush.msra.mxu0 %v1873
    %1895 = vmatpush.msra.mxu0 %v1872
    %1896 = vmatpush.msra.mxu0 %v1871
    %1897 = vmatpush.msra.mxu0 %v1870
    %1898 = vmatpush.msra.mxu0 %v1869
    %1899 = vmatpush.msra.mxu0 %v1868
    %1900 = vmatmul.f32.gmra.mxu0 %v1879
    %v1901 = vpop.f32.mrf.mxu0
    %v1902 = vadd.f32 %v1876, %v1901
    %1903 = vmatmul.f32.gmra.mxu0 %v1882
    %v1904 = vpop.f32.mrf.mxu0
    %v1905 = vadd.f32 %v1876, %v1904
    %1906 = vdwg.mxu0
    %v1907 = vadd.f32 %v1902, %v1811
    %v1908 = vadd.f32 %v1905, %v1812
    %v1909 = vsel %vm147, %v1907, 0.0
    %1910 = vadd.xlane.f32.xlu0 %v1909
    %v1911 = vpop.xlane.xlu0 %1910
    %v1912 = vsel %vm147, %v1908, 0.0
    %1913 = vadd.xlane.f32.xlu0 %v1912
    %v1914 = vpop.xlane.xlu0 %1913
    %v1915 = vmul.f32 %v1911, %v1768
    %v1916 = vmul.f32 %v1914, %v1768
    %v1917 = vsub.f32 %v1907, %v1915
    %v1918 = vsub.f32 %v1908, %v1916
    %v1919 = vmul.f32 %v1917, %v1917
    %v1920 = vmul.f32 %v1918, %v1918
    %v1921 = vsel %vm147, %v1919, 0.0
    %1922 = vadd.xlane.f32.xlu0 %v1921
    %v1923 = vpop.xlane.xlu0 %1922
    %v1924 = vsel %vm147, %v1920, 0.0
    %1925 = vadd.xlane.f32.xlu0 %v1924
    %v1926 = vpop.xlane.xlu0 %1925
    %v1927 = vmul.f32 %v1923, %v1768
    %v1928 = vmul.f32 %v1926, %v1768
    %v1929 = vadd.f32 %v1927, 1e-12
    %v1930 = vadd.f32 %v1928, 1e-12
    %v1931 = vrsqrt.pop %v1929
    %v1932 = vmul.f32 %v1931, %v1929
    %v1933 = vmul.f32 %v1932, %v1931
    %v1934 = vmul.f32 0.5, %v1933
    %v1935 = vsub.f32 1.5, %v1934
    %v1936 = vmul.f32 %v1931, %v1935
    %vm1937 = vweird.f32 %v1929
    %vm1938 = vweird.f32 %v1931
    %vm1939 = vmor %vm1937, %vm1938
    %v1940 = vsel %vm1939, %v1931, %v1936
    %v1941 = vrsqrt.pop %v1930
    %v1942 = vmul.f32 %v1941, %v1930
    %v1943 = vmul.f32 %v1942, %v1941
    %v1944 = vmul.f32 0.5, %v1943
    %v1945 = vsub.f32 1.5, %v1944
    %v1946 = vmul.f32 %v1941, %v1945
    %vm1947 = vweird.f32 %v1930
    %vm1948 = vweird.f32 %v1941
    %vm1949 = vmor %vm1947, %vm1948
    %v1950 = vsel %vm1949, %v1941, %v1946
    %v1951 = vmul.f32 %v1917, %v1940
    %v1952 = vmul.f32 %v1918, %v1950
    %v1953 = vperm.slane %v1648, 4
    %v1954 = vmul.f32 %v1951, %v1953
    %v1955 = vmul.f32 %v1952, %v1953
    %v1956 = vperm.slane %v1648, 5
    %v1957 = vadd.f32 %v1954, %v1956
    %v1958 = vadd.f32 %v1955, %v1956
    %s1959 = scalar_lea.vmem %s2, 384
    %v1960 = vld [vmem:[%s1959] sm:$0xff]
    %v1961 = vld [vmem:[%s1959 + $0x8] sm:$0xff]
    %v1962 = vld [vmem:[%s1959 + $0x10] sm:$0xff]
    %v1963 = vld [vmem:[%s1959 + $0x18] sm:$0xff]
    %v1964 = vld [vmem:[%s1959 + $0x20] sm:$0xff]
    %v1965 = vld [vmem:[%s1959 + $0x28] sm:$0xff]
    %v1966 = vld [vmem:[%s1959 + $0x30] sm:$0xff]
    %v1967 = vld [vmem:[%s1959 + $0x38] sm:$0xff]
    %v1968 = vld [vmem:[%s1959 + $0x40] sm:$0xff]
    %v1969 = vld [vmem:[%s1959 + $0x48] sm:$0xff]
    %v1970 = vld [vmem:[%s1959 + $0x50] sm:$0xff]
    %v1971 = vld [vmem:[%s1959 + $0x58] sm:$0xff]
    %v1972 = vld [vmem:[%s1959 + $0x60] sm:$0xff]
    %v1973 = vld [vmem:[%s1959 + $0x68] sm:$0xff]
    %v1974 = vld [vmem:[%s1959 + $0x70] sm:$0xff]
    %v1975 = vld [vmem:[%s1959 + $0x78] sm:$0xff]
    %v1976 = vld [vmem:[%s1959 + $0x80] sm:$0xff]
    %v1977 = vld [vmem:[%s1959 + $0x88] sm:$0xff]
    %v1978 = vld [vmem:[%s1959 + $0x90] sm:$0xff]
    %v1979 = vld [vmem:[%s1959 + $0x98] sm:$0xff]
    %v1980 = vld [vmem:[%s1959 + $0xa0] sm:$0xff]
    %v1981 = vld [vmem:[%s1959 + $0xa8] sm:$0xff]
    %v1982 = vld [vmem:[%s1959 + $0xb0] sm:$0xff]
    %v1983 = vld [vmem:[%s1959 + $0xb8] sm:$0xff]
    %v1984 = vld [vmem:[%s1959 + $0xc0] sm:$0xff]
    %v1985 = vld [vmem:[%s1959 + $0xc8] sm:$0xff]
    %v1986 = vld [vmem:[%s1959 + $0xd0] sm:$0xff]
    %v1987 = vld [vmem:[%s1959 + $0xd8] sm:$0xff]
    %v1988 = vld [vmem:[%s1959 + $0xe0] sm:$0xff]
    %v1989 = vld [vmem:[%s1959 + $0xe8] sm:$0xff]
    %v1990 = vld [vmem:[%s1959 + $0xf0] sm:$0xff]
    %v1991 = vld [vmem:[%s1959 + $0xf8] sm:$0xff]
    %v1992 = vld [vmem:[%s1959 + $0x100] sm:$0xff]
    %v1993 = vld [vmem:[%s1959 + $0x108] sm:$0xff]
    %v1994 = vld [vmem:[%s1959 + $0x110] sm:$0xff]
    %v1995 = vld [vmem:[%s1959 + $0x118] sm:$0xff]
    %v1996 = vld [vmem:[%s1959 + $0x120] sm:$0xff]
    %v1997 = vld [vmem:[%s1959 + $0x128] sm:$0xff]
    %v1998 = vld [vmem:[%s1959 + $0x130] sm:$0xff]
    %v1999 = vld [vmem:[%s1959 + $0x138] sm:$0xff]
    %v2000 = vld [vmem:[%s1959 + $0x140] sm:$0xff]
    %v2001 = vld [vmem:[%s1959 + $0x148] sm:$0xff]
    %v2002 = vld [vmem:[%s1959 + $0x150] sm:$0xff]
    %v2003 = vld [vmem:[%s1959 + $0x158] sm:$0xff]
    %v2004 = vld [vmem:[%s1959 + $0x160] sm:$0xff]
    %v2005 = vld [vmem:[%s1959 + $0x168] sm:$0xff]
    %v2006 = vld [vmem:[%s1959 + $0x170] sm:$0xff]
    %v2007 = vld [vmem:[%s1959 + $0x178] sm:$0xff]
    %s2008 = scalar_lea.vmem %s3, 12
    %v2009 = vld [vmem:[%s2008] sm:$0x1]
    %v2010 = vld [vmem:[%s2008 + $0x1] sm:$0x1]
    %v2011 = vld [vmem:[%s2008 + $0x2] sm:$0x1]
    %v2012 = vld [vmem:[%s2008 + $0x3] sm:$0x1]
    %v2013 = vld [vmem:[%s2008 + $0x4] sm:$0x1]
    %v2014 = vld [vmem:[%s2008 + $0x5] sm:$0x1]
    %v2015 = vld [vmem:[%s2008 + $0x6] sm:$0x1]
    %v2016 = vld [vmem:[%s2008 + $0x7] sm:$0x1]
    %v2017 = vld [vmem:[%s2008 + $0x8] sm:$0x1]
    %v2018 = vld [vmem:[%s2008 + $0x9] sm:$0x1]
    %v2019 = vld [vmem:[%s2008 + $0xa] sm:$0x1]
    %v2020 = vld [vmem:[%s2008 + $0xb] sm:$0x1]
    %v2033 = vperm.slane %v2009, 0
    %v2034 = vperm.slane %v2010, 0
    %v2035 = vperm.slane %v2011, 0
    %v2036 = vperm.slane %v2012, 0
    %v2037 = vperm.slane %v2013, 0
    %v2038 = vperm.slane %v2014, 0
    %v2039 = vperm.slane %v2015, 0
    %v2040 = vperm.slane %v2016, 0
    %v2041 = vperm.slane %v2017, 0
    %v2042 = vperm.slane %v2018, 0
    %v2043 = vperm.slane %v2019, 0
    %v2044 = vperm.slane %v2020, 0
    %v2058 = vsel %vm147, %v1957, 0
    %2060 = vmatpush.msra.mxu0 0.0
    %2061 = vmatpush.msra.mxu0 0.0
    %2062 = vmatpush.msra.mxu0 0.0
    %2063 = vmatpush.msra.mxu0 0.0
    %2064 = vmatpush.msra.mxu0 0.0
    %2065 = vmatpush.msra.mxu0 0.0
    %2066 = vmatpush.msra.mxu0 0.0
    %2067 = vmatpush.msra.mxu0 0.0
    %2068 = vmatpush.msra.mxu0 0.0
    %2069 = vmatpush.msra.mxu0 0.0
    %2070 = vmatpush.msra.mxu0 0.0
    %2071 = vmatpush.msra.mxu0 0.0
    %2072 = vmatpush.msra.mxu0 %v1963
    %2073 = vmatpush.msra.mxu0 %v1962
    %2074 = vmatpush.msra.mxu0 %v1961
    %2075 = vmatpush.msra.mxu0 %v1960
    %2076 = vmatmul.f32.gmra.mxu0 %v2058
    %v2077 = vpop.f32.mrf.mxu0
    %v2078 = vadd.f32 %v2033, %v2077
    %2079 = vdwg.mxu0
    %2080 = vmatpush.msra.mxu0 0.0
    %2081 = vmatpush.msra.mxu0 0.0
    %2082 = vmatpush.msra.mxu0 0.0
    %2083 = vmatpush.msra.mxu0 0.0
    %2084 = vmatpush.msra.mxu0 0.0
    %2085 = vmatpush.msra.mxu0 0.0
    %2086 = vmatpush.msra.mxu0 0.0
    %2087 = vmatpush.msra.mxu0 0.0
    %2088 = vmatpush.msra.mxu0 0.0
    %2089 = vmatpush.msra.mxu0 0.0
    %2090 = vmatpush.msra.mxu0 0.0
    %2091 = vmatpush.msra.mxu0 0.0
    %2092 = vmatpush.msra.mxu0 %v1967
    %2093 = vmatpush.msra.mxu0 %v1966
    %2094 = vmatpush.msra.mxu0 %v1965
    %2095 = vmatpush.msra.mxu0 %v1964
    %2096 = vmatmul.f32.gmra.mxu0 %v2058
    %v2097 = vpop.f32.mrf.mxu0
    %v2098 = vadd.f32 %v2034, %v2097
    %2099 = vdwg.mxu0
    %v2101 = vsel %vm147, %v1958, 0
    %2103 = vmatpush.msra.mxu0 0.0
    %2104 = vmatpush.msra.mxu0 0.0
    %2105 = vmatpush.msra.mxu0 0.0
    %2106 = vmatpush.msra.mxu0 0.0
    %2107 = vmatpush.msra.mxu0 0.0
    %2108 = vmatpush.msra.mxu0 0.0
    %2109 = vmatpush.msra.mxu0 0.0
    %2110 = vmatpush.msra.mxu0 0.0
    %2111 = vmatpush.msra.mxu0 0.0
    %2112 = vmatpush.msra.mxu0 0.0
    %2113 = vmatpush.msra.mxu0 0.0
    %2114 = vmatpush.msra.mxu0 0.0
    %2115 = vmatpush.msra.mxu0 %v1971
    %2116 = vmatpush.msra.mxu0 %v1970
    %2117 = vmatpush.msra.mxu0 %v1969
    %2118 = vmatpush.msra.mxu0 %v1968
    %2119 = vmatmul.f32.gmra.mxu0 %v2101
    %v2120 = vpop.f32.mrf.mxu0
    %v2121 = vadd.f32 %v2035, %v2120
    %2122 = vdwg.mxu0
    %2123 = vmatpush.msra.mxu0 0.0
    %2124 = vmatpush.msra.mxu0 0.0
    %2125 = vmatpush.msra.mxu0 0.0
    %2126 = vmatpush.msra.mxu0 0.0
    %2127 = vmatpush.msra.mxu0 0.0
    %2128 = vmatpush.msra.mxu0 0.0
    %2129 = vmatpush.msra.mxu0 0.0
    %2130 = vmatpush.msra.mxu0 0.0
    %2131 = vmatpush.msra.mxu0 0.0
    %2132 = vmatpush.msra.mxu0 0.0
    %2133 = vmatpush.msra.mxu0 0.0
    %2134 = vmatpush.msra.mxu0 0.0
    %2135 = vmatpush.msra.mxu0 %v1975
    %2136 = vmatpush.msra.mxu0 %v1974
    %2137 = vmatpush.msra.mxu0 %v1973
    %2138 = vmatpush.msra.mxu0 %v1972
    %2139 = vmatmul.f32.gmra.mxu0 %v2101
    %v2140 = vpop.f32.mrf.mxu0
    %v2141 = vadd.f32 %v2036, %v2140
    %2142 = vdwg.mxu0
    %2143 = vmatpush.msra.mxu0 0.0
    %2144 = vmatpush.msra.mxu0 0.0
    %2145 = vmatpush.msra.mxu0 0.0
    %2146 = vmatpush.msra.mxu0 0.0
    %2147 = vmatpush.msra.mxu0 0.0
    %2148 = vmatpush.msra.mxu0 0.0
    %2149 = vmatpush.msra.mxu0 0.0
    %2150 = vmatpush.msra.mxu0 0.0
    %2151 = vmatpush.msra.mxu0 0.0
    %2152 = vmatpush.msra.mxu0 0.0
    %2153 = vmatpush.msra.mxu0 0.0
    %2154 = vmatpush.msra.mxu0 0.0
    %2155 = vmatpush.msra.mxu0 %v1979
    %2156 = vmatpush.msra.mxu0 %v1978
    %2157 = vmatpush.msra.mxu0 %v1977
    %2158 = vmatpush.msra.mxu0 %v1976
    %2159 = vmatmul.f32.gmra.mxu0 %v2058
    %v2160 = vpop.f32.mrf.mxu0
    %v2161 = vadd.f32 %v2037, %v2160
    %2162 = vdwg.mxu0
    %2163 = vmatpush.msra.mxu0 0.0
    %2164 = vmatpush.msra.mxu0 0.0
    %2165 = vmatpush.msra.mxu0 0.0
    %2166 = vmatpush.msra.mxu0 0.0
    %2167 = vmatpush.msra.mxu0 0.0
    %2168 = vmatpush.msra.mxu0 0.0
    %2169 = vmatpush.msra.mxu0 0.0
    %2170 = vmatpush.msra.mxu0 0.0
    %2171 = vmatpush.msra.mxu0 0.0
    %2172 = vmatpush.msra.mxu0 0.0
    %2173 = vmatpush.msra.mxu0 0.0
    %2174 = vmatpush.msra.mxu0 0.0
    %2175 = vmatpush.msra.mxu0 %v1983
    %2176 = vmatpush.msra.mxu0 %v1982
    %2177 = vmatpush.msra.mxu0 %v1981
    %2178 = vmatpush.msra.mxu0 %v1980
    %2179 = vmatmul.f32.gmra.mxu0 %v2058
    %v2180 = vpop.f32.mrf.mxu0
    %v2181 = vadd.f32 %v2038, %v2180
    %2182 = vdwg.mxu0
    %2183 = vmatpush.msra.mxu0 0.0
    %2184 = vmatpush.msra.mxu0 0.0
    %2185 = vmatpush.msra.mxu0 0.0
    %2186 = vmatpush.msra.mxu0 0.0
    %2187 = vmatpush.msra.mxu0 0.0
    %2188 = vmatpush.msra.mxu0 0.0
    %2189 = vmatpush.msra.mxu0 0.0
    %2190 = vmatpush.msra.mxu0 0.0
    %2191 = vmatpush.msra.mxu0 0.0
    %2192 = vmatpush.msra.mxu0 0.0
    %2193 = vmatpush.msra.mxu0 0.0
    %2194 = vmatpush.msra.mxu0 0.0
    %2195 = vmatpush.msra.mxu0 %v1987
    %2196 = vmatpush.msra.mxu0 %v1986
    %2197 = vmatpush.msra.mxu0 %v1985
    %2198 = vmatpush.msra.mxu0 %v1984
    %2199 = vmatmul.f32.gmra.mxu0 %v2101
    %v2200 = vpop.f32.mrf.mxu0
    %v2201 = vadd.f32 %v2039, %v2200
    %2202 = vdwg.mxu0
    %2203 = vmatpush.msra.mxu0 0.0
    %2204 = vmatpush.msra.mxu0 0.0
    %2205 = vmatpush.msra.mxu0 0.0
    %2206 = vmatpush.msra.mxu0 0.0
    %2207 = vmatpush.msra.mxu0 0.0
    %2208 = vmatpush.msra.mxu0 0.0
    %2209 = vmatpush.msra.mxu0 0.0
    %2210 = vmatpush.msra.mxu0 0.0
    %2211 = vmatpush.msra.mxu0 0.0
    %2212 = vmatpush.msra.mxu0 0.0
    %2213 = vmatpush.msra.mxu0 0.0
    %2214 = vmatpush.msra.mxu0 0.0
    %2215 = vmatpush.msra.mxu0 %v1991
    %2216 = vmatpush.msra.mxu0 %v1990
    %2217 = vmatpush.msra.mxu0 %v1989
    %2218 = vmatpush.msra.mxu0 %v1988
    %2219 = vmatmul.f32.gmra.mxu0 %v2101
    %v2220 = vpop.f32.mrf.mxu0
    %v2221 = vadd.f32 %v2040, %v2220
    %2222 = vdwg.mxu0
    %2223 = vmatpush.msra.mxu0 0.0
    %2224 = vmatpush.msra.mxu0 0.0
    %2225 = vmatpush.msra.mxu0 0.0
    %2226 = vmatpush.msra.mxu0 0.0
    %2227 = vmatpush.msra.mxu0 0.0
    %2228 = vmatpush.msra.mxu0 0.0
    %2229 = vmatpush.msra.mxu0 0.0
    %2230 = vmatpush.msra.mxu0 0.0
    %2231 = vmatpush.msra.mxu0 0.0
    %2232 = vmatpush.msra.mxu0 0.0
    %2233 = vmatpush.msra.mxu0 0.0
    %2234 = vmatpush.msra.mxu0 0.0
    %2235 = vmatpush.msra.mxu0 %v1995
    %2236 = vmatpush.msra.mxu0 %v1994
    %2237 = vmatpush.msra.mxu0 %v1993
    %2238 = vmatpush.msra.mxu0 %v1992
    %2239 = vmatmul.f32.gmra.mxu0 %v2058
    %v2240 = vpop.f32.mrf.mxu0
    %v2241 = vadd.f32 %v2041, %v2240
    %2242 = vdwg.mxu0
    %2243 = vmatpush.msra.mxu0 0.0
    %2244 = vmatpush.msra.mxu0 0.0
    %2245 = vmatpush.msra.mxu0 0.0
    %2246 = vmatpush.msra.mxu0 0.0
    %2247 = vmatpush.msra.mxu0 0.0
    %2248 = vmatpush.msra.mxu0 0.0
    %2249 = vmatpush.msra.mxu0 0.0
    %2250 = vmatpush.msra.mxu0 0.0
    %2251 = vmatpush.msra.mxu0 0.0
    %2252 = vmatpush.msra.mxu0 0.0
    %2253 = vmatpush.msra.mxu0 0.0
    %2254 = vmatpush.msra.mxu0 0.0
    %2255 = vmatpush.msra.mxu0 %v1999
    %2256 = vmatpush.msra.mxu0 %v1998
    %2257 = vmatpush.msra.mxu0 %v1997
    %2258 = vmatpush.msra.mxu0 %v1996
    %2259 = vmatmul.f32.gmra.mxu0 %v2058
    %v2260 = vpop.f32.mrf.mxu0
    %v2261 = vadd.f32 %v2042, %v2260
    %2262 = vdwg.mxu0
    %2263 = vmatpush.msra.mxu0 0.0
    %2264 = vmatpush.msra.mxu0 0.0
    %2265 = vmatpush.msra.mxu0 0.0
    %2266 = vmatpush.msra.mxu0 0.0
    %2267 = vmatpush.msra.mxu0 0.0
    %2268 = vmatpush.msra.mxu0 0.0
    %2269 = vmatpush.msra.mxu0 0.0
    %2270 = vmatpush.msra.mxu0 0.0
    %2271 = vmatpush.msra.mxu0 0.0
    %2272 = vmatpush.msra.mxu0 0.0
    %2273 = vmatpush.msra.mxu0 0.0
    %2274 = vmatpush.msra.mxu0 0.0
    %2275 = vmatpush.msra.mxu0 %v2003
    %2276 = vmatpush.msra.mxu0 %v2002
    %2277 = vmatpush.msra.mxu0 %v2001
    %2278 = vmatpush.msra.mxu0 %v2000
    %2279 = vmatmul.f32.gmra.mxu0 %v2101
    %v2280 = vpop.f32.mrf.mxu0
    %v2281 = vadd.f32 %v2043, %v2280
    %2282 = vdwg.mxu0
    %2283 = vmatpush.msra.mxu0 0.0
    %2284 = vmatpush.msra.mxu0 0.0
    %2285 = vmatpush.msra.mxu0 0.0
    %2286 = vmatpush.msra.mxu0 0.0
    %2287 = vmatpush.msra.mxu0 0.0
    %2288 = vmatpush.msra.mxu0 0.0
    %2289 = vmatpush.msra.mxu0 0.0
    %2290 = vmatpush.msra.mxu0 0.0
    %2291 = vmatpush.msra.mxu0 0.0
    %2292 = vmatpush.msra.mxu0 0.0
    %2293 = vmatpush.msra.mxu0 0.0
    %2294 = vmatpush.msra.mxu0 0.0
    %2295 = vmatpush.msra.mxu0 %v2007
    %2296 = vmatpush.msra.mxu0 %v2006
    %2297 = vmatpush.msra.mxu0 %v2005
    %2298 = vmatpush.msra.mxu0 %v2004
    %2299 = vmatmul.f32.gmra.mxu0 %v2101
    %v2300 = vpop.f32.mrf.mxu0
    %v2301 = vadd.f32 %v2044, %v2300
    %2302 = vdwg.mxu0
    %s2303 = scalar_lea.vmem %s9, 32
    %v2304 = vld [vmem:[%s2303] sm:$0xff]
    %v2305 = vld [vmem:[%s2303 + $0x8] sm:$0xff]
    %v2306 = vld [vmem:[%s2303 + $0x10] sm:$0xff]
    %v2307 = vld [vmem:[%s2303 + $0x18] sm:$0xff]
    %s2308 = scalar_lea.vmem %s10, 32
    %v2309 = vld [vmem:[%s2308] sm:$0xff]
    %v2310 = vld [vmem:[%s2308 + $0x8] sm:$0xff]
    %v2311 = vld [vmem:[%s2308 + $0x10] sm:$0xff]
    %v2312 = vld [vmem:[%s2308 + $0x18] sm:$0xff]
    %v2314 = vsel %vm402, %v2078, 0
    %v2317 = vsel %vm402, %v2304, 0
    %2319 = vmatpush.xpose.msra.mxu0 0.0
    %2320 = vmatpush.xpose.msra.mxu0 0.0
    %2321 = vmatpush.xpose.msra.mxu0 0.0
    %2322 = vmatpush.xpose.msra.mxu0 0.0
    %2323 = vmatpush.xpose.msra.mxu0 0.0
    %2324 = vmatpush.xpose.msra.mxu0 0.0
    %2325 = vmatpush.xpose.msra.mxu0 0.0
    %2326 = vmatpush.xpose.msra.mxu0 0.0
    %2327 = vmatpush.xpose.msra.mxu0 0.0
    %2328 = vmatpush.xpose.msra.mxu0 0.0
    %2329 = vmatpush.xpose.msra.mxu0 0.0
    %2330 = vmatpush.xpose.msra.mxu0 0.0
    %2331 = vmatpush.xpose.msra.mxu0 0.0
    %2332 = vmatpush.xpose.msra.mxu0 0.0
    %2333 = vmatpush.xpose.msra.mxu0 0.0
    %2334 = vmatpush.xpose.msra.mxu0 %v2317
    %2335 = vmatmul.f32.gmra.mxu0 %v2314
    %v2336 = vpop.f32.mrf.mxu0
    %v2337 = vadd.f32 0.0, %v2336
    %2338 = vdwg.mxu0
    %v2340 = vsel %vm402, %v2098, 0
    %v2343 = vsel %vm402, %v2305, 0
    %2345 = vmatpush.xpose.msra.mxu0 0.0
    %2346 = vmatpush.xpose.msra.mxu0 0.0
    %2347 = vmatpush.xpose.msra.mxu0 0.0
    %2348 = vmatpush.xpose.msra.mxu0 0.0
    %2349 = vmatpush.xpose.msra.mxu0 0.0
    %2350 = vmatpush.xpose.msra.mxu0 0.0
    %2351 = vmatpush.xpose.msra.mxu0 0.0
    %2352 = vmatpush.xpose.msra.mxu0 0.0
    %2353 = vmatpush.xpose.msra.mxu0 0.0
    %2354 = vmatpush.xpose.msra.mxu0 0.0
    %2355 = vmatpush.xpose.msra.mxu0 0.0
    %2356 = vmatpush.xpose.msra.mxu0 0.0
    %2357 = vmatpush.xpose.msra.mxu0 0.0
    %2358 = vmatpush.xpose.msra.mxu0 0.0
    %2359 = vmatpush.xpose.msra.mxu0 0.0
    %2360 = vmatpush.xpose.msra.mxu0 %v2343
    %2361 = vmatmul.f32.gmra.mxu0 %v2340
    %v2362 = vpop.f32.mrf.mxu0
    %v2363 = vadd.f32 0.0, %v2362
    %2364 = vdwg.mxu0
    %v2366 = vsel %vm402, %v2121, 0
    %v2369 = vsel %vm402, %v2306, 0
    %2371 = vmatpush.xpose.msra.mxu0 0.0
    %2372 = vmatpush.xpose.msra.mxu0 0.0
    %2373 = vmatpush.xpose.msra.mxu0 0.0
    %2374 = vmatpush.xpose.msra.mxu0 0.0
    %2375 = vmatpush.xpose.msra.mxu0 0.0
    %2376 = vmatpush.xpose.msra.mxu0 0.0
    %2377 = vmatpush.xpose.msra.mxu0 0.0
    %2378 = vmatpush.xpose.msra.mxu0 0.0
    %2379 = vmatpush.xpose.msra.mxu0 0.0
    %2380 = vmatpush.xpose.msra.mxu0 0.0
    %2381 = vmatpush.xpose.msra.mxu0 0.0
    %2382 = vmatpush.xpose.msra.mxu0 0.0
    %2383 = vmatpush.xpose.msra.mxu0 0.0
    %2384 = vmatpush.xpose.msra.mxu0 0.0
    %2385 = vmatpush.xpose.msra.mxu0 0.0
    %2386 = vmatpush.xpose.msra.mxu0 %v2369
    %2387 = vmatmul.f32.gmra.mxu0 %v2366
    %v2388 = vpop.f32.mrf.mxu0
    %v2389 = vadd.f32 0.0, %v2388
    %2390 = vdwg.mxu0
    %v2392 = vsel %vm402, %v2141, 0
    %v2395 = vsel %vm402, %v2307, 0
    %2397 = vmatpush.xpose.msra.mxu0 0.0
    %2398 = vmatpush.xpose.msra.mxu0 0.0
    %2399 = vmatpush.xpose.msra.mxu0 0.0
    %2400 = vmatpush.xpose.msra.mxu0 0.0
    %2401 = vmatpush.xpose.msra.mxu0 0.0
    %2402 = vmatpush.xpose.msra.mxu0 0.0
    %2403 = vmatpush.xpose.msra.mxu0 0.0
    %2404 = vmatpush.xpose.msra.mxu0 0.0
    %2405 = vmatpush.xpose.msra.mxu0 0.0
    %2406 = vmatpush.xpose.msra.mxu0 0.0
    %2407 = vmatpush.xpose.msra.mxu0 0.0
    %2408 = vmatpush.xpose.msra.mxu0 0.0
    %2409 = vmatpush.xpose.msra.mxu0 0.0
    %2410 = vmatpush.xpose.msra.mxu0 0.0
    %2411 = vmatpush.xpose.msra.mxu0 0.0
    %2412 = vmatpush.xpose.msra.mxu0 %v2395
    %2413 = vmatmul.f32.gmra.mxu0 %v2392
    %v2414 = vpop.f32.mrf.mxu0
    %v2415 = vadd.f32 0.0, %v2414
    %2416 = vdwg.mxu0
    %vm2417 = vcmp.gt.f32.partialorder %v2337, 0.0
    %vm2418 = vcmp.gt.f32.partialorder %v2363, 0.0
    %vm2419 = vcmp.gt.f32.partialorder %v2389, 0.0
    %vm2420 = vcmp.gt.f32.partialorder %v2415, 0.0
    %v2421 = vsel %vm2417, 1, 0
    %v2422 = vsel %vm2418, 1, 0
    %v2423 = vsel %vm2419, 1, 0
    %v2424 = vsel %vm2420, 1, 0
    %v2425 = vcvt.s32.f32 %v2421
    %v2426 = vcvt.s32.f32 %v2422
    %v2427 = vcvt.s32.f32 %v2423
    %v2428 = vcvt.s32.f32 %v2424
    %v2430 = vsel %vm402, %v2161, 0
    %2432 = vmatpush.xpose.msra.mxu0 0.0
    %2433 = vmatpush.xpose.msra.mxu0 0.0
    %2434 = vmatpush.xpose.msra.mxu0 0.0
    %2435 = vmatpush.xpose.msra.mxu0 0.0
    %2436 = vmatpush.xpose.msra.mxu0 0.0
    %2437 = vmatpush.xpose.msra.mxu0 0.0
    %2438 = vmatpush.xpose.msra.mxu0 0.0
    %2439 = vmatpush.xpose.msra.mxu0 0.0
    %2440 = vmatpush.xpose.msra.mxu0 0.0
    %2441 = vmatpush.xpose.msra.mxu0 0.0
    %2442 = vmatpush.xpose.msra.mxu0 0.0
    %2443 = vmatpush.xpose.msra.mxu0 0.0
    %2444 = vmatpush.xpose.msra.mxu0 0.0
    %2445 = vmatpush.xpose.msra.mxu0 0.0
    %2446 = vmatpush.xpose.msra.mxu0 0.0
    %2447 = vmatpush.xpose.msra.mxu0 %v2317
    %2448 = vmatmul.f32.gmra.mxu0 %v2430
    %v2449 = vpop.f32.mrf.mxu0
    %v2450 = vadd.f32 0.0, %v2449
    %2451 = vdwg.mxu0
    %v2453 = vsel %vm402, %v2181, 0
    %2455 = vmatpush.xpose.msra.mxu0 0.0
    %2456 = vmatpush.xpose.msra.mxu0 0.0
    %2457 = vmatpush.xpose.msra.mxu0 0.0
    %2458 = vmatpush.xpose.msra.mxu0 0.0
    %2459 = vmatpush.xpose.msra.mxu0 0.0
    %2460 = vmatpush.xpose.msra.mxu0 0.0
    %2461 = vmatpush.xpose.msra.mxu0 0.0
    %2462 = vmatpush.xpose.msra.mxu0 0.0
    %2463 = vmatpush.xpose.msra.mxu0 0.0
    %2464 = vmatpush.xpose.msra.mxu0 0.0
    %2465 = vmatpush.xpose.msra.mxu0 0.0
    %2466 = vmatpush.xpose.msra.mxu0 0.0
    %2467 = vmatpush.xpose.msra.mxu0 0.0
    %2468 = vmatpush.xpose.msra.mxu0 0.0
    %2469 = vmatpush.xpose.msra.mxu0 0.0
    %2470 = vmatpush.xpose.msra.mxu0 %v2343
    %2471 = vmatmul.f32.gmra.mxu0 %v2453
    %v2472 = vpop.f32.mrf.mxu0
    %v2473 = vadd.f32 0.0, %v2472
    %2474 = vdwg.mxu0
    %v2476 = vsel %vm402, %v2201, 0
    %2478 = vmatpush.xpose.msra.mxu0 0.0
    %2479 = vmatpush.xpose.msra.mxu0 0.0
    %2480 = vmatpush.xpose.msra.mxu0 0.0
    %2481 = vmatpush.xpose.msra.mxu0 0.0
    %2482 = vmatpush.xpose.msra.mxu0 0.0
    %2483 = vmatpush.xpose.msra.mxu0 0.0
    %2484 = vmatpush.xpose.msra.mxu0 0.0
    %2485 = vmatpush.xpose.msra.mxu0 0.0
    %2486 = vmatpush.xpose.msra.mxu0 0.0
    %2487 = vmatpush.xpose.msra.mxu0 0.0
    %2488 = vmatpush.xpose.msra.mxu0 0.0
    %2489 = vmatpush.xpose.msra.mxu0 0.0
    %2490 = vmatpush.xpose.msra.mxu0 0.0
    %2491 = vmatpush.xpose.msra.mxu0 0.0
    %2492 = vmatpush.xpose.msra.mxu0 0.0
    %2493 = vmatpush.xpose.msra.mxu0 %v2369
    %2494 = vmatmul.f32.gmra.mxu0 %v2476
    %v2495 = vpop.f32.mrf.mxu0
    %v2496 = vadd.f32 0.0, %v2495
    %2497 = vdwg.mxu0
    %v2499 = vsel %vm402, %v2221, 0
    %2501 = vmatpush.xpose.msra.mxu0 0.0
    %2502 = vmatpush.xpose.msra.mxu0 0.0
    %2503 = vmatpush.xpose.msra.mxu0 0.0
    %2504 = vmatpush.xpose.msra.mxu0 0.0
    %2505 = vmatpush.xpose.msra.mxu0 0.0
    %2506 = vmatpush.xpose.msra.mxu0 0.0
    %2507 = vmatpush.xpose.msra.mxu0 0.0
    %2508 = vmatpush.xpose.msra.mxu0 0.0
    %2509 = vmatpush.xpose.msra.mxu0 0.0
    %2510 = vmatpush.xpose.msra.mxu0 0.0
    %2511 = vmatpush.xpose.msra.mxu0 0.0
    %2512 = vmatpush.xpose.msra.mxu0 0.0
    %2513 = vmatpush.xpose.msra.mxu0 0.0
    %2514 = vmatpush.xpose.msra.mxu0 0.0
    %2515 = vmatpush.xpose.msra.mxu0 0.0
    %2516 = vmatpush.xpose.msra.mxu0 %v2395
    %2517 = vmatmul.f32.gmra.mxu0 %v2499
    %v2518 = vpop.f32.mrf.mxu0
    %v2519 = vadd.f32 0.0, %v2518
    %2520 = vdwg.mxu0
    %vm2521 = vcmp.gt.f32.partialorder %v2450, 0.0
    %vm2522 = vcmp.gt.f32.partialorder %v2473, 0.0
    %vm2523 = vcmp.gt.f32.partialorder %v2496, 0.0
    %vm2524 = vcmp.gt.f32.partialorder %v2519, 0.0
    %v2525 = vsel %vm2521, 1, 0
    %v2526 = vsel %vm2522, 1, 0
    %v2527 = vsel %vm2523, 1, 0
    %v2528 = vsel %vm2524, 1, 0
    %v2529 = vcvt.s32.f32 %v2525
    %v2530 = vcvt.s32.f32 %v2526
    %v2531 = vcvt.s32.f32 %v2527
    %v2532 = vcvt.s32.f32 %v2528
    %v2534 = vsel %vm623, %v2425, 0
    %2536 = vmatpush.msra.mxu0 0.0
    %2537 = vmatpush.msra.mxu0 0.0
    %2538 = vmatpush.msra.mxu0 0.0
    %2539 = vmatpush.msra.mxu0 0.0
    %2540 = vmatpush.msra.mxu0 0.0
    %2541 = vmatpush.msra.mxu0 0.0
    %2542 = vmatpush.msra.mxu0 0.0
    %2543 = vmatpush.msra.mxu0 0.0
    %2544 = vmatpush.msra.mxu0 0.0
    %2545 = vmatpush.msra.mxu0 0.0
    %2546 = vmatpush.msra.mxu0 0.0
    %2547 = vmatpush.msra.mxu0 0.0
    %2548 = vmatpush.msra.mxu0 0.0
    %2549 = vmatpush.msra.mxu0 0.0
    %2550 = vmatpush.msra.mxu0 0.0
    %2551 = vmatpush.msra.mxu0 %v2309
    %2552 = vmatmul.f32.gmra.mxu0 %v2534
    %v2553 = vpop.f32.mrf.mxu0
    %v2554 = vadd.f32 0.0, %v2553
    %2555 = vdwg.mxu0
    %v2557 = vsel %vm623, %v2426, 0
    %2559 = vmatpush.msra.mxu0 0.0
    %2560 = vmatpush.msra.mxu0 0.0
    %2561 = vmatpush.msra.mxu0 0.0
    %2562 = vmatpush.msra.mxu0 0.0
    %2563 = vmatpush.msra.mxu0 0.0
    %2564 = vmatpush.msra.mxu0 0.0
    %2565 = vmatpush.msra.mxu0 0.0
    %2566 = vmatpush.msra.mxu0 0.0
    %2567 = vmatpush.msra.mxu0 0.0
    %2568 = vmatpush.msra.mxu0 0.0
    %2569 = vmatpush.msra.mxu0 0.0
    %2570 = vmatpush.msra.mxu0 0.0
    %2571 = vmatpush.msra.mxu0 0.0
    %2572 = vmatpush.msra.mxu0 0.0
    %2573 = vmatpush.msra.mxu0 0.0
    %2574 = vmatpush.msra.mxu0 %v2310
    %2575 = vmatmul.f32.gmra.mxu0 %v2557
    %v2576 = vpop.f32.mrf.mxu0
    %v2577 = vadd.f32 0.0, %v2576
    %2578 = vdwg.mxu0
    %v2580 = vsel %vm623, %v2427, 0
    %2582 = vmatpush.msra.mxu0 0.0
    %2583 = vmatpush.msra.mxu0 0.0
    %2584 = vmatpush.msra.mxu0 0.0
    %2585 = vmatpush.msra.mxu0 0.0
    %2586 = vmatpush.msra.mxu0 0.0
    %2587 = vmatpush.msra.mxu0 0.0
    %2588 = vmatpush.msra.mxu0 0.0
    %2589 = vmatpush.msra.mxu0 0.0
    %2590 = vmatpush.msra.mxu0 0.0
    %2591 = vmatpush.msra.mxu0 0.0
    %2592 = vmatpush.msra.mxu0 0.0
    %2593 = vmatpush.msra.mxu0 0.0
    %2594 = vmatpush.msra.mxu0 0.0
    %2595 = vmatpush.msra.mxu0 0.0
    %2596 = vmatpush.msra.mxu0 0.0
    %2597 = vmatpush.msra.mxu0 %v2311
    %2598 = vmatmul.f32.gmra.mxu0 %v2580
    %v2599 = vpop.f32.mrf.mxu0
    %v2600 = vadd.f32 0.0, %v2599
    %2601 = vdwg.mxu0
    %v2603 = vsel %vm623, %v2428, 0
    %2605 = vmatpush.msra.mxu0 0.0
    %2606 = vmatpush.msra.mxu0 0.0
    %2607 = vmatpush.msra.mxu0 0.0
    %2608 = vmatpush.msra.mxu0 0.0
    %2609 = vmatpush.msra.mxu0 0.0
    %2610 = vmatpush.msra.mxu0 0.0
    %2611 = vmatpush.msra.mxu0 0.0
    %2612 = vmatpush.msra.mxu0 0.0
    %2613 = vmatpush.msra.mxu0 0.0
    %2614 = vmatpush.msra.mxu0 0.0
    %2615 = vmatpush.msra.mxu0 0.0
    %2616 = vmatpush.msra.mxu0 0.0
    %2617 = vmatpush.msra.mxu0 0.0
    %2618 = vmatpush.msra.mxu0 0.0
    %2619 = vmatpush.msra.mxu0 0.0
    %2620 = vmatpush.msra.mxu0 %v2312
    %2621 = vmatmul.f32.gmra.mxu0 %v2603
    %v2622 = vpop.f32.mrf.mxu0
    %v2623 = vadd.f32 0.0, %v2622
    %2624 = vdwg.mxu0
    %v2625 = vcvt.f32.s32.ties.to.even %v2554
    %v2626 = vcvt.f32.s32.ties.to.even %v2577
    %v2627 = vcvt.f32.s32.ties.to.even %v2600
    %v2628 = vcvt.f32.s32.ties.to.even %v2623
    %v2629 = vand.u32 %v2625, 15
    %v2630 = vand.u32 %v2626, 15
    %v2631 = vand.u32 %v2627, 15
    %v2632 = vand.u32 %v2628, 15
    %v2634 = vsel %vm623, %v2529, 0
    %2636 = vmatpush.msra.mxu0 0.0
    %2637 = vmatpush.msra.mxu0 0.0
    %2638 = vmatpush.msra.mxu0 0.0
    %2639 = vmatpush.msra.mxu0 0.0
    %2640 = vmatpush.msra.mxu0 0.0
    %2641 = vmatpush.msra.mxu0 0.0
    %2642 = vmatpush.msra.mxu0 0.0
    %2643 = vmatpush.msra.mxu0 0.0
    %2644 = vmatpush.msra.mxu0 0.0
    %2645 = vmatpush.msra.mxu0 0.0
    %2646 = vmatpush.msra.mxu0 0.0
    %2647 = vmatpush.msra.mxu0 0.0
    %2648 = vmatpush.msra.mxu0 0.0
    %2649 = vmatpush.msra.mxu0 0.0
    %2650 = vmatpush.msra.mxu0 0.0
    %2651 = vmatpush.msra.mxu0 %v2309
    %2652 = vmatmul.f32.gmra.mxu0 %v2634
    %v2653 = vpop.f32.mrf.mxu0
    %v2654 = vadd.f32 0.0, %v2653
    %2655 = vdwg.mxu0
    %v2657 = vsel %vm623, %v2530, 0
    %2659 = vmatpush.msra.mxu0 0.0
    %2660 = vmatpush.msra.mxu0 0.0
    %2661 = vmatpush.msra.mxu0 0.0
    %2662 = vmatpush.msra.mxu0 0.0
    %2663 = vmatpush.msra.mxu0 0.0
    %2664 = vmatpush.msra.mxu0 0.0
    %2665 = vmatpush.msra.mxu0 0.0
    %2666 = vmatpush.msra.mxu0 0.0
    %2667 = vmatpush.msra.mxu0 0.0
    %2668 = vmatpush.msra.mxu0 0.0
    %2669 = vmatpush.msra.mxu0 0.0
    %2670 = vmatpush.msra.mxu0 0.0
    %2671 = vmatpush.msra.mxu0 0.0
    %2672 = vmatpush.msra.mxu0 0.0
    %2673 = vmatpush.msra.mxu0 0.0
    %2674 = vmatpush.msra.mxu0 %v2310
    %2675 = vmatmul.f32.gmra.mxu0 %v2657
    %v2676 = vpop.f32.mrf.mxu0
    %v2677 = vadd.f32 0.0, %v2676
    %2678 = vdwg.mxu0
    %v2680 = vsel %vm623, %v2531, 0
    %2682 = vmatpush.msra.mxu0 0.0
    %2683 = vmatpush.msra.mxu0 0.0
    %2684 = vmatpush.msra.mxu0 0.0
    %2685 = vmatpush.msra.mxu0 0.0
    %2686 = vmatpush.msra.mxu0 0.0
    %2687 = vmatpush.msra.mxu0 0.0
    %2688 = vmatpush.msra.mxu0 0.0
    %2689 = vmatpush.msra.mxu0 0.0
    %2690 = vmatpush.msra.mxu0 0.0
    %2691 = vmatpush.msra.mxu0 0.0
    %2692 = vmatpush.msra.mxu0 0.0
    %2693 = vmatpush.msra.mxu0 0.0
    %2694 = vmatpush.msra.mxu0 0.0
    %2695 = vmatpush.msra.mxu0 0.0
    %2696 = vmatpush.msra.mxu0 0.0
    %2697 = vmatpush.msra.mxu0 %v2311
    %2698 = vmatmul.f32.gmra.mxu0 %v2680
    %v2699 = vpop.f32.mrf.mxu0
    %v2700 = vadd.f32 0.0, %v2699
    %2701 = vdwg.mxu0
    %v2703 = vsel %vm623, %v2532, 0
    %2705 = vmatpush.msra.mxu0 0.0
    %2706 = vmatpush.msra.mxu0 0.0
    %2707 = vmatpush.msra.mxu0 0.0
    %2708 = vmatpush.msra.mxu0 0.0
    %2709 = vmatpush.msra.mxu0 0.0
    %2710 = vmatpush.msra.mxu0 0.0
    %2711 = vmatpush.msra.mxu0 0.0
    %2712 = vmatpush.msra.mxu0 0.0
    %2713 = vmatpush.msra.mxu0 0.0
    %2714 = vmatpush.msra.mxu0 0.0
    %2715 = vmatpush.msra.mxu0 0.0
    %2716 = vmatpush.msra.mxu0 0.0
    %2717 = vmatpush.msra.mxu0 0.0
    %2718 = vmatpush.msra.mxu0 0.0
    %2719 = vmatpush.msra.mxu0 0.0
    %2720 = vmatpush.msra.mxu0 %v2312
    %2721 = vmatmul.f32.gmra.mxu0 %v2703
    %v2722 = vpop.f32.mrf.mxu0
    %v2723 = vadd.f32 0.0, %v2722
    %2724 = vdwg.mxu0
    %v2725 = vcvt.f32.s32.ties.to.even %v2654
    %v2726 = vcvt.f32.s32.ties.to.even %v2677
    %v2727 = vcvt.f32.s32.ties.to.even %v2700
    %v2728 = vcvt.f32.s32.ties.to.even %v2723
    %v2729 = vand.u32 %v2725, 15
    %v2730 = vand.u32 %v2726, 15
    %v2731 = vand.u32 %v2727, 15
    %v2732 = vand.u32 %v2728, 15
    %v2733 = vrot.slane %v2629, 1
    %v2734 = vrot.slane %v2629, 2
    %v2735 = vrot.slane %v2629, 3
    %v2736 = vrot.slane %v2629, 4
    %v2737 = vrot.slane %v2629, 5
    %v2738 = vrot.slane %v2629, 6
    %v2739 = vrot.slane %v2629, 7
    %v2740 = vrot.slane %v2630, 1
    %v2741 = vrot.slane %v2630, 2
    %v2742 = vrot.slane %v2630, 3
    %v2743 = vrot.slane %v2630, 4
    %v2744 = vrot.slane %v2630, 5
    %v2745 = vrot.slane %v2630, 6
    %v2746 = vrot.slane %v2630, 7
    %v2747 = vrot.slane %v2631, 1
    %v2748 = vrot.slane %v2631, 2
    %v2749 = vrot.slane %v2631, 3
    %v2750 = vrot.slane %v2631, 4
    %v2751 = vrot.slane %v2631, 5
    %v2752 = vrot.slane %v2631, 6
    %v2753 = vrot.slane %v2631, 7
    %v2754 = vrot.slane %v2632, 1
    %v2755 = vrot.slane %v2632, 2
    %v2756 = vrot.slane %v2632, 3
    %v2757 = vrot.slane %v2632, 4
    %v2758 = vrot.slane %v2632, 5
    %v2759 = vrot.slane %v2632, 6
    %v2760 = vrot.slane %v2632, 7
    %v2761 = vperm.slane %v2629, 0
    %v2762 = vperm.slane %v2733, 0
    %v2763 = vperm.slane %v2734, 0
    %v2764 = vperm.slane %v2735, 0
    %v2765 = vperm.slane %v2736, 0
    %v2766 = vperm.slane %v2737, 0
    %v2767 = vperm.slane %v2738, 0
    %v2768 = vperm.slane %v2739, 0
    %v2769 = vperm.slane %v2630, 0
    %v2770 = vperm.slane %v2740, 0
    %v2771 = vperm.slane %v2741, 0
    %v2772 = vperm.slane %v2742, 0
    %v2773 = vperm.slane %v2743, 0
    %v2774 = vperm.slane %v2744, 0
    %v2775 = vperm.slane %v2745, 0
    %v2776 = vperm.slane %v2746, 0
    %v2777 = vperm.slane %v2631, 0
    %v2778 = vperm.slane %v2747, 0
    %v2779 = vperm.slane %v2748, 0
    %v2780 = vperm.slane %v2749, 0
    %v2781 = vperm.slane %v2750, 0
    %v2782 = vperm.slane %v2751, 0
    %v2783 = vperm.slane %v2752, 0
    %v2784 = vperm.slane %v2753, 0
    %v2785 = vperm.slane %v2632, 0
    %v2786 = vperm.slane %v2754, 0
    %v2787 = vperm.slane %v2755, 0
    %v2788 = vperm.slane %v2756, 0
    %v2789 = vperm.slane %v2757, 0
    %v2790 = vperm.slane %v2758, 0
    %v2791 = vperm.slane %v2759, 0
    %v2792 = vperm.slane %v2760, 0
    %vm2793 = vcmp.eq.s32.totalorder %v2761, %v2729
    %vm2794 = vcmp.eq.s32.totalorder %v2762, %v2729
    %vm2795 = vcmp.eq.s32.totalorder %v2763, %v2729
    %vm2796 = vcmp.eq.s32.totalorder %v2764, %v2729
    %vm2797 = vcmp.eq.s32.totalorder %v2765, %v2729
    %vm2798 = vcmp.eq.s32.totalorder %v2766, %v2729
    %vm2799 = vcmp.eq.s32.totalorder %v2767, %v2729
    %vm2800 = vcmp.eq.s32.totalorder %v2768, %v2729
    %vm2801 = vcmp.eq.s32.totalorder %v2769, %v2730
    %vm2802 = vcmp.eq.s32.totalorder %v2770, %v2730
    %vm2803 = vcmp.eq.s32.totalorder %v2771, %v2730
    %vm2804 = vcmp.eq.s32.totalorder %v2772, %v2730
    %vm2805 = vcmp.eq.s32.totalorder %v2773, %v2730
    %vm2806 = vcmp.eq.s32.totalorder %v2774, %v2730
    %vm2807 = vcmp.eq.s32.totalorder %v2775, %v2730
    %vm2808 = vcmp.eq.s32.totalorder %v2776, %v2730
    %vm2809 = vcmp.eq.s32.totalorder %v2777, %v2731
    %vm2810 = vcmp.eq.s32.totalorder %v2778, %v2731
    %vm2811 = vcmp.eq.s32.totalorder %v2779, %v2731
    %vm2812 = vcmp.eq.s32.totalorder %v2780, %v2731
    %vm2813 = vcmp.eq.s32.totalorder %v2781, %v2731
    %vm2814 = vcmp.eq.s32.totalorder %v2782, %v2731
    %vm2815 = vcmp.eq.s32.totalorder %v2783, %v2731
    %vm2816 = vcmp.eq.s32.totalorder %v2784, %v2731
    %vm2817 = vcmp.eq.s32.totalorder %v2785, %v2732
    %vm2818 = vcmp.eq.s32.totalorder %v2786, %v2732
    %vm2819 = vcmp.eq.s32.totalorder %v2787, %v2732
    %vm2820 = vcmp.eq.s32.totalorder %v2788, %v2732
    %vm2821 = vcmp.eq.s32.totalorder %v2789, %v2732
    %vm2822 = vcmp.eq.s32.totalorder %v2790, %v2732
    %vm2823 = vcmp.eq.s32.totalorder %v2791, %v2732
    %vm2824 = vcmp.eq.s32.totalorder %v2792, %v2732
    %v2825 = vsel %vm2793, 1, 0
    %v2826 = vsel %vm2794, 1, 0
    %v2827 = vsel %vm2795, 1, 0
    %v2828 = vsel %vm2796, 1, 0
    %v2829 = vsel %vm2797, 1, 0
    %v2830 = vsel %vm2798, 1, 0
    %v2831 = vsel %vm2799, 1, 0
    %v2832 = vsel %vm2800, 1, 0
    %v2833 = vsel %vm2801, 1, 0
    %v2834 = vsel %vm2802, 1, 0
    %v2835 = vsel %vm2803, 1, 0
    %v2836 = vsel %vm2804, 1, 0
    %v2837 = vsel %vm2805, 1, 0
    %v2838 = vsel %vm2806, 1, 0
    %v2839 = vsel %vm2807, 1, 0
    %v2840 = vsel %vm2808, 1, 0
    %v2841 = vsel %vm2809, 1, 0
    %v2842 = vsel %vm2810, 1, 0
    %v2843 = vsel %vm2811, 1, 0
    %v2844 = vsel %vm2812, 1, 0
    %v2845 = vsel %vm2813, 1, 0
    %v2846 = vsel %vm2814, 1, 0
    %v2847 = vsel %vm2815, 1, 0
    %v2848 = vsel %vm2816, 1, 0
    %v2849 = vsel %vm2817, 1, 0
    %v2850 = vsel %vm2818, 1, 0
    %v2851 = vsel %vm2819, 1, 0
    %v2852 = vsel %vm2820, 1, 0
    %v2853 = vsel %vm2821, 1, 0
    %v2854 = vsel %vm2822, 1, 0
    %v2855 = vsel %vm2823, 1, 0
    %v2856 = vsel %vm2824, 1, 0
    %v2857 = vcvt.s32.f32 %v2825
    %v2858 = vcvt.s32.f32 %v2826
    %v2859 = vcvt.s32.f32 %v2827
    %v2860 = vcvt.s32.f32 %v2828
    %v2861 = vcvt.s32.f32 %v2829
    %v2862 = vcvt.s32.f32 %v2830
    %v2863 = vcvt.s32.f32 %v2831
    %v2864 = vcvt.s32.f32 %v2832
    %v2865 = vcvt.s32.f32 %v2833
    %v2866 = vcvt.s32.f32 %v2834
    %v2867 = vcvt.s32.f32 %v2835
    %v2868 = vcvt.s32.f32 %v2836
    %v2869 = vcvt.s32.f32 %v2837
    %v2870 = vcvt.s32.f32 %v2838
    %v2871 = vcvt.s32.f32 %v2839
    %v2872 = vcvt.s32.f32 %v2840
    %v2873 = vcvt.s32.f32 %v2841
    %v2874 = vcvt.s32.f32 %v2842
    %v2875 = vcvt.s32.f32 %v2843
    %v2876 = vcvt.s32.f32 %v2844
    %v2877 = vcvt.s32.f32 %v2845
    %v2878 = vcvt.s32.f32 %v2846
    %v2879 = vcvt.s32.f32 %v2847
    %v2880 = vcvt.s32.f32 %v2848
    %v2881 = vcvt.s32.f32 %v2849
    %v2882 = vcvt.s32.f32 %v2850
    %v2883 = vcvt.s32.f32 %v2851
    %v2884 = vcvt.s32.f32 %v2852
    %v2885 = vcvt.s32.f32 %v2853
    %v2886 = vcvt.s32.f32 %v2854
    %v2887 = vcvt.s32.f32 %v2855
    %v2888 = vcvt.s32.f32 %v2856
    %v2889 = vsel %vm980, %v2857, 0.0
    %2890 = vadd.xlane.f32.xlu0 %v2889
    %v2891 = vpop.xlane.xlu0 %2890
    %v2892 = vsel %vm980, %v2858, 0.0
    %2893 = vadd.xlane.f32.xlu0 %v2892
    %v2894 = vpop.xlane.xlu0 %2893
    %v2895 = vsel %vm980, %v2859, 0.0
    %2896 = vadd.xlane.f32.xlu0 %v2895
    %v2897 = vpop.xlane.xlu0 %2896
    %v2898 = vsel %vm980, %v2860, 0.0
    %2899 = vadd.xlane.f32.xlu0 %v2898
    %v2900 = vpop.xlane.xlu0 %2899
    %v2901 = vsel %vm980, %v2861, 0.0
    %2902 = vadd.xlane.f32.xlu0 %v2901
    %v2903 = vpop.xlane.xlu0 %2902
    %v2904 = vsel %vm980, %v2862, 0.0
    %2905 = vadd.xlane.f32.xlu0 %v2904
    %v2906 = vpop.xlane.xlu0 %2905
    %v2907 = vsel %vm980, %v2863, 0.0
    %2908 = vadd.xlane.f32.xlu0 %v2907
    %v2909 = vpop.xlane.xlu0 %2908
    %v2910 = vsel %vm980, %v2864, 0.0
    %2911 = vadd.xlane.f32.xlu0 %v2910
    %v2912 = vpop.xlane.xlu0 %2911
    %v2913 = vsel %vm980, %v2865, 0.0
    %2914 = vadd.xlane.f32.xlu0 %v2913
    %v2915 = vpop.xlane.xlu0 %2914
    %v2916 = vsel %vm980, %v2866, 0.0
    %2917 = vadd.xlane.f32.xlu0 %v2916
    %v2918 = vpop.xlane.xlu0 %2917
    %v2919 = vsel %vm980, %v2867, 0.0
    %2920 = vadd.xlane.f32.xlu0 %v2919
    %v2921 = vpop.xlane.xlu0 %2920
    %v2922 = vsel %vm980, %v2868, 0.0
    %2923 = vadd.xlane.f32.xlu0 %v2922
    %v2924 = vpop.xlane.xlu0 %2923
    %v2925 = vsel %vm980, %v2869, 0.0
    %2926 = vadd.xlane.f32.xlu0 %v2925
    %v2927 = vpop.xlane.xlu0 %2926
    %v2928 = vsel %vm980, %v2870, 0.0
    %2929 = vadd.xlane.f32.xlu0 %v2928
    %v2930 = vpop.xlane.xlu0 %2929
    %v2931 = vsel %vm980, %v2871, 0.0
    %2932 = vadd.xlane.f32.xlu0 %v2931
    %v2933 = vpop.xlane.xlu0 %2932
    %v2934 = vsel %vm980, %v2872, 0.0
    %2935 = vadd.xlane.f32.xlu0 %v2934
    %v2936 = vpop.xlane.xlu0 %2935
    %v2937 = vsel %vm980, %v2873, 0.0
    %2938 = vadd.xlane.f32.xlu0 %v2937
    %v2939 = vpop.xlane.xlu0 %2938
    %v2940 = vsel %vm980, %v2874, 0.0
    %2941 = vadd.xlane.f32.xlu0 %v2940
    %v2942 = vpop.xlane.xlu0 %2941
    %v2943 = vsel %vm980, %v2875, 0.0
    %2944 = vadd.xlane.f32.xlu0 %v2943
    %v2945 = vpop.xlane.xlu0 %2944
    %v2946 = vsel %vm980, %v2876, 0.0
    %2947 = vadd.xlane.f32.xlu0 %v2946
    %v2948 = vpop.xlane.xlu0 %2947
    %v2949 = vsel %vm980, %v2877, 0.0
    %2950 = vadd.xlane.f32.xlu0 %v2949
    %v2951 = vpop.xlane.xlu0 %2950
    %v2952 = vsel %vm980, %v2878, 0.0
    %2953 = vadd.xlane.f32.xlu0 %v2952
    %v2954 = vpop.xlane.xlu0 %2953
    %v2955 = vsel %vm980, %v2879, 0.0
    %2956 = vadd.xlane.f32.xlu0 %v2955
    %v2957 = vpop.xlane.xlu0 %2956
    %v2958 = vsel %vm980, %v2880, 0.0
    %2959 = vadd.xlane.f32.xlu0 %v2958
    %v2960 = vpop.xlane.xlu0 %2959
    %v2961 = vsel %vm980, %v2881, 0.0
    %2962 = vadd.xlane.f32.xlu0 %v2961
    %v2963 = vpop.xlane.xlu0 %2962
    %v2964 = vsel %vm980, %v2882, 0.0
    %2965 = vadd.xlane.f32.xlu0 %v2964
    %v2966 = vpop.xlane.xlu0 %2965
    %v2967 = vsel %vm980, %v2883, 0.0
    %2968 = vadd.xlane.f32.xlu0 %v2967
    %v2969 = vpop.xlane.xlu0 %2968
    %v2970 = vsel %vm980, %v2884, 0.0
    %2971 = vadd.xlane.f32.xlu0 %v2970
    %v2972 = vpop.xlane.xlu0 %2971
    %v2973 = vsel %vm980, %v2885, 0.0
    %2974 = vadd.xlane.f32.xlu0 %v2973
    %v2975 = vpop.xlane.xlu0 %2974
    %v2976 = vsel %vm980, %v2886, 0.0
    %2977 = vadd.xlane.f32.xlu0 %v2976
    %v2978 = vpop.xlane.xlu0 %2977
    %v2979 = vsel %vm980, %v2887, 0.0
    %2980 = vadd.xlane.f32.xlu0 %v2979
    %v2981 = vpop.xlane.xlu0 %2980
    %v2982 = vsel %vm980, %v2888, 0.0
    %2983 = vadd.xlane.f32.xlu0 %v2982
    %v2984 = vpop.xlane.xlu0 %2983
    %vm2985 = vcmp.gt.f32.partialorder %v2891, 0.0
    %vm2986 = vcmp.gt.f32.partialorder %v2894, 0.0
    %vm2987 = vcmp.gt.f32.partialorder %v2897, 0.0
    %vm2988 = vcmp.gt.f32.partialorder %v2900, 0.0
    %vm2989 = vcmp.gt.f32.partialorder %v2903, 0.0
    %vm2990 = vcmp.gt.f32.partialorder %v2906, 0.0
    %vm2991 = vcmp.gt.f32.partialorder %v2909, 0.0
    %vm2992 = vcmp.gt.f32.partialorder %v2912, 0.0
    %vm2993 = vcmp.gt.f32.partialorder %v2915, 0.0
    %vm2994 = vcmp.gt.f32.partialorder %v2918, 0.0
    %vm2995 = vcmp.gt.f32.partialorder %v2921, 0.0
    %vm2996 = vcmp.gt.f32.partialorder %v2924, 0.0
    %vm2997 = vcmp.gt.f32.partialorder %v2927, 0.0
    %vm2998 = vcmp.gt.f32.partialorder %v2930, 0.0
    %vm2999 = vcmp.gt.f32.partialorder %v2933, 0.0
    %vm3000 = vcmp.gt.f32.partialorder %v2936, 0.0
    %vm3001 = vcmp.gt.f32.partialorder %v2939, 0.0
    %vm3002 = vcmp.gt.f32.partialorder %v2942, 0.0
    %vm3003 = vcmp.gt.f32.partialorder %v2945, 0.0
    %vm3004 = vcmp.gt.f32.partialorder %v2948, 0.0
    %vm3005 = vcmp.gt.f32.partialorder %v2951, 0.0
    %vm3006 = vcmp.gt.f32.partialorder %v2954, 0.0
    %vm3007 = vcmp.gt.f32.partialorder %v2957, 0.0
    %vm3008 = vcmp.gt.f32.partialorder %v2960, 0.0
    %vm3009 = vcmp.gt.f32.partialorder %v2963, 0.0
    %vm3010 = vcmp.gt.f32.partialorder %v2966, 0.0
    %vm3011 = vcmp.gt.f32.partialorder %v2969, 0.0
    %vm3012 = vcmp.gt.f32.partialorder %v2972, 0.0
    %vm3013 = vcmp.gt.f32.partialorder %v2975, 0.0
    %vm3014 = vcmp.gt.f32.partialorder %v2978, 0.0
    %vm3015 = vcmp.gt.f32.partialorder %v2981, 0.0
    %vm3016 = vcmp.gt.f32.partialorder %v2984, 0.0
    %3017 = vmatpush.xpose.msra.mxu0 0.0
    %3018 = vmatpush.xpose.msra.mxu0 0.0
    %3019 = vmatpush.xpose.msra.mxu0 0.0
    %3020 = vmatpush.xpose.msra.mxu0 0.0
    %3021 = vmatpush.xpose.msra.mxu0 0.0
    %3022 = vmatpush.xpose.msra.mxu0 0.0
    %3023 = vmatpush.xpose.msra.mxu0 0.0
    %3024 = vmatpush.xpose.msra.mxu0 0.0
    %3025 = vmatpush.xpose.msra.mxu0 0.0
    %3026 = vmatpush.xpose.msra.mxu0 0.0
    %3027 = vmatpush.xpose.msra.mxu0 0.0
    %3028 = vmatpush.xpose.msra.mxu0 0.0
    %3029 = vmatpush.xpose.msra.mxu0 0.0
    %3030 = vmatpush.xpose.msra.mxu0 0.0
    %3031 = vmatpush.xpose.msra.mxu0 0.0
    %3032 = vmatpush.xpose.msra.mxu0 %v2430
    %3033 = vmatmul.f32.gmra.mxu0 %v2314
    %v3034 = vpop.f32.mrf.mxu0
    %v3035 = vadd.f32 0.0, %v3034
    %3036 = vdwg.mxu0
    %3037 = vmatpush.xpose.msra.mxu0 0.0
    %3038 = vmatpush.xpose.msra.mxu0 0.0
    %3039 = vmatpush.xpose.msra.mxu0 0.0
    %3040 = vmatpush.xpose.msra.mxu0 0.0
    %3041 = vmatpush.xpose.msra.mxu0 0.0
    %3042 = vmatpush.xpose.msra.mxu0 0.0
    %3043 = vmatpush.xpose.msra.mxu0 0.0
    %3044 = vmatpush.xpose.msra.mxu0 0.0
    %3045 = vmatpush.xpose.msra.mxu0 0.0
    %3046 = vmatpush.xpose.msra.mxu0 0.0
    %3047 = vmatpush.xpose.msra.mxu0 0.0
    %3048 = vmatpush.xpose.msra.mxu0 0.0
    %3049 = vmatpush.xpose.msra.mxu0 0.0
    %3050 = vmatpush.xpose.msra.mxu0 0.0
    %3051 = vmatpush.xpose.msra.mxu0 0.0
    %3052 = vmatpush.xpose.msra.mxu0 %v2453
    %3053 = vmatmul.f32.gmra.mxu0 %v2340
    %v3054 = vpop.f32.mrf.mxu0
    %v3055 = vadd.f32 0.0, %v3054
    %3056 = vdwg.mxu0
    %3057 = vmatpush.xpose.msra.mxu0 0.0
    %3058 = vmatpush.xpose.msra.mxu0 0.0
    %3059 = vmatpush.xpose.msra.mxu0 0.0
    %3060 = vmatpush.xpose.msra.mxu0 0.0
    %3061 = vmatpush.xpose.msra.mxu0 0.0
    %3062 = vmatpush.xpose.msra.mxu0 0.0
    %3063 = vmatpush.xpose.msra.mxu0 0.0
    %3064 = vmatpush.xpose.msra.mxu0 0.0
    %3065 = vmatpush.xpose.msra.mxu0 0.0
    %3066 = vmatpush.xpose.msra.mxu0 0.0
    %3067 = vmatpush.xpose.msra.mxu0 0.0
    %3068 = vmatpush.xpose.msra.mxu0 0.0
    %3069 = vmatpush.xpose.msra.mxu0 0.0
    %3070 = vmatpush.xpose.msra.mxu0 0.0
    %3071 = vmatpush.xpose.msra.mxu0 0.0
    %3072 = vmatpush.xpose.msra.mxu0 %v2476
    %3073 = vmatmul.f32.gmra.mxu0 %v2366
    %v3074 = vpop.f32.mrf.mxu0
    %v3075 = vadd.f32 0.0, %v3074
    %3076 = vdwg.mxu0
    %3077 = vmatpush.xpose.msra.mxu0 0.0
    %3078 = vmatpush.xpose.msra.mxu0 0.0
    %3079 = vmatpush.xpose.msra.mxu0 0.0
    %3080 = vmatpush.xpose.msra.mxu0 0.0
    %3081 = vmatpush.xpose.msra.mxu0 0.0
    %3082 = vmatpush.xpose.msra.mxu0 0.0
    %3083 = vmatpush.xpose.msra.mxu0 0.0
    %3084 = vmatpush.xpose.msra.mxu0 0.0
    %3085 = vmatpush.xpose.msra.mxu0 0.0
    %3086 = vmatpush.xpose.msra.mxu0 0.0
    %3087 = vmatpush.xpose.msra.mxu0 0.0
    %3088 = vmatpush.xpose.msra.mxu0 0.0
    %3089 = vmatpush.xpose.msra.mxu0 0.0
    %3090 = vmatpush.xpose.msra.mxu0 0.0
    %3091 = vmatpush.xpose.msra.mxu0 0.0
    %3092 = vmatpush.xpose.msra.mxu0 %v2499
    %3093 = vmatmul.f32.gmra.mxu0 %v2392
    %v3094 = vpop.f32.mrf.mxu0
    %v3095 = vadd.f32 0.0, %v3094
    %3096 = vdwg.mxu0
    %v3097 = vsel %vm2985, 1, 0
    %v3098 = vsel %vm2986, 1, 0
    %v3099 = vsel %vm2987, 1, 0
    %v3100 = vsel %vm2988, 1, 0
    %v3101 = vsel %vm2989, 1, 0
    %v3102 = vsel %vm2990, 1, 0
    %v3103 = vsel %vm2991, 1, 0
    %v3104 = vsel %vm2992, 1, 0
    %v3105 = vsel %vm2993, 1, 0
    %v3106 = vsel %vm2994, 1, 0
    %v3107 = vsel %vm2995, 1, 0
    %v3108 = vsel %vm2996, 1, 0
    %v3109 = vsel %vm2997, 1, 0
    %v3110 = vsel %vm2998, 1, 0
    %v3111 = vsel %vm2999, 1, 0
    %v3112 = vsel %vm3000, 1, 0
    %v3113 = vsel %vm3001, 1, 0
    %v3114 = vsel %vm3002, 1, 0
    %v3115 = vsel %vm3003, 1, 0
    %v3116 = vsel %vm3004, 1, 0
    %v3117 = vsel %vm3005, 1, 0
    %v3118 = vsel %vm3006, 1, 0
    %v3119 = vsel %vm3007, 1, 0
    %v3120 = vsel %vm3008, 1, 0
    %v3121 = vsel %vm3009, 1, 0
    %v3122 = vsel %vm3010, 1, 0
    %v3123 = vsel %vm3011, 1, 0
    %v3124 = vsel %vm3012, 1, 0
    %v3125 = vsel %vm3013, 1, 0
    %v3126 = vsel %vm3014, 1, 0
    %v3127 = vsel %vm3015, 1, 0
    %v3128 = vsel %vm3016, 1, 0
    %v3129 = vperm.slane %v3097, %v48
    %v3130 = vperm.slane %v3098, %v48
    %v3131 = vperm.slane %v3099, %v48
    %v3132 = vperm.slane %v3100, %v48
    %v3133 = vperm.slane %v3101, %v48
    %v3134 = vperm.slane %v3102, %v48
    %v3135 = vperm.slane %v3103, %v48
    %v3136 = vperm.slane %v3104, %v48
    %v3137 = vperm.slane %v3105, %v48
    %v3138 = vperm.slane %v3106, %v48
    %v3139 = vperm.slane %v3107, %v48
    %v3140 = vperm.slane %v3108, %v48
    %v3141 = vperm.slane %v3109, %v48
    %v3142 = vperm.slane %v3110, %v48
    %v3143 = vperm.slane %v3111, %v48
    %v3144 = vperm.slane %v3112, %v48
    %v3145 = vperm.slane %v3113, %v48
    %v3146 = vperm.slane %v3114, %v48
    %v3147 = vperm.slane %v3115, %v48
    %v3148 = vperm.slane %v3116, %v48
    %v3149 = vperm.slane %v3117, %v48
    %v3150 = vperm.slane %v3118, %v48
    %v3151 = vperm.slane %v3119, %v48
    %v3152 = vperm.slane %v3120, %v48
    %v3153 = vperm.slane %v3121, %v48
    %v3154 = vperm.slane %v3122, %v48
    %v3155 = vperm.slane %v3123, %v48
    %v3156 = vperm.slane %v3124, %v48
    %v3157 = vperm.slane %v3125, %v48
    %v3158 = vperm.slane %v3126, %v48
    %v3159 = vperm.slane %v3127, %v48
    %v3160 = vperm.slane %v3128, %v48
    %v3161 = vsel %vm1255, %v3130, %v3129
    %v3162 = vsel %vm1257, %v3131, %v3161
    %v3163 = vsel %vm1259, %v3132, %v3162
    %v3164 = vsel %vm1261, %v3133, %v3163
    %v3165 = vsel %vm1263, %v3134, %v3164
    %v3166 = vsel %vm1265, %v3135, %v3165
    %v3167 = vsel %vm1267, %v3136, %v3166
    %v3168 = vsel %vm1255, %v3138, %v3137
    %v3169 = vsel %vm1257, %v3139, %v3168
    %v3170 = vsel %vm1259, %v3140, %v3169
    %v3171 = vsel %vm1261, %v3141, %v3170
    %v3172 = vsel %vm1263, %v3142, %v3171
    %v3173 = vsel %vm1265, %v3143, %v3172
    %v3174 = vsel %vm1267, %v3144, %v3173
    %v3175 = vsel %vm1255, %v3146, %v3145
    %v3176 = vsel %vm1257, %v3147, %v3175
    %v3177 = vsel %vm1259, %v3148, %v3176
    %v3178 = vsel %vm1261, %v3149, %v3177
    %v3179 = vsel %vm1263, %v3150, %v3178
    %v3180 = vsel %vm1265, %v3151, %v3179
    %v3181 = vsel %vm1267, %v3152, %v3180
    %v3182 = vsel %vm1255, %v3154, %v3153
    %v3183 = vsel %vm1257, %v3155, %v3182
    %v3184 = vsel %vm1259, %v3156, %v3183
    %v3185 = vsel %vm1261, %v3157, %v3184
    %v3186 = vsel %vm1263, %v3158, %v3185
    %v3187 = vsel %vm1265, %v3159, %v3186
    %v3188 = vsel %vm1267, %v3160, %v3187
    %vm3189 = vcmp.ne.s32.totalorder %v3167, 0
    %vm3190 = vcmp.ne.s32.totalorder %v3174, 0
    %vm3191 = vcmp.ne.s32.totalorder %v3181, 0
    %vm3192 = vcmp.ne.s32.totalorder %v3188, 0
    %vm3193 = vmand %vm1190, %vm3189
    %vm3194 = vmand %vm1190, %vm3190
    %vm3195 = vmand %vm1190, %vm3191
    %vm3196 = vmand %vm1190, %vm3192
    %v3197 = vsel %vm3193, %v3035, 0.0
    %v3198 = vsel %vm3194, %v3055, 0.0
    %v3199 = vsel %vm3195, %v3075, 0.0
    %v3200 = vsel %vm3196, %v3095, 0.0
    %v3201 = vsel %vm1303, %v3197, 0.0
    %v3202 = vsel %vm1303, %v3198, 0.0
    %v3203 = vsel %vm1303, %v3199, 0.0
    %v3204 = vsel %vm1303, %v3200, 0.0
    %3205 = vxpose.xlu0.b32.start [1/16] %v3201, 128
    %3206 = vxpose.xlu0.b32.cont [2/16] 0.0, 128
    %3207 = vxpose.xlu0.b32.cont [3/16] 0.0, 128
    %3208 = vxpose.xlu0.b32.cont [4/16] 0.0, 128
    %3209 = vxpose.xlu0.b32.cont [5/16] 0.0, 128
    %3210 = vxpose.xlu0.b32.cont [6/16] 0.0, 128
    %3211 = vxpose.xlu0.b32.cont [7/16] 0.0, 128
    %3212 = vxpose.xlu0.b32.cont [8/16] 0.0, 128
    %3213 = vxpose.xlu0.b32.cont [9/16] 0.0, 128
    %3214 = vxpose.xlu0.b32.cont [10/16] 0.0, 128
    %3215 = vxpose.xlu0.b32.cont [11/16] 0.0, 128
    %3216 = vxpose.xlu0.b32.cont [12/16] 0.0, 128
    %3217 = vxpose.xlu0.b32.cont [13/16] 0.0, 128
    %3218 = vxpose.xlu0.b32.cont [14/16] 0.0, 128
    %3219 = vxpose.xlu0.b32.cont [15/16] 0.0, 128
    %3220 = vxpose.xlu0.b32.end [16/16] 0.0, 128
    %v3221 = vpop.trf.xlu0
    %v3222 = vpop.trf.xlu0
    %v3223 = vpop.trf.xlu0
    %v3224 = vpop.trf.xlu0
    %v3225 = vpop.trf.xlu0
    %v3226 = vpop.trf.xlu0
    %v3227 = vpop.trf.xlu0
    %v3228 = vpop.trf.xlu0
    %v3229 = vpop.trf.xlu0
    %v3230 = vpop.trf.xlu0
    %v3231 = vpop.trf.xlu0
    %v3232 = vpop.trf.xlu0
    %v3233 = vpop.trf.xlu0
    %v3234 = vpop.trf.xlu0
    %v3235 = vpop.trf.xlu0
    %v3236 = vpop.trf.xlu0
    %3237 = vxpose.xlu0.b32.start [1/16] %v3202, 128
    %3238 = vxpose.xlu0.b32.cont [2/16] 0.0, 128
    %3239 = vxpose.xlu0.b32.cont [3/16] 0.0, 128
    %3240 = vxpose.xlu0.b32.cont [4/16] 0.0, 128
    %3241 = vxpose.xlu0.b32.cont [5/16] 0.0, 128
    %3242 = vxpose.xlu0.b32.cont [6/16] 0.0, 128
    %3243 = vxpose.xlu0.b32.cont [7/16] 0.0, 128
    %3244 = vxpose.xlu0.b32.cont [8/16] 0.0, 128
    %3245 = vxpose.xlu0.b32.cont [9/16] 0.0, 128
    %3246 = vxpose.xlu0.b32.cont [10/16] 0.0, 128
    %3247 = vxpose.xlu0.b32.cont [11/16] 0.0, 128
    %3248 = vxpose.xlu0.b32.cont [12/16] 0.0, 128
    %3249 = vxpose.xlu0.b32.cont [13/16] 0.0, 128
    %3250 = vxpose.xlu0.b32.cont [14/16] 0.0, 128
    %3251 = vxpose.xlu0.b32.cont [15/16] 0.0, 128
    %3252 = vxpose.xlu0.b32.end [16/16] 0.0, 128
    %v3253 = vpop.trf.xlu0
    %v3254 = vpop.trf.xlu0
    %v3255 = vpop.trf.xlu0
    %v3256 = vpop.trf.xlu0
    %v3257 = vpop.trf.xlu0
    %v3258 = vpop.trf.xlu0
    %v3259 = vpop.trf.xlu0
    %v3260 = vpop.trf.xlu0
    %v3261 = vpop.trf.xlu0
    %v3262 = vpop.trf.xlu0
    %v3263 = vpop.trf.xlu0
    %v3264 = vpop.trf.xlu0
    %v3265 = vpop.trf.xlu0
    %v3266 = vpop.trf.xlu0
    %v3267 = vpop.trf.xlu0
    %v3268 = vpop.trf.xlu0
    %3269 = vxpose.xlu0.b32.start [1/16] %v3203, 128
    %3270 = vxpose.xlu0.b32.cont [2/16] 0.0, 128
    %3271 = vxpose.xlu0.b32.cont [3/16] 0.0, 128
    %3272 = vxpose.xlu0.b32.cont [4/16] 0.0, 128
    %3273 = vxpose.xlu0.b32.cont [5/16] 0.0, 128
    %3274 = vxpose.xlu0.b32.cont [6/16] 0.0, 128
    %3275 = vxpose.xlu0.b32.cont [7/16] 0.0, 128
    %3276 = vxpose.xlu0.b32.cont [8/16] 0.0, 128
    %3277 = vxpose.xlu0.b32.cont [9/16] 0.0, 128
    %3278 = vxpose.xlu0.b32.cont [10/16] 0.0, 128
    %3279 = vxpose.xlu0.b32.cont [11/16] 0.0, 128
    %3280 = vxpose.xlu0.b32.cont [12/16] 0.0, 128
    %3281 = vxpose.xlu0.b32.cont [13/16] 0.0, 128
    %3282 = vxpose.xlu0.b32.cont [14/16] 0.0, 128
    %3283 = vxpose.xlu0.b32.cont [15/16] 0.0, 128
    %3284 = vxpose.xlu0.b32.end [16/16] 0.0, 128
    %v3285 = vpop.trf.xlu0
    %v3286 = vpop.trf.xlu0
    %v3287 = vpop.trf.xlu0
    %v3288 = vpop.trf.xlu0
    %v3289 = vpop.trf.xlu0
    %v3290 = vpop.trf.xlu0
    %v3291 = vpop.trf.xlu0
    %v3292 = vpop.trf.xlu0
    %v3293 = vpop.trf.xlu0
    %v3294 = vpop.trf.xlu0
    %v3295 = vpop.trf.xlu0
    %v3296 = vpop.trf.xlu0
    %v3297 = vpop.trf.xlu0
    %v3298 = vpop.trf.xlu0
    %v3299 = vpop.trf.xlu0
    %v3300 = vpop.trf.xlu0
    %3301 = vxpose.xlu0.b32.start [1/16] %v3204, 128
    %3302 = vxpose.xlu0.b32.cont [2/16] 0.0, 128
    %3303 = vxpose.xlu0.b32.cont [3/16] 0.0, 128
    %3304 = vxpose.xlu0.b32.cont [4/16] 0.0, 128
    %3305 = vxpose.xlu0.b32.cont [5/16] 0.0, 128
    %3306 = vxpose.xlu0.b32.cont [6/16] 0.0, 128
    %3307 = vxpose.xlu0.b32.cont [7/16] 0.0, 128
    %3308 = vxpose.xlu0.b32.cont [8/16] 0.0, 128
    %3309 = vxpose.xlu0.b32.cont [9/16] 0.0, 128
    %3310 = vxpose.xlu0.b32.cont [10/16] 0.0, 128
    %3311 = vxpose.xlu0.b32.cont [11/16] 0.0, 128
    %3312 = vxpose.xlu0.b32.cont [12/16] 0.0, 128
    %3313 = vxpose.xlu0.b32.cont [13/16] 0.0, 128
    %3314 = vxpose.xlu0.b32.cont [14/16] 0.0, 128
    %3315 = vxpose.xlu0.b32.cont [15/16] 0.0, 128
    %3316 = vxpose.xlu0.b32.end [16/16] 0.0, 128
    %v3317 = vpop.trf.xlu0
    %v3318 = vpop.trf.xlu0
    %v3319 = vpop.trf.xlu0
    %v3320 = vpop.trf.xlu0
    %v3321 = vpop.trf.xlu0
    %v3322 = vpop.trf.xlu0
    %v3323 = vpop.trf.xlu0
    %v3324 = vpop.trf.xlu0
    %v3325 = vpop.trf.xlu0
    %v3326 = vpop.trf.xlu0
    %v3327 = vpop.trf.xlu0
    %v3328 = vpop.trf.xlu0
    %v3329 = vpop.trf.xlu0
    %v3330 = vpop.trf.xlu0
    %v3331 = vpop.trf.xlu0
    %v3332 = vpop.trf.xlu0
    %v3333 = vadd.f32 %v3197, %v3221
    %v3334 = vadd.f32 %v3198, %v3253
    %v3335 = vadd.f32 %v3199, %v3285
    %v3336 = vadd.f32 %v3200, %v3317
    %v3337 = vmul.f32 %v3333, 0.25
    %v3338 = vmul.f32 %v3334, 0.25
    %v3339 = vmul.f32 %v3335, 0.25
    %v3340 = vmul.f32 %v3336, 0.25
    %v3341 = vadd.f32 %v3337, %v1448
    %v3342 = vadd.f32 %v3338, %v1449
    %v3343 = vadd.f32 %v3339, %v1450
    %v3344 = vadd.f32 %v3340, %v1451
    %v3345 = vsel %vm623, %v3341, -inf
    %3346 = vmax.xlane.f32.xlu0 %v3345
    %v3347 = vpop.xlane.xlu0 %3346
    %v3348 = vsel %vm623, %v3342, -inf
    %3349 = vmax.xlane.f32.xlu0 %v3348
    %v3350 = vpop.xlane.xlu0 %3349
    %v3351 = vsel %vm623, %v3343, -inf
    %3352 = vmax.xlane.f32.xlu0 %v3351
    %v3353 = vpop.xlane.xlu0 %3352
    %v3354 = vsel %vm623, %v3344, -inf
    %3355 = vmax.xlane.f32.xlu0 %v3354
    %v3356 = vpop.xlane.xlu0 %3355
    %v3357 = vsub.f32 %v3341, %v3347
    %v3358 = vsub.f32 %v3342, %v3350
    %v3359 = vsub.f32 %v3343, %v3353
    %v3360 = vsub.f32 %v3344, %v3356
    %v3361 = vmul.f32 %v3357, 1.442695
    %v3362 = vpow.pop %v3361
    %v3363 = vmul.f32 %v3358, 1.442695
    %v3364 = vpow.pop %v3363
    %v3365 = vmul.f32 %v3359, 1.442695
    %v3366 = vpow.pop %v3365
    %v3367 = vmul.f32 %v3360, 1.442695
    %v3368 = vpow.pop %v3367
    %v3369 = vsel %vm623, %v3362, 0.0
    %3370 = vadd.xlane.f32.xlu0 %v3369
    %v3371 = vpop.xlane.xlu0 %3370
    %v3372 = vsel %vm623, %v3364, 0.0
    %3373 = vadd.xlane.f32.xlu0 %v3372
    %v3374 = vpop.xlane.xlu0 %3373
    %v3375 = vsel %vm623, %v3366, 0.0
    %3376 = vadd.xlane.f32.xlu0 %v3375
    %v3377 = vpop.xlane.xlu0 %3376
    %v3378 = vsel %vm623, %v3368, 0.0
    %3379 = vadd.xlane.f32.xlu0 %v3378
    %v3380 = vpop.xlane.xlu0 %3379
    %v3381 = vrcp.pop %v3371
    %v3382 = vmul.f32 %v3371, %v3381
    %v3383 = vsub.f32 1.0, %v3382
    %v3384 = vmul.f32 %v3381, %v3383
    %v3385 = vadd.f32 %v3381, %v3384
    %vm3386 = vweird.f32 %v3371
    %vm3387 = vweird.f32 %v3381
    %vm3388 = vmor %vm3386, %vm3387
    %v3389 = vsel %vm3388, %v3381, %v3385
    %v3390 = vand.u32 2147483647, %v3371
    %vm3391 = vcmp.eq.f32.partialorder %v3390, 8.507059e+37
    %v3392 = vand.u32 %v3371, 2147483648
    %v3393 = vor.u32 1.1754944e-38, %v3392
    %v3394 = vsel %vm3391, %v3393, %v3389
    %v3395 = vmul.f32 %v3362, %v3394
    %v3396 = vrcp.pop %v3374
    %v3397 = vmul.f32 %v3374, %v3396
    %v3398 = vsub.f32 1.0, %v3397
    %v3399 = vmul.f32 %v3396, %v3398
    %v3400 = vadd.f32 %v3396, %v3399
    %vm3401 = vweird.f32 %v3374
    %vm3402 = vweird.f32 %v3396
    %vm3403 = vmor %vm3401, %vm3402
    %v3404 = vsel %vm3403, %v3396, %v3400
    %v3405 = vand.u32 2147483647, %v3374
    %vm3406 = vcmp.eq.f32.partialorder %v3405, 8.507059e+37
    %v3407 = vand.u32 %v3374, 2147483648
    %v3408 = vor.u32 1.1754944e-38, %v3407
    %v3409 = vsel %vm3406, %v3408, %v3404
    %v3410 = vmul.f32 %v3364, %v3409
    %v3411 = vrcp.pop %v3377
    %v3412 = vmul.f32 %v3377, %v3411
    %v3413 = vsub.f32 1.0, %v3412
    %v3414 = vmul.f32 %v3411, %v3413
    %v3415 = vadd.f32 %v3411, %v3414
    %vm3416 = vweird.f32 %v3377
    %vm3417 = vweird.f32 %v3411
    %vm3418 = vmor %vm3416, %vm3417
    %v3419 = vsel %vm3418, %v3411, %v3415
    %v3420 = vand.u32 2147483647, %v3377
    %vm3421 = vcmp.eq.f32.partialorder %v3420, 8.507059e+37
    %v3422 = vand.u32 %v3377, 2147483648
    %v3423 = vor.u32 1.1754944e-38, %v3422
    %v3424 = vsel %vm3421, %v3423, %v3419
    %v3425 = vmul.f32 %v3366, %v3424
    %v3426 = vrcp.pop %v3380
    %v3427 = vmul.f32 %v3380, %v3426
    %v3428 = vsub.f32 1.0, %v3427
    %v3429 = vmul.f32 %v3426, %v3428
    %v3430 = vadd.f32 %v3426, %v3429
    %vm3431 = vweird.f32 %v3380
    %vm3432 = vweird.f32 %v3426
    %vm3433 = vmor %vm3431, %vm3432
    %v3434 = vsel %vm3433, %v3426, %v3430
    %v3435 = vand.u32 2147483647, %v3380
    %vm3436 = vcmp.eq.f32.partialorder %v3435, 8.507059e+37
    %v3437 = vand.u32 %v3380, 2147483648
    %v3438 = vor.u32 1.1754944e-38, %v3437
    %v3439 = vsel %vm3436, %v3438, %v3434
    %v3440 = vmul.f32 %v3368, %v3439
    %v3442 = vsel %vm623, %v3395, 0
    %3444 = vmatpush.msra.mxu0 0.0
    %3445 = vmatpush.msra.mxu0 0.0
    %3446 = vmatpush.msra.mxu0 0.0
    %3447 = vmatpush.msra.mxu0 0.0
    %3448 = vmatpush.msra.mxu0 0.0
    %3449 = vmatpush.msra.mxu0 0.0
    %3450 = vmatpush.msra.mxu0 0.0
    %3451 = vmatpush.msra.mxu0 0.0
    %3452 = vmatpush.msra.mxu0 0.0
    %3453 = vmatpush.msra.mxu0 0.0
    %3454 = vmatpush.msra.mxu0 0.0
    %3455 = vmatpush.msra.mxu0 0.0
    %3456 = vmatpush.msra.mxu0 0.0
    %3457 = vmatpush.msra.mxu0 0.0
    %3458 = vmatpush.msra.mxu0 0.0
    %3459 = vmatpush.msra.mxu0 %v2241
    %3460 = vmatmul.f32.gmra.mxu0 %v3442
    %v3461 = vpop.f32.mrf.mxu0
    %v3462 = vadd.f32 0.0, %v3461
    %3463 = vdwg.mxu0
    %v3465 = vsel %vm623, %v3410, 0
    %3467 = vmatpush.msra.mxu0 0.0
    %3468 = vmatpush.msra.mxu0 0.0
    %3469 = vmatpush.msra.mxu0 0.0
    %3470 = vmatpush.msra.mxu0 0.0
    %3471 = vmatpush.msra.mxu0 0.0
    %3472 = vmatpush.msra.mxu0 0.0
    %3473 = vmatpush.msra.mxu0 0.0
    %3474 = vmatpush.msra.mxu0 0.0
    %3475 = vmatpush.msra.mxu0 0.0
    %3476 = vmatpush.msra.mxu0 0.0
    %3477 = vmatpush.msra.mxu0 0.0
    %3478 = vmatpush.msra.mxu0 0.0
    %3479 = vmatpush.msra.mxu0 0.0
    %3480 = vmatpush.msra.mxu0 0.0
    %3481 = vmatpush.msra.mxu0 0.0
    %3482 = vmatpush.msra.mxu0 %v2261
    %3483 = vmatmul.f32.gmra.mxu0 %v3465
    %v3484 = vpop.f32.mrf.mxu0
    %v3485 = vadd.f32 0.0, %v3484
    %3486 = vdwg.mxu0
    %v3488 = vsel %vm623, %v3425, 0
    %3490 = vmatpush.msra.mxu0 0.0
    %3491 = vmatpush.msra.mxu0 0.0
    %3492 = vmatpush.msra.mxu0 0.0
    %3493 = vmatpush.msra.mxu0 0.0
    %3494 = vmatpush.msra.mxu0 0.0
    %3495 = vmatpush.msra.mxu0 0.0
    %3496 = vmatpush.msra.mxu0 0.0
    %3497 = vmatpush.msra.mxu0 0.0
    %3498 = vmatpush.msra.mxu0 0.0
    %3499 = vmatpush.msra.mxu0 0.0
    %3500 = vmatpush.msra.mxu0 0.0
    %3501 = vmatpush.msra.mxu0 0.0
    %3502 = vmatpush.msra.mxu0 0.0
    %3503 = vmatpush.msra.mxu0 0.0
    %3504 = vmatpush.msra.mxu0 0.0
    %3505 = vmatpush.msra.mxu0 %v2281
    %3506 = vmatmul.f32.gmra.mxu0 %v3488
    %v3507 = vpop.f32.mrf.mxu0
    %v3508 = vadd.f32 0.0, %v3507
    %3509 = vdwg.mxu0
    %v3511 = vsel %vm623, %v3440, 0
    %3513 = vmatpush.msra.mxu0 0.0
    %3514 = vmatpush.msra.mxu0 0.0
    %3515 = vmatpush.msra.mxu0 0.0
    %3516 = vmatpush.msra.mxu0 0.0
    %3517 = vmatpush.msra.mxu0 0.0
    %3518 = vmatpush.msra.mxu0 0.0
    %3519 = vmatpush.msra.mxu0 0.0
    %3520 = vmatpush.msra.mxu0 0.0
    %3521 = vmatpush.msra.mxu0 0.0
    %3522 = vmatpush.msra.mxu0 0.0
    %3523 = vmatpush.msra.mxu0 0.0
    %3524 = vmatpush.msra.mxu0 0.0
    %3525 = vmatpush.msra.mxu0 0.0
    %3526 = vmatpush.msra.mxu0 0.0
    %3527 = vmatpush.msra.mxu0 0.0
    %3528 = vmatpush.msra.mxu0 %v2301
    %3529 = vmatmul.f32.gmra.mxu0 %v3511
    %v3530 = vpop.f32.mrf.mxu0
    %v3531 = vadd.f32 0.0, %v3530
    %3532 = vdwg.mxu0
    %s3533 = scalar_lea.vmem %s8, 8
    %v3534 = vld [vmem:[%s3533] sm:$0x3f]
    %s3535 = scalar_lea.vmem %s4, 64
    %v3536 = vld [vmem:[%s3535] sm:$0xff]
    %v3537 = vld [vmem:[%s3535 + $0x8] sm:$0xff]
    %v3538 = vld [vmem:[%s3535 + $0x10] sm:$0xff]
    %v3539 = vld [vmem:[%s3535 + $0x18] sm:$0xff]
    %v3540 = vld [vmem:[%s3535 + $0x20] sm:$0xff]
    %v3541 = vld [vmem:[%s3535 + $0x28] sm:$0xff]
    %v3542 = vld [vmem:[%s3535 + $0x30] sm:$0xff]
    %v3543 = vld [vmem:[%s3535 + $0x38] sm:$0xff]
    %v3545 = vsel %vm402, %v3462, 0
    %3547 = vmatpush.msra.mxu0 0.0
    %3548 = vmatpush.msra.mxu0 0.0
    %3549 = vmatpush.msra.mxu0 0.0
    %3550 = vmatpush.msra.mxu0 0.0
    %3551 = vmatpush.msra.mxu0 0.0
    %3552 = vmatpush.msra.mxu0 0.0
    %3553 = vmatpush.msra.mxu0 0.0
    %3554 = vmatpush.msra.mxu0 0.0
    %3555 = vmatpush.msra.mxu0 0.0
    %3556 = vmatpush.msra.mxu0 0.0
    %3557 = vmatpush.msra.mxu0 0.0
    %3558 = vmatpush.msra.mxu0 0.0
    %3559 = vmatpush.msra.mxu0 0.0
    %3560 = vmatpush.msra.mxu0 0.0
    %3561 = vmatpush.msra.mxu0 %v3537
    %3562 = vmatpush.msra.mxu0 %v3536
    %3563 = vmatmul.f32.gmra.mxu0 %v3545
    %v3564 = vpop.f32.mrf.mxu0
    %v3565 = vadd.f32 0.0, %v3564
    %3566 = vdwg.mxu0
    %v3568 = vsel %vm402, %v3485, 0
    %3570 = vmatpush.msra.mxu0 0.0
    %3571 = vmatpush.msra.mxu0 0.0
    %3572 = vmatpush.msra.mxu0 0.0
    %3573 = vmatpush.msra.mxu0 0.0
    %3574 = vmatpush.msra.mxu0 0.0
    %3575 = vmatpush.msra.mxu0 0.0
    %3576 = vmatpush.msra.mxu0 0.0
    %3577 = vmatpush.msra.mxu0 0.0
    %3578 = vmatpush.msra.mxu0 0.0
    %3579 = vmatpush.msra.mxu0 0.0
    %3580 = vmatpush.msra.mxu0 0.0
    %3581 = vmatpush.msra.mxu0 0.0
    %3582 = vmatpush.msra.mxu0 0.0
    %3583 = vmatpush.msra.mxu0 0.0
    %3584 = vmatpush.msra.mxu0 %v3539
    %3585 = vmatpush.msra.mxu0 %v3538
    %3586 = vmatmul.f32.gmra.mxu0 %v3568
    %v3587 = vpop.f32.mrf.mxu0
    %v3588 = vadd.f32 0.0, %v3587
    %3589 = vdwg.mxu0
    %v3591 = vsel %vm402, %v3508, 0
    %3593 = vmatpush.msra.mxu0 0.0
    %3594 = vmatpush.msra.mxu0 0.0
    %3595 = vmatpush.msra.mxu0 0.0
    %3596 = vmatpush.msra.mxu0 0.0
    %3597 = vmatpush.msra.mxu0 0.0
    %3598 = vmatpush.msra.mxu0 0.0
    %3599 = vmatpush.msra.mxu0 0.0
    %3600 = vmatpush.msra.mxu0 0.0
    %3601 = vmatpush.msra.mxu0 0.0
    %3602 = vmatpush.msra.mxu0 0.0
    %3603 = vmatpush.msra.mxu0 0.0
    %3604 = vmatpush.msra.mxu0 0.0
    %3605 = vmatpush.msra.mxu0 0.0
    %3606 = vmatpush.msra.mxu0 0.0
    %3607 = vmatpush.msra.mxu0 %v3541
    %3608 = vmatpush.msra.mxu0 %v3540
    %3609 = vmatmul.f32.gmra.mxu0 %v3591
    %v3610 = vpop.f32.mrf.mxu0
    %v3611 = vadd.f32 0.0, %v3610
    %3612 = vdwg.mxu0
    %v3614 = vsel %vm402, %v3531, 0
    %3616 = vmatpush.msra.mxu0 0.0
    %3617 = vmatpush.msra.mxu0 0.0
    %3618 = vmatpush.msra.mxu0 0.0
    %3619 = vmatpush.msra.mxu0 0.0
    %3620 = vmatpush.msra.mxu0 0.0
    %3621 = vmatpush.msra.mxu0 0.0
    %3622 = vmatpush.msra.mxu0 0.0
    %3623 = vmatpush.msra.mxu0 0.0
    %3624 = vmatpush.msra.mxu0 0.0
    %3625 = vmatpush.msra.mxu0 0.0
    %3626 = vmatpush.msra.mxu0 0.0
    %3627 = vmatpush.msra.mxu0 0.0
    %3628 = vmatpush.msra.mxu0 0.0
    %3629 = vmatpush.msra.mxu0 0.0
    %3630 = vmatpush.msra.mxu0 %v3543
    %3631 = vmatpush.msra.mxu0 %v3542
    %3632 = vmatmul.f32.gmra.mxu0 %v3614
    %v3633 = vpop.f32.mrf.mxu0
    %v3634 = vadd.f32 0.0, %v3633
    %3635 = vdwg.mxu0
    %v3636 = vadd.f32 %v3565, %v3588
    %v3637 = vadd.f32 %v3611, %v3634
    %v3638 = vperm.slane %v3534, 0
    %v3639 = vadd.f32 %v3636, %v3638
    %v3640 = vadd.f32 %v3637, %v3638
    %v3641 = vadd.f32 %v3639, %v1957
    %v3642 = vadd.f32 %v3640, %v1958
    %v3643 = vsel %vm147, %v3641, 0.0
    %3644 = vadd.xlane.f32.xlu0 %v3643
    %v3645 = vpop.xlane.xlu0 %3644
    %v3646 = vsel %vm147, %v3642, 0.0
    %3647 = vadd.xlane.f32.xlu0 %v3646
    %v3648 = vpop.xlane.xlu0 %3647
    %v3649 = vmul.f32 %v3645, %v1768
    %v3650 = vmul.f32 %v3648, %v1768
    %v3651 = vsub.f32 %v3641, %v3649
    %v3652 = vsub.f32 %v3642, %v3650
    %v3653 = vmul.f32 %v3651, %v3651
    %v3654 = vmul.f32 %v3652, %v3652
    %v3655 = vsel %vm147, %v3653, 0.0
    %3656 = vadd.xlane.f32.xlu0 %v3655
    %v3657 = vpop.xlane.xlu0 %3656
    %v3658 = vsel %vm147, %v3654, 0.0
    %3659 = vadd.xlane.f32.xlu0 %v3658
    %v3660 = vpop.xlane.xlu0 %3659
    %v3661 = vmul.f32 %v3657, %v1768
    %v3662 = vmul.f32 %v3660, %v1768
    %v3663 = vadd.f32 %v3661, 1e-12
    %v3664 = vadd.f32 %v3662, 1e-12
    %v3665 = vrsqrt.pop %v3663
    %v3666 = vmul.f32 %v3665, %v3663
    %v3667 = vmul.f32 %v3666, %v3665
    %v3668 = vmul.f32 0.5, %v3667
    %v3669 = vsub.f32 1.5, %v3668
    %v3670 = vmul.f32 %v3665, %v3669
    %vm3671 = vweird.f32 %v3663
    %vm3672 = vweird.f32 %v3665
    %vm3673 = vmor %vm3671, %vm3672
    %v3674 = vsel %vm3673, %v3665, %v3670
    %v3675 = vrsqrt.pop %v3664
    %v3676 = vmul.f32 %v3675, %v3664
    %v3677 = vmul.f32 %v3676, %v3675
    %v3678 = vmul.f32 0.5, %v3677
    %v3679 = vsub.f32 1.5, %v3678
    %v3680 = vmul.f32 %v3675, %v3679
    %vm3681 = vweird.f32 %v3664
    %vm3682 = vweird.f32 %v3675
    %vm3683 = vmor %vm3681, %vm3682
    %v3684 = vsel %vm3683, %v3675, %v3680
    %v3685 = vmul.f32 %v3651, %v3674
    %v3686 = vmul.f32 %v3652, %v3684
    %v3687 = vperm.slane %v3534, 1
    %v3688 = vmul.f32 %v3685, %v3687
    %v3689 = vmul.f32 %v3686, %v3687
    %v3690 = vperm.slane %v3534, 2
    %v3691 = vadd.f32 %v3688, %v3690
    %v3692 = vadd.f32 %v3689, %v3690
    %s3693 = scalar_lea.vmem %s5, 32
    %v3694 = vld [vmem:[%s3693] sm:$0xff]
    %v3695 = vld [vmem:[%s3693 + $0x8] sm:$0xff]
    %v3696 = vld [vmem:[%s3693 + $0x10] sm:$0xff]
    %v3697 = vld [vmem:[%s3693 + $0x18] sm:$0xff]
    %s3698 = scalar_lea.vmem %s6, 1
    %v3699 = vld [vmem:[%s3698] sm:$0x1]
    %v3701 = vperm.slane %v3699, 0
    %v3704 = vsel %vm147, %v3691, 0
    %v3707 = vsel %vm147, %v3692, 0
    %3709 = vmatpush.msra.mxu0 0.0
    %3710 = vmatpush.msra.mxu0 0.0
    %3711 = vmatpush.msra.mxu0 0.0
    %3712 = vmatpush.msra.mxu0 0.0
    %3713 = vmatpush.msra.mxu0 0.0
    %3714 = vmatpush.msra.mxu0 0.0
    %3715 = vmatpush.msra.mxu0 0.0
    %3716 = vmatpush.msra.mxu0 0.0
    %3717 = vmatpush.msra.mxu0 0.0
    %3718 = vmatpush.msra.mxu0 0.0
    %3719 = vmatpush.msra.mxu0 0.0
    %3720 = vmatpush.msra.mxu0 0.0
    %3721 = vmatpush.msra.mxu0 %v3697
    %3722 = vmatpush.msra.mxu0 %v3696
    %3723 = vmatpush.msra.mxu0 %v3695
    %3724 = vmatpush.msra.mxu0 %v3694
    %3725 = vmatmul.f32.gmra.mxu0 %v3704
    %v3726 = vpop.f32.mrf.mxu0
    %v3727 = vadd.f32 %v3701, %v3726
    %3728 = vmatmul.f32.gmra.mxu0 %v3707
    %v3729 = vpop.f32.mrf.mxu0
    %v3730 = vadd.f32 %v3701, %v3729
    %3731 = vdwg.mxu0
    %v3732 = vmul.f32 %v3727, 0.5
    %v3733 = vmul.f32 %v3730, 0.5
    %v3734 = vmul.f32 %v3727, 0.044715
    %v3735 = vmul.f32 %v3730, 0.044715
    %v3736 = vmul.f32 %v3734, %v3727
    %v3737 = vmul.f32 %v3735, %v3730
    %v3738 = vmul.f32 %v3736, %v3727
    %v3739 = vmul.f32 %v3737, %v3730
    %v3740 = vadd.f32 %v3727, %v3738
    %v3741 = vadd.f32 %v3730, %v3739
    %v3742 = vmul.f32 %v3740, 0.7978846
    %v3743 = vmul.f32 %v3741, 0.7978846
    %v3744 = vtanh.pop %v3742
    %v3745 = vtanh.pop %v3743
    %v3746 = vadd.f32 %v3744, 1.0
    %v3747 = vadd.f32 %v3745, 1.0
    %v3748 = vmul.f32 %v3732, %v3746
    %v3749 = vmul.f32 %v3733, %v3747
    %s3750 = scalar_lea.vmem %s7, 64
    %v3751 = vld [vmem:[%s3750] sm:$0xff]
    %v3752 = vld [vmem:[%s3750 + $0x8] sm:$0xff]
    %v3753 = vld [vmem:[%s3750 + $0x10] sm:$0xff]
    %v3754 = vld [vmem:[%s3750 + $0x18] sm:$0xff]
    %v3755 = vld [vmem:[%s3750 + $0x20] sm:$0xff]
    %v3756 = vld [vmem:[%s3750 + $0x28] sm:$0xff]
    %v3757 = vld [vmem:[%s3750 + $0x30] sm:$0xff]
    %v3758 = vld [vmem:[%s3750 + $0x38] sm:$0xff]
    %v3759 = vperm.slane %v3534, 3
    %v3761 = vsel %vm1877, %v3748, 0
    %v3764 = vsel %vm1877, %v3749, 0
    %3766 = vmatpush.msra.mxu0 0.0
    %3767 = vmatpush.msra.mxu0 0.0
    %3768 = vmatpush.msra.mxu0 0.0
    %3769 = vmatpush.msra.mxu0 0.0
    %3770 = vmatpush.msra.mxu0 0.0
    %3771 = vmatpush.msra.mxu0 0.0
    %3772 = vmatpush.msra.mxu0 0.0
    %3773 = vmatpush.msra.mxu0 0.0
    %3774 = vmatpush.msra.mxu0 %v3758
    %3775 = vmatpush.msra.mxu0 %v3757
    %3776 = vmatpush.msra.mxu0 %v3756
    %3777 = vmatpush.msra.mxu0 %v3755
    %3778 = vmatpush.msra.mxu0 %v3754
    %3779 = vmatpush.msra.mxu0 %v3753
    %3780 = vmatpush.msra.mxu0 %v3752
    %3781 = vmatpush.msra.mxu0 %v3751
    %3782 = vmatmul.f32.gmra.mxu0 %v3761
    %v3783 = vpop.f32.mrf.mxu0
    %v3784 = vadd.f32 %v3759, %v3783
    %3785 = vmatmul.f32.gmra.mxu0 %v3764
    %v3786 = vpop.f32.mrf.mxu0
    %v3787 = vadd.f32 %v3759, %v3786
    %3788 = vdwg.mxu0
    %v3789 = vadd.f32 %v3784, %v3691
    %v3790 = vadd.f32 %v3787, %v3692
    %v3791 = vsel %vm147, %v3789, 0.0
    %3792 = vadd.xlane.f32.xlu0 %v3791
    %v3793 = vpop.xlane.xlu0 %3792
    %v3794 = vsel %vm147, %v3790, 0.0
    %3795 = vadd.xlane.f32.xlu0 %v3794
    %v3796 = vpop.xlane.xlu0 %3795
    %v3797 = vmul.f32 %v3793, %v1768
    %v3798 = vmul.f32 %v3796, %v1768
    %v3799 = vsub.f32 %v3789, %v3797
    %v3800 = vsub.f32 %v3790, %v3798
    %v3801 = vmul.f32 %v3799, %v3799
    %v3802 = vmul.f32 %v3800, %v3800
    %v3803 = vsel %vm147, %v3801, 0.0
    %3804 = vadd.xlane.f32.xlu0 %v3803
    %v3805 = vpop.xlane.xlu0 %3804
    %v3806 = vsel %vm147, %v3802, 0.0
    %3807 = vadd.xlane.f32.xlu0 %v3806
    %v3808 = vpop.xlane.xlu0 %3807
    %v3809 = vmul.f32 %v3805, %v1768
    %v3810 = vmul.f32 %v3808, %v1768
    %v3811 = vadd.f32 %v3809, 1e-12
    %v3812 = vadd.f32 %v3810, 1e-12
    %v3813 = vrsqrt.pop %v3811
    %v3814 = vmul.f32 %v3813, %v3811
    %v3815 = vmul.f32 %v3814, %v3813
    %v3816 = vmul.f32 0.5, %v3815
    %v3817 = vsub.f32 1.5, %v3816
    %v3818 = vmul.f32 %v3813, %v3817
    %vm3819 = vweird.f32 %v3811
    %vm3820 = vweird.f32 %v3813
    %vm3821 = vmor %vm3819, %vm3820
    %v3822 = vsel %vm3821, %v3813, %v3818
    %v3823 = vrsqrt.pop %v3812
    %v3824 = vmul.f32 %v3823, %v3812
    %v3825 = vmul.f32 %v3824, %v3823
    %v3826 = vmul.f32 0.5, %v3825
    %v3827 = vsub.f32 1.5, %v3826
    %v3828 = vmul.f32 %v3823, %v3827
    %vm3829 = vweird.f32 %v3812
    %vm3830 = vweird.f32 %v3823
    %vm3831 = vmor %vm3829, %vm3830
    %v3832 = vsel %vm3831, %v3823, %v3828
    %v3833 = vmul.f32 %v3799, %v3822
    %v3834 = vmul.f32 %v3800, %v3832
    %v3835 = vperm.slane %v3534, 4
    %v3836 = vmul.f32 %v3833, %v3835
    %v3837 = vmul.f32 %v3834, %v3835
    %v3838 = vperm.slane %v3534, 5
    %v3839 = vadd.f32 %v3836, %v3838
    %v3840 = vadd.f32 %v3837, %v3838
    %3841 = vst.msk [vmem:[#allocation2] sm:$0xff] %vm147, %v3839
    %3842 = vst.msk [vmem:[#allocation2 + $0x8] sm:$0xff] %vm147, %v3840
    // Predicated region
    $region46: #{tpu_custom_call.1} parent=1 // pred_check
      _
    $region47: #{tpu_custom_call.1} parent=1 // pred_check_branch
      %3844 = sbr.rel (0) target = $region49
    $region48: #{tpu_custom_call.1} parent=1 // pred_region
      %3846 = vsyncadd [#allocation3], 0
      %s3847 = sshll.u32 [#allocation2], 4
      %s3848 = int_to_ptr.vmem [resolvable:$true] %s3847
      %s3849 = sshll.u32 %s11, 4
      %s3850 = int_to_ptr.hbm [resolvable:$true] %s3849
      %3855 = dma.vmem_to_hbm [thread:$0]  %s3848, 256, %s3850, [#allocation3], 128, 128, 8
    $region49: #{tpu_custom_call.1} parent=1 // pred_fallthru
      _
    // Predicated region
    $region50: #{tpu_custom_call.1} parent=1 // pred_check
      _
    $region51: #{tpu_custom_call.1} parent=1 // pred_check_branch
      %3857 = sbr.rel (0) target = $region53
    $region52: #{tpu_custom_call.1} parent=1 // pred_region
      %3859 = dma.done [#allocation3], 256
    $region53: #{tpu_custom_call.1} parent=1 // pred_fallthru
      _
    %3860 = vsyncpa [#allocation3], 1

</llo_original>
